<compile_context>
chip_gen: v7x
topology: tpu7x:2x2x1
jax: 0.10.0
libtpu: 0.0.40
codegen_flags: <defaults>
</compile_context>

<pallas_src>
import jax
import jax.numpy as jnp
from jax.experimental import pallas as pl
from jax.experimental.pallas import tpu as pltpu

# ----------------------- model configuration (small) -----------------------
B = 2            # batch
N = 16           # num nodes
DEG = 4          # max degree (neighbors listed in adj)
F_IN = 8         # raw node feature dim            (gat_model_config.dim_in)
D_INIT = 32      # dim_initial == attention dim_in == dim_linear (residual)
L = 2            # number of stacked attention blocks
H = 4            # num_heads
D_HID = 16       # per-head hidden dim
D_HEAD_OUT = 8   # per-head output dim
D_LIN = D_INIT   # AttnModule.linear output dim (must match residual)
F_HID = 16       # dim_hiddens = [16]
F_OUT = 1        # gat_model_config.dim_out
NN_SCALE = 1999853.335557038
LN_EPS = 1e-5

NT = B * N               # fused batch*node rows (32)
ND = NT * DEG            # fused neighbor rows, k-major: row = k*NT + n (128)
HDH = H * D_HID          # 64  (all-head hidden width)
HDO = H * D_HEAD_OUT     # 32  (all-head output width == concat width)

# ---- packed-slab layout (all segments: lane offset 0, sublane offset % 8 == 0) ----
# per-call data slab (f32, lane width NT)
DATA_LANES = NT
GMAT_R0 = 0                        # (ND, NT)   neighbor one-hot gather, k-major
X_R0 = GMAT_R0 + ND                # (NT, F_IN) raw node features
MASK_R0 = X_R0 + NT                # (ND, 1)    k-major neighbor validity mask
QOH_R0 = MASK_R0 + ND              # (B, NT)    query one-hot
SIM_R0 = QOH_R0 + 8                # (B, 1)     sim results
DATA_ROWS = SIM_R0 + 8             # 304

# per-layer weight slab (constant, bf16): (L, W_ROWS, W_LANES)
W_LANES = HDH                      # 64
WP_R0 = 0                          # (D_INIT, HDH)  all-head hidden projection
LINW_R0 = 32                       # (HDO, D_LIN)   AttnModule.linear weight
SC_R0 = 64                         # (HDH, 2H)      [adst_bd | asrc_bd]
WO_R0 = 128                        # (HDH, HDO)     block-diag head output proj
W_ROWS = 192

# bias slab (constant, f32): (L+1, 8, 128); rows of slice [l]:
#   layer l<L : 0 bWp | 1 bWo | 2 linb | 3 lng | 4 lnb
#   slice [L] : 0 bi  | 1 f1b | 2 sb   | 3 f2b
B_ROWS, B_LANES = 8, 128

# head/final weight slab (constant, bf16): (HW_ROWS, HDH)
WI_R0 = 0                          # (F_IN, D_INIT)   initial transform
FW_R0 = 8                          # (D_LIN, F_HID+2) [f1w | sw]
F2_R0 = 40                         # (F_HID, F_OUT)   f2w
REP_R0 = 56                        # (H, HDH)         head -> per-head-lane expansion
HW_ROWS = 64


def _elu(v):
    # clamp the exp argument so the unused branch never overflows
    return jnp.where(v > 0, v, jnp.exp(jnp.minimum(v, 0.0)) - 1.0)


def _leaky_relu(v, slope=0.2):
    return jnp.where(v > 0, v, slope * v)


def stacked_gat_kernel(data_ref, w_ref, b_ref, hw_ref, out_ref):
    f32 = jnp.float32
    bf16 = jnp.bfloat16

    # ---- unpack the per-call data slab (all slices sublane/lane aligned) ----
    gmat = data_ref[GMAT_R0:GMAT_R0 + ND, :].astype(bf16)          # (ND, NT), exact 0/1
    x = data_ref[X_R0:X_R0 + NT, :F_IN].astype(bf16)               # (NT, F_IN)
    mask = data_ref[MASK_R0:MASK_R0 + ND, 0:1]                     # (ND, 1)  f32
    qoh = data_ref[QOH_R0:QOH_R0 + B, :].astype(bf16)              # (B, NT), exact 0/1
    sim = data_ref[SIM_R0:SIM_R0 + B, 0:1]                         # (B, 1)   f32

    hw = hw_ref[...]                                               # (64, 64) bf16
    hb = b_ref[L]                                                  # (8, 128) f32
    rep = hw[REP_R0:REP_R0 + H, :HDH]                              # (H, HDH), exact 0/1

    # ---- initial transform + ELU ----
    h = _elu(jnp.dot(x, hw[WI_R0:WI_R0 + F_IN, :D_INIT],
                     preferred_element_type=f32) + hb[0:1, :D_INIT])        # (NT, D_INIT)

    for l in range(L):
        wl = w_ref[l]                                              # (192, 64) bf16
        bl = b_ref[l]                                              # (8, 128)  f32

        h16 = h.astype(bf16)
        # all-head hidden projection (one wide matmul)
        hp = jnp.dot(h16, wl[WP_R0:WP_R0 + D_INIT, :HDH],
                     preferred_element_type=f32) + bl[0:1, :HDH]   # (NT, HDH)
        hp16 = hp.astype(bf16)

        # fused attention-score projection BEFORE the gather (cols 0:H = dst, H:2H = src)
        sc = jnp.dot(hp16, wl[SC_R0:SC_R0 + HDH, :2 * H],
                     preferred_element_type=f32)                    # (NT, 2H)
        # k-major neighbor gathers via one-hot matmuls
        hp_n = jnp.dot(gmat, hp16, preferred_element_type=f32)      # (ND, HDH)
        dstn = jnp.dot(gmat, sc[:, :H].astype(bf16),
                       preferred_element_type=f32)                  # (ND, H)

        # masked softmax over the DEG neighbor slots (k-major sublane blocks)
        src_nd = jnp.concatenate([sc[:, H:2 * H]] * DEG, axis=0)    # (ND, H)
        e = _leaky_relu(src_nd + dstn)
        e = jnp.where(mask > 0, e, -1e9)
        m = jnp.maximum(jnp.maximum(e[0:NT], e[NT:2 * NT]),
                        jnp.maximum(e[2 * NT:3 * NT], e[3 * NT:4 * NT]))    # (NT, H)
        p = jnp.exp(e - jnp.concatenate([m] * DEG, axis=0)) * mask          # (ND, H)
        s = p[0:NT] + p[NT:2 * NT] + p[2 * NT:3 * NT] + p[3 * NT:4 * NT]    # (NT, H)
        inv = pl.reciprocal(s + 1e-9, approx=True)                          # (NT, H)
        alpha = p * jnp.concatenate([inv] * DEG, axis=0)                    # (ND, H)

        # single k-major head-broadcast matmul + elementwise weight + 3 block adds
        wgt = (jnp.dot(alpha.astype(bf16), rep, preferred_element_type=f32)
               * hp_n)                                                       # (ND, HDH)
        agg = (wgt[0:NT] + wgt[NT:2 * NT]
               + wgt[2 * NT:3 * NT] + wgt[3 * NT:4 * NT])                    # (NT, HDH)

        # block-diagonal per-head output projection == concat of head outputs
        heads = (jnp.dot(agg.astype(bf16), wl[WO_R0:WO_R0 + HDH, :HDO],
                         preferred_element_type=f32) + bl[1:2, :HDO])        # (NT, HDO)
        lin = _elu(jnp.dot(heads.astype(bf16), wl[LINW_R0:LINW_R0 + HDO, :D_LIN],
                           preferred_element_type=f32) + bl[2:3, :D_LIN])    # (NT, D_LIN)
        out = lin + h                                                        # residual
        # LayerNorm over the last dim (f32)
        mu = jnp.mean(out, axis=-1, keepdims=True)
        var = jnp.mean((out - mu) ** 2, axis=-1, keepdims=True)
        h = ((out - mu) * jax.lax.rsqrt(var + LN_EPS) * bl[3:4, :D_LIN]
             + bl[4:5, :D_LIN])

    # gather the query-node features of every batch element via one-hot matmul
    vnf = jnp.dot(qoh, h.astype(bf16), preferred_element_type=f32)           # (B, D_LIN)

    # final MLP head + sim-mixing head; f1w and sw fused into one matmul
    t = jnp.dot(vnf.astype(bf16), hw[FW_R0:FW_R0 + D_LIN, :F_HID + 2],
                preferred_element_type=f32)                                  # (B, F_HID+2)
    z1 = _elu(t[:, :F_HID] + hb[1:2, :F_HID])                                # (B, F_HID)
    nn = _elu(jnp.dot(z1.astype(bf16), hw[F2_R0:F2_R0 + F_HID, :F_OUT],
                      preferred_element_type=f32)
              + hb[3:4, :F_OUT]) * NN_SCALE                                  # (B, 1)
    logits = t[:, F_HID:F_HID + 2] + hb[2:3, :2]                             # (B, 2)
    # softmax over 2 logits == sigmoid of the logit difference
    w0 = 1.0 / (1.0 + jnp.exp(logits[:, 1:2] - logits[:, 0:1]))              # (B, 1)
    out_ref[...] = w0 * nn + (1.0 - w0) * sim


def prepare_params(params):
    """One-time packing of the 18 weight tensors into 3 DMA slabs.

    Hoisted out of the per-call jit: the block-diagonal head fusion, the
    transposes and the concats now run once at setup, not on every forward.
    Weights that feed matmuls are pre-cast to bf16; biases / LayerNorm stay f32.
    """
    f32 = jnp.float32
    bf16 = jnp.bfloat16
    eyeH = jnp.eye(H, dtype=f32)

    # ---- per-layer weight slab (L, 192, 64), every segment at lane offset 0 ----
    Wp = jnp.transpose(params["W"], (0, 2, 1, 3)).reshape(L, D_INIT, HDH)
    adst_bd = jnp.einsum("lhd,hg->lhdg", params["adst"][..., 0], eyeH).reshape(L, HDH, H)
    asrc_bd = jnp.einsum("lhd,hg->lhdg", params["asrc"][..., 0], eyeH).reshape(L, HDH, H)
    wo_bd = jnp.einsum("lhde,hg->lhdge", params["Wo"], eyeH).reshape(L, HDH, HDO)
    wscore = jnp.concatenate([adst_bd, asrc_bd], axis=-1)                   # (L, HDH, 2H)

    def lane_pad(a):
        return jnp.pad(a, ((0, 0), (0, 0), (0, W_LANES - a.shape[-1])))

    w_slab = jnp.concatenate(
        [lane_pad(Wp), lane_pad(params["linW"]), lane_pad(wscore), lane_pad(wo_bd)],
        axis=1).astype(bf16)                                                # (L, 192, 64)

    # ---- bias slab (L+1, 8, 128): one sublane row per segment ----
    def row(vec):
        v = vec.reshape(1, -1).astype(f32)
        return jnp.pad(v, ((0, 0), (0, B_LANES - v.shape[1])))

    layer_slabs = []
    for l in range(L):
        layer_slabs.append(jnp.concatenate(
            [row(params["bW"][l]), row(params["bWo"][l]), row(params["linb"][l]),
             row(params["lng"][l]), row(params["lnb"][l]),
             jnp.zeros((B_ROWS - 5, B_LANES), f32)], axis=0))
    head_rows = jnp.concatenate(
        [row(params["bi"]), row(params["f1b"]), row(params["sb"]), row(params["f2b"]),
         jnp.zeros((B_ROWS - 4, B_LANES), f32)], axis=0)
    b_slab = jnp.stack(layer_slabs + [head_rows], axis=0)                   # (L+1, 8, 128)

    # ---- head/final weight slab (64, 64) ----
    def seg(a, rows):
        a = a.astype(f32)
        return jnp.pad(a, ((0, rows - a.shape[0]), (0, HDH - a.shape[1])))

    rep = jnp.repeat(eyeH, D_HID, axis=1)                                   # (H, HDH)
    fwA = jnp.concatenate([params["f1w"], params["sw"]], axis=1)            # (D_LIN, 18)
    hw_slab = jnp.concatenate(
        [seg(params["wi"], 8), seg(fwA, 32), seg(params["f2w"], 16),
         seg(rep, HW_ROWS - REP_R0)], axis=0).astype(bf16)                  # (64, 64)

    return {"w": w_slab, "b": b_slab, "hw": hw_slab}


@jax.jit
def stacked_gat_forward(node_features, query_idxs, masks, adj, sim_results, packed):
    f32 = jnp.float32

    # ---- data-dependent part only: fold batch into node axis, build gathers ----
    x = node_features.reshape(NT, F_IN).astype(f32)
    offs = (jnp.arange(B, dtype=jnp.int32) * N)[:, None, None]
    adj_fused = (adj.astype(jnp.int32) + offs).reshape(NT, DEG)             # (NT, DEG)
    # k-major neighbor gather one-hot: row k*NT + n selects node adj_fused[n, k]
    gmat = jax.nn.one_hot(adj_fused.T.reshape(ND), NT, dtype=f32)           # (ND, NT)
    mask_nd = masks.reshape(NT, DEG).astype(f32).T.reshape(ND, 1)           # (ND, 1)
    qoh = jax.nn.one_hot(
        query_idxs.astype(jnp.int32) + jnp.arange(B, dtype=jnp.int32) * N,
        NT, dtype=f32)                                                      # (B, NT)
    sim = sim_results.astype(f32)                                           # (B, 1)

    def seg(a, rows):
        return jnp.pad(a, ((0, rows - a.shape[0]), (0, DATA_LANES - a.shape[1])))

    data = jnp.concatenate(
        [gmat, seg(x, NT), seg(mask_nd, ND), seg(qoh, 8), seg(sim, 8)],
        axis=0)                                                             # (304, 32)

    def full(shape):
        n = len(shape)
        return pl.BlockSpec(shape, lambda i: (0,) * n)

    return pl.pallas_call(
        stacked_gat_kernel,
        out_shape=jax.ShapeDtypeStruct((B, 1), jnp.float32),
        grid=(1,),
        in_specs=[
            full((DATA_ROWS, DATA_LANES)),
            full((L, W_ROWS, W_LANES)),
            full((L + 1, B_ROWS, B_LANES)),
            full((HW_ROWS, HDH)),
        ],
        out_specs=pl.BlockSpec((B, 1), lambda i: (0, 0)),
        compiler_params=pltpu.CompilerParams(
            dimension_semantics=("arbitrary",)),
    )(data, packed["w"], packed["b"], packed["hw"])


def init_params(key):
    ks = jax.random.split(key, 16)
    nrm = lambda k, shape, s=0.1: (s * jax.random.normal(k, shape)).astype(jnp.float32)
    return {
        "wi": nrm(ks[0], (F_IN, D_INIT)),
        "bi": nrm(ks[1], (1, D_INIT), 0.01),
        "W": nrm(ks[2], (L, H, D_INIT, D_HID)),
        "bW": nrm(ks[3], (L, H, 1, D_HID), 0.01),
        "asrc": nrm(ks[4], (L, H, D_HID, 1)),
        "adst": nrm(ks[5], (L, H, D_HID, 1)),
        "Wo": nrm(ks[6], (L, H, D_HID, D_HEAD_OUT)),
        "bWo": nrm(ks[7], (L, H, 1, D_HEAD_OUT), 0.01),
        "linW": nrm(ks[8], (L, H * D_HEAD_OUT, D_LIN)),
        "linb": nrm(ks[9], (L, 1, D_LIN), 0.01),
        "lng": jnp.ones((L, 1, D_LIN), jnp.float32),
        "lnb": jnp.zeros((L, 1, D_LIN), jnp.float32),
        "f1w": nrm(ks[10], (D_LIN, F_HID)),
        "f1b": nrm(ks[11], (1, F_HID), 0.01),
        "f2w": nrm(ks[12], (F_HID, F_OUT)),
        "f2b": nrm(ks[13], (1, F_OUT), 0.01),
        "sw": nrm(ks[14], (D_LIN, 2)),
        "sb": nrm(ks[15], (1, 2), 0.01),
    }


if __name__ == "__main__":
    key = jax.random.PRNGKey(0)
    k_p, k_x, k_q, k_m, k_a, k_s = jax.random.split(key, 6)

    params = init_params(k_p)
    packed = prepare_params(params)      # one-time weight packing (hoisted out of forward)

    node_features = jax.random.normal(k_x, (B, N, F_IN), dtype=jnp.float32)
    query_idxs = jax.random.randint(k_q, (B,), 0, N)
    masks = (jax.random.uniform(k_m, (B, N, DEG, 1)) < 0.8).astype(jnp.float32)
    adj = jax.random.randint(k_a, (B, N, DEG), 0, N)
    sim_results = jax.random.normal(k_s, (B, 1), dtype=jnp.float32)

    out = stacked_gat_forward(node_features, query_idxs, masks, adj,
                              sim_results, packed)
    out = jax.block_until_ready(out)
    assert out.shape == (B, 1) and bool(jnp.all(jnp.isfinite(out)))
    print("KERNEL_OK")
</pallas_src>

<mosaic_0001>
module attributes {stable_mosaic.version = 11 : i64} {
  func.func @stacked_gat_kernel(%arg0: i32, %arg1: memref<304x32xf32, #tpu.memory_space<vmem>>, %arg2: memref<2x192x64xbf16, #tpu.memory_space<vmem>>, %arg3: memref<3x8x128xf32, #tpu.memory_space<vmem>>, %arg4: memref<64x64xbf16, #tpu.memory_space<vmem>>, %arg5: memref<2x1xf32, #tpu.memory_space<vmem>>) attributes {dimension_semantics = [#tpu.dimension_semantics<arbitrary>], iteration_bounds = array<i64: 1>, scalar_prefetch = 0 : i64, scratch_operands = 0 : i64, tpu.core_type = #tpu.core_type<tc>, window_params = [{pipeline_mode = #tpu.pipeline_mode<synchronous>, transform_indices = @transform_0, window_bounds = array<i64: 304, 32>}, {pipeline_mode = #tpu.pipeline_mode<synchronous>, transform_indices = @transform_1, window_bounds = array<i64: 2, 192, 64>}, {pipeline_mode = #tpu.pipeline_mode<synchronous>, transform_indices = @transform_2, window_bounds = array<i64: 3, 8, 128>}, {pipeline_mode = #tpu.pipeline_mode<synchronous>, transform_indices = @transform_3, window_bounds = array<i64: 64, 64>}, {pipeline_mode = #tpu.pipeline_mode<synchronous>, transform_indices = @transform_4, window_bounds = array<i64: 2, 1>}]} {
    %c0 = arith.constant 0 : index
    %c0_0 = arith.constant 0 : index
    %0 = vector.load %arg1[%c0, %c0_0] : memref<304x32xf32, #tpu.memory_space<vmem>>, vector<128x32xf32>
    %1 = arith.truncf %0 : vector<128x32xf32> to vector<128x32xbf16>
    %c128 = arith.constant 128 : index
    %c0_1 = arith.constant 0 : index
    %2 = vector.load %arg1[%c128, %c0_1] : memref<304x32xf32, #tpu.memory_space<vmem>>, vector<32x8xf32>
    %3 = arith.truncf %2 : vector<32x8xf32> to vector<32x8xbf16>
    %c160 = arith.constant 160 : index
    %c0_2 = arith.constant 0 : index
    %4 = vector.load %arg1[%c160, %c0_2] : memref<304x32xf32, #tpu.memory_space<vmem>>, vector<128x1xf32>
    %c288 = arith.constant 288 : index
    %c0_3 = arith.constant 0 : index
    %5 = vector.load %arg1[%c288, %c0_3] : memref<304x32xf32, #tpu.memory_space<vmem>>, vector<2x32xf32>
    %6 = arith.truncf %5 : vector<2x32xf32> to vector<2x32xbf16>
    %c296 = arith.constant 296 : index
    %c0_4 = arith.constant 0 : index
    %7 = vector.load %arg1[%c296, %c0_4] : memref<304x32xf32, #tpu.memory_space<vmem>>, vector<2x1xf32>
    %c0_5 = arith.constant 0 : index
    %c0_6 = arith.constant 0 : index
    %8 = vector.load %arg4[%c0_5, %c0_6] : memref<64x64xbf16, #tpu.memory_space<vmem>>, vector<64x64xbf16>
    %c2 = arith.constant 2 : index
    %c0_7 = arith.constant 0 : index
    %c0_8 = arith.constant 0 : index
    %9 = vector.load %arg3[%c2, %c0_7, %c0_8] : memref<3x8x128xf32, #tpu.memory_space<vmem>>, vector<1x8x128xf32>
    %10 = vector.shape_cast %9 : vector<1x8x128xf32> to vector<8x128xf32>
    %11 = vector.extract_strided_slice %8 {offsets = [56, 0], sizes = [4, 64], strides = [1, 1]} : vector<64x64xbf16> to vector<4x64xbf16>
    %12 = vector.extract_strided_slice %8 {offsets = [0, 0], sizes = [8, 32], strides = [1, 1]} : vector<64x64xbf16> to vector<8x32xbf16>
    %cst = arith.constant dense<0.000000e+00> : vector<32x32xf32>
    %13 = tpu.matmul %3, %12, %cst {dimension_numbers = #tpu.dot_dimension_numbers<[1], [0], [0], [1], [0, 0, 1, 1], [], []>} : vector<32x8xbf16>, vector<8x32xbf16>, vector<32x32xf32> -> vector<32x32xf32>
    %14 = vector.extract_strided_slice %10 {offsets = [0, 0], sizes = [1, 32], strides = [1, 1]} : vector<8x128xf32> to vector<1x32xf32>
    %15 = vector.broadcast %14 : vector<1x32xf32> to vector<32x32xf32>
    %16 = arith.addf %13, %15 : vector<32x32xf32>
    %cst_9 = arith.constant 0.000000e+00 : f32
    %17 = vector.broadcast %cst_9 : f32 to vector<32x32xf32>
    %18 = arith.cmpf ogt, %16, %17 : vector<32x32xf32>
    %cst_10 = arith.constant 0.000000e+00 : f32
    %19 = vector.broadcast %cst_10 : f32 to vector<32x32xf32>
    %20 = arith.minimumf %16, %19 : vector<32x32xf32>
    %21 = math.exp %20 : vector<32x32xf32>
    %cst_11 = arith.constant 1.000000e+00 : f32
    %22 = vector.broadcast %cst_11 : f32 to vector<32x32xf32>
    %23 = arith.subf %21, %22 : vector<32x32xf32>
    %24 = arith.select %18, %16, %23 : vector<32x32xi1>, vector<32x32xf32>
    %c0_12 = arith.constant 0 : index
    %c0_13 = arith.constant 0 : index
    %c0_14 = arith.constant 0 : index
    %25 = vector.load %arg2[%c0_12, %c0_13, %c0_14] : memref<2x192x64xbf16, #tpu.memory_space<vmem>>, vector<1x192x64xbf16>
    %26 = vector.shape_cast %25 : vector<1x192x64xbf16> to vector<192x64xbf16>
    %c0_15 = arith.constant 0 : index
    %c0_16 = arith.constant 0 : index
    %c0_17 = arith.constant 0 : index
    %27 = vector.load %arg3[%c0_15, %c0_16, %c0_17] : memref<3x8x128xf32, #tpu.memory_space<vmem>>, vector<1x8x128xf32>
    %28 = vector.shape_cast %27 : vector<1x8x128xf32> to vector<8x128xf32>
    %29 = arith.truncf %24 : vector<32x32xf32> to vector<32x32xbf16>
    %30 = vector.extract_strided_slice %26 {offsets = [0, 0], sizes = [32, 64], strides = [1, 1]} : vector<192x64xbf16> to vector<32x64xbf16>
    %cst_18 = arith.constant dense<0.000000e+00> : vector<32x64xf32>
    %31 = tpu.matmul %29, %30, %cst_18 {dimension_numbers = #tpu.dot_dimension_numbers<[1], [0], [0], [1], [0, 0, 1, 1], [], []>} : vector<32x32xbf16>, vector<32x64xbf16>, vector<32x64xf32> -> vector<32x64xf32>
    %32 = vector.extract_strided_slice %28 {offsets = [0, 0], sizes = [1, 64], strides = [1, 1]} : vector<8x128xf32> to vector<1x64xf32>
    %33 = vector.broadcast %32 : vector<1x64xf32> to vector<32x64xf32>
    %34 = arith.addf %31, %33 : vector<32x64xf32>
    %35 = arith.truncf %34 : vector<32x64xf32> to vector<32x64xbf16>
    %36 = vector.extract_strided_slice %26 {offsets = [64, 0], sizes = [64, 8], strides = [1, 1]} : vector<192x64xbf16> to vector<64x8xbf16>
    %cst_19 = arith.constant dense<0.000000e+00> : vector<32x8xf32>
    %37 = tpu.matmul %35, %36, %cst_19 {dimension_numbers = #tpu.dot_dimension_numbers<[1], [0], [0], [1], [0, 0, 1, 1], [], []>} : vector<32x64xbf16>, vector<64x8xbf16>, vector<32x8xf32> -> vector<32x8xf32>
    %cst_20 = arith.constant dense<0.000000e+00> : vector<128x64xf32>
    %38 = tpu.matmul %1, %35, %cst_20 {dimension_numbers = #tpu.dot_dimension_numbers<[1], [0], [0], [1], [0, 0, 1, 1], [], []>} : vector<128x32xbf16>, vector<32x64xbf16>, vector<128x64xf32> -> vector<128x64xf32>
    %39 = vector.extract_strided_slice %37 {offsets = [0, 0], sizes = [32, 4], strides = [1, 1]} : vector<32x8xf32> to vector<32x4xf32>
    %40 = arith.truncf %39 : vector<32x4xf32> to vector<32x4xbf16>
    %cst_21 = arith.constant dense<0.000000e+00> : vector<128x4xf32>
    %41 = tpu.matmul %1, %40, %cst_21 {dimension_numbers = #tpu.dot_dimension_numbers<[1], [0], [0], [1], [0, 0, 1, 1], [], []>} : vector<128x32xbf16>, vector<32x4xbf16>, vector<128x4xf32> -> vector<128x4xf32>
    %42 = vector.extract_strided_slice %37 {offsets = [0, 4], sizes = [32, 4], strides = [1, 1]} : vector<32x8xf32> to vector<32x4xf32>
    %43 = tpu.concatenate %42, %42, %42, %42 in 0 : vector<32x4xf32>, vector<32x4xf32>, vector<32x4xf32>, vector<32x4xf32> -> vector<128x4xf32>
    %44 = arith.addf %43, %41 : vector<128x4xf32>
    %cst_22 = arith.constant 0.000000e+00 : f32
    %45 = vector.broadcast %cst_22 : f32 to vector<128x4xf32>
    %46 = arith.cmpf ogt, %44, %45 : vector<128x4xf32>
    %cst_23 = arith.constant 2.000000e-01 : f32
    %47 = vector.broadcast %cst_23 : f32 to vector<128x4xf32>
    %48 = arith.mulf %47, %44 : vector<128x4xf32>
    %49 = arith.select %46, %44, %48 : vector<128x4xi1>, vector<128x4xf32>
    %cst_24 = arith.constant 0.000000e+00 : f32
    %50 = vector.broadcast %cst_24 : f32 to vector<128x1xf32>
    %51 = arith.cmpf ogt, %4, %50 : vector<128x1xf32>
    %cst_25 = arith.constant -1.000000e+09 : f32
    %52 = vector.shape_cast %51 : vector<128x1xi1> to vector<128x1xi1>
    %53 = vector.broadcast %52 : vector<128x1xi1> to vector<128x4xi1>
    %54 = vector.broadcast %cst_25 : f32 to vector<128x4xf32>
    %55 = arith.select %53, %49, %54 : vector<128x4xi1>, vector<128x4xf32>
    %56 = vector.extract_strided_slice %55 {offsets = [0, 0], sizes = [32, 4], strides = [1, 1]} : vector<128x4xf32> to vector<32x4xf32>
    %57 = vector.extract_strided_slice %55 {offsets = [32, 0], sizes = [32, 4], strides = [1, 1]} : vector<128x4xf32> to vector<32x4xf32>
    %58 = arith.maximumf %56, %57 : vector<32x4xf32>
    %59 = vector.extract_strided_slice %55 {offsets = [64, 0], sizes = [32, 4], strides = [1, 1]} : vector<128x4xf32> to vector<32x4xf32>
    %60 = vector.extract_strided_slice %55 {offsets = [96, 0], sizes = [32, 4], strides = [1, 1]} : vector<128x4xf32> to vector<32x4xf32>
    %61 = arith.maximumf %59, %60 : vector<32x4xf32>
    %62 = arith.maximumf %58, %61 : vector<32x4xf32>
    %63 = tpu.concatenate %62, %62, %62, %62 in 0 : vector<32x4xf32>, vector<32x4xf32>, vector<32x4xf32>, vector<32x4xf32> -> vector<128x4xf32>
    %64 = arith.subf %55, %63 : vector<128x4xf32>
    %65 = math.exp %64 : vector<128x4xf32>
    %66 = vector.broadcast %4 : vector<128x1xf32> to vector<128x4xf32>
    %67 = arith.mulf %65, %66 : vector<128x4xf32>
    %68 = vector.extract_strided_slice %67 {offsets = [0, 0], sizes = [32, 4], strides = [1, 1]} : vector<128x4xf32> to vector<32x4xf32>
    %69 = vector.extract_strided_slice %67 {offsets = [32, 0], sizes = [32, 4], strides = [1, 1]} : vector<128x4xf32> to vector<32x4xf32>
    %70 = arith.addf %68, %69 : vector<32x4xf32>
    %71 = vector.extract_strided_slice %67 {offsets = [64, 0], sizes = [32, 4], strides = [1, 1]} : vector<128x4xf32> to vector<32x4xf32>
    %72 = arith.addf %70, %71 : vector<32x4xf32>
    %73 = vector.extract_strided_slice %67 {offsets = [96, 0], sizes = [32, 4], strides = [1, 1]} : vector<128x4xf32> to vector<32x4xf32>
    %74 = arith.addf %72, %73 : vector<32x4xf32>
    %cst_26 = arith.constant 9.99999971E-10 : f32
    %75 = vector.broadcast %cst_26 : f32 to vector<32x4xf32>
    %76 = arith.addf %74, %75 : vector<32x4xf32>
    %77 = tpu.reciprocal %76 {approx = true} : vector<32x4xf32> -> vector<32x4xf32>
    %78 = tpu.concatenate %77, %77, %77, %77 in 0 : vector<32x4xf32>, vector<32x4xf32>, vector<32x4xf32>, vector<32x4xf32> -> vector<128x4xf32>
    %79 = arith.mulf %67, %78 : vector<128x4xf32>
    %80 = arith.truncf %79 : vector<128x4xf32> to vector<128x4xbf16>
    %cst_27 = arith.constant dense<0.000000e+00> : vector<128x64xf32>
    %81 = tpu.matmul %80, %11, %cst_27 {dimension_numbers = #tpu.dot_dimension_numbers<[1], [0], [0], [1], [0, 0, 1, 1], [], []>} : vector<128x4xbf16>, vector<4x64xbf16>, vector<128x64xf32> -> vector<128x64xf32>
    %82 = arith.mulf %81, %38 : vector<128x64xf32>
    %83 = vector.extract_strided_slice %82 {offsets = [0, 0], sizes = [32, 64], strides = [1, 1]} : vector<128x64xf32> to vector<32x64xf32>
    %84 = vector.extract_strided_slice %82 {offsets = [32, 0], sizes = [32, 64], strides = [1, 1]} : vector<128x64xf32> to vector<32x64xf32>
    %85 = arith.addf %83, %84 : vector<32x64xf32>
    %86 = vector.extract_strided_slice %82 {offsets = [64, 0], sizes = [32, 64], strides = [1, 1]} : vector<128x64xf32> to vector<32x64xf32>
    %87 = arith.addf %85, %86 : vector<32x64xf32>
    %88 = vector.extract_strided_slice %82 {offsets = [96, 0], sizes = [32, 64], strides = [1, 1]} : vector<128x64xf32> to vector<32x64xf32>
    %89 = arith.addf %87, %88 : vector<32x64xf32>
    %90 = arith.truncf %89 : vector<32x64xf32> to vector<32x64xbf16>
    %91 = vector.extract_strided_slice %26 {offsets = [128, 0], sizes = [64, 32], strides = [1, 1]} : vector<192x64xbf16> to vector<64x32xbf16>
    %cst_28 = arith.constant dense<0.000000e+00> : vector<32x32xf32>
    %92 = tpu.matmul %90, %91, %cst_28 {dimension_numbers = #tpu.dot_dimension_numbers<[1], [0], [0], [1], [0, 0, 1, 1], [], []>} : vector<32x64xbf16>, vector<64x32xbf16>, vector<32x32xf32> -> vector<32x32xf32>
    %93 = vector.extract_strided_slice %28 {offsets = [1, 0], sizes = [1, 32], strides = [1, 1]} : vector<8x128xf32> to vector<1x32xf32>
    %94 = vector.broadcast %93 : vector<1x32xf32> to vector<32x32xf32>
    %95 = arith.addf %92, %94 : vector<32x32xf32>
    %96 = arith.truncf %95 : vector<32x32xf32> to vector<32x32xbf16>
    %97 = vector.extract_strided_slice %26 {offsets = [32, 0], sizes = [32, 32], strides = [1, 1]} : vector<192x64xbf16> to vector<32x32xbf16>
    %cst_29 = arith.constant dense<0.000000e+00> : vector<32x32xf32>
    %98 = tpu.matmul %96, %97, %cst_29 {dimension_numbers = #tpu.dot_dimension_numbers<[1], [0], [0], [1], [0, 0, 1, 1], [], []>} : vector<32x32xbf16>, vector<32x32xbf16>, vector<32x32xf32> -> vector<32x32xf32>
    %99 = vector.extract_strided_slice %28 {offsets = [2, 0], sizes = [1, 32], strides = [1, 1]} : vector<8x128xf32> to vector<1x32xf32>
    %100 = vector.broadcast %99 : vector<1x32xf32> to vector<32x32xf32>
    %101 = arith.addf %98, %100 : vector<32x32xf32>
    %cst_30 = arith.constant 0.000000e+00 : f32
    %102 = vector.broadcast %cst_30 : f32 to vector<32x32xf32>
    %103 = arith.cmpf ogt, %101, %102 : vector<32x32xf32>
    %cst_31 = arith.constant 0.000000e+00 : f32
    %104 = vector.broadcast %cst_31 : f32 to vector<32x32xf32>
    %105 = arith.minimumf %101, %104 : vector<32x32xf32>
    %106 = math.exp %105 : vector<32x32xf32>
    %cst_32 = arith.constant 1.000000e+00 : f32
    %107 = vector.broadcast %cst_32 : f32 to vector<32x32xf32>
    %108 = arith.subf %106, %107 : vector<32x32xf32>
    %109 = arith.select %103, %101, %108 : vector<32x32xi1>, vector<32x32xf32>
    %110 = arith.addf %109, %24 : vector<32x32xf32>
    %cst_33 = arith.constant dense<0.000000e+00> : vector<32xf32>
    %111 = vector.multi_reduction <add>, %110, %cst_33 [1] : vector<32x32xf32> to vector<32xf32>
    %112 = vector.shape_cast %111 : vector<32xf32> to vector<32x1xf32>
    %cst_34 = arith.constant 3.200000e+01 : f32
    %113 = vector.broadcast %cst_34 : f32 to vector<32x1xf32>
    %114 = arith.divf %112, %113 : vector<32x1xf32>
    %115 = vector.broadcast %114 : vector<32x1xf32> to vector<32x32xf32>
    %116 = arith.subf %110, %115 : vector<32x32xf32>
    %117 = arith.mulf %116, %116 : vector<32x32xf32>
    %cst_35 = arith.constant dense<0.000000e+00> : vector<32xf32>
    %118 = vector.multi_reduction <add>, %117, %cst_35 [1] : vector<32x32xf32> to vector<32xf32>
    %119 = vector.shape_cast %118 : vector<32xf32> to vector<32x1xf32>
    %cst_36 = arith.constant 3.200000e+01 : f32
    %120 = vector.broadcast %cst_36 : f32 to vector<32x1xf32>
    %121 = arith.divf %119, %120 : vector<32x1xf32>
    %122 = vector.broadcast %114 : vector<32x1xf32> to vector<32x32xf32>
    %123 = arith.subf %110, %122 : vector<32x32xf32>
    %cst_37 = arith.constant 9.99999974E-6 : f32
    %124 = vector.broadcast %cst_37 : f32 to vector<32x1xf32>
    %125 = arith.addf %121, %124 : vector<32x1xf32>
    %126 = math.rsqrt %125 : vector<32x1xf32>
    %127 = vector.broadcast %126 : vector<32x1xf32> to vector<32x32xf32>
    %128 = arith.mulf %123, %127 : vector<32x32xf32>
    %129 = vector.extract_strided_slice %28 {offsets = [3, 0], sizes = [1, 32], strides = [1, 1]} : vector<8x128xf32> to vector<1x32xf32>
    %130 = vector.broadcast %129 : vector<1x32xf32> to vector<32x32xf32>
    %131 = arith.mulf %128, %130 : vector<32x32xf32>
    %132 = vector.extract_strided_slice %28 {offsets = [4, 0], sizes = [1, 32], strides = [1, 1]} : vector<8x128xf32> to vector<1x32xf32>
    %133 = vector.broadcast %132 : vector<1x32xf32> to vector<32x32xf32>
    %134 = arith.addf %131, %133 : vector<32x32xf32>
    %c1 = arith.constant 1 : index
    %c0_38 = arith.constant 0 : index
    %c0_39 = arith.constant 0 : index
    %135 = vector.load %arg2[%c1, %c0_38, %c0_39] : memref<2x192x64xbf16, #tpu.memory_space<vmem>>, vector<1x192x64xbf16>
    %136 = vector.shape_cast %135 : vector<1x192x64xbf16> to vector<192x64xbf16>
    %c1_40 = arith.constant 1 : index
    %c0_41 = arith.constant 0 : index
    %c0_42 = arith.constant 0 : index
    %137 = vector.load %arg3[%c1_40, %c0_41, %c0_42] : memref<3x8x128xf32, #tpu.memory_space<vmem>>, vector<1x8x128xf32>
    %138 = vector.shape_cast %137 : vector<1x8x128xf32> to vector<8x128xf32>
    %139 = arith.truncf %134 : vector<32x32xf32> to vector<32x32xbf16>
    %140 = vector.extract_strided_slice %136 {offsets = [0, 0], sizes = [32, 64], strides = [1, 1]} : vector<192x64xbf16> to vector<32x64xbf16>
    %cst_43 = arith.constant dense<0.000000e+00> : vector<32x64xf32>
    %141 = tpu.matmul %139, %140, %cst_43 {dimension_numbers = #tpu.dot_dimension_numbers<[1], [0], [0], [1], [0, 0, 1, 1], [], []>} : vector<32x32xbf16>, vector<32x64xbf16>, vector<32x64xf32> -> vector<32x64xf32>
    %142 = vector.extract_strided_slice %138 {offsets = [0, 0], sizes = [1, 64], strides = [1, 1]} : vector<8x128xf32> to vector<1x64xf32>
    %143 = vector.broadcast %142 : vector<1x64xf32> to vector<32x64xf32>
    %144 = arith.addf %141, %143 : vector<32x64xf32>
    %145 = arith.truncf %144 : vector<32x64xf32> to vector<32x64xbf16>
    %146 = vector.extract_strided_slice %136 {offsets = [64, 0], sizes = [64, 8], strides = [1, 1]} : vector<192x64xbf16> to vector<64x8xbf16>
    %cst_44 = arith.constant dense<0.000000e+00> : vector<32x8xf32>
    %147 = tpu.matmul %145, %146, %cst_44 {dimension_numbers = #tpu.dot_dimension_numbers<[1], [0], [0], [1], [0, 0, 1, 1], [], []>} : vector<32x64xbf16>, vector<64x8xbf16>, vector<32x8xf32> -> vector<32x8xf32>
    %cst_45 = arith.constant dense<0.000000e+00> : vector<128x64xf32>
    %148 = tpu.matmul %1, %145, %cst_45 {dimension_numbers = #tpu.dot_dimension_numbers<[1], [0], [0], [1], [0, 0, 1, 1], [], []>} : vector<128x32xbf16>, vector<32x64xbf16>, vector<128x64xf32> -> vector<128x64xf32>
    %149 = vector.extract_strided_slice %147 {offsets = [0, 0], sizes = [32, 4], strides = [1, 1]} : vector<32x8xf32> to vector<32x4xf32>
    %150 = arith.truncf %149 : vector<32x4xf32> to vector<32x4xbf16>
    %cst_46 = arith.constant dense<0.000000e+00> : vector<128x4xf32>
    %151 = tpu.matmul %1, %150, %cst_46 {dimension_numbers = #tpu.dot_dimension_numbers<[1], [0], [0], [1], [0, 0, 1, 1], [], []>} : vector<128x32xbf16>, vector<32x4xbf16>, vector<128x4xf32> -> vector<128x4xf32>
    %152 = vector.extract_strided_slice %147 {offsets = [0, 4], sizes = [32, 4], strides = [1, 1]} : vector<32x8xf32> to vector<32x4xf32>
    %153 = tpu.concatenate %152, %152, %152, %152 in 0 : vector<32x4xf32>, vector<32x4xf32>, vector<32x4xf32>, vector<32x4xf32> -> vector<128x4xf32>
    %154 = arith.addf %153, %151 : vector<128x4xf32>
    %cst_47 = arith.constant 0.000000e+00 : f32
    %155 = vector.broadcast %cst_47 : f32 to vector<128x4xf32>
    %156 = arith.cmpf ogt, %154, %155 : vector<128x4xf32>
    %cst_48 = arith.constant 2.000000e-01 : f32
    %157 = vector.broadcast %cst_48 : f32 to vector<128x4xf32>
    %158 = arith.mulf %157, %154 : vector<128x4xf32>
    %159 = arith.select %156, %154, %158 : vector<128x4xi1>, vector<128x4xf32>
    %cst_49 = arith.constant 0.000000e+00 : f32
    %160 = vector.broadcast %cst_49 : f32 to vector<128x1xf32>
    %161 = arith.cmpf ogt, %4, %160 : vector<128x1xf32>
    %cst_50 = arith.constant -1.000000e+09 : f32
    %162 = vector.shape_cast %161 : vector<128x1xi1> to vector<128x1xi1>
    %163 = vector.broadcast %162 : vector<128x1xi1> to vector<128x4xi1>
    %164 = vector.broadcast %cst_50 : f32 to vector<128x4xf32>
    %165 = arith.select %163, %159, %164 : vector<128x4xi1>, vector<128x4xf32>
    %166 = vector.extract_strided_slice %165 {offsets = [0, 0], sizes = [32, 4], strides = [1, 1]} : vector<128x4xf32> to vector<32x4xf32>
    %167 = vector.extract_strided_slice %165 {offsets = [32, 0], sizes = [32, 4], strides = [1, 1]} : vector<128x4xf32> to vector<32x4xf32>
    %168 = arith.maximumf %166, %167 : vector<32x4xf32>
    %169 = vector.extract_strided_slice %165 {offsets = [64, 0], sizes = [32, 4], strides = [1, 1]} : vector<128x4xf32> to vector<32x4xf32>
    %170 = vector.extract_strided_slice %165 {offsets = [96, 0], sizes = [32, 4], strides = [1, 1]} : vector<128x4xf32> to vector<32x4xf32>
    %171 = arith.maximumf %169, %170 : vector<32x4xf32>
    %172 = arith.maximumf %168, %171 : vector<32x4xf32>
    %173 = tpu.concatenate %172, %172, %172, %172 in 0 : vector<32x4xf32>, vector<32x4xf32>, vector<32x4xf32>, vector<32x4xf32> -> vector<128x4xf32>
    %174 = arith.subf %165, %173 : vector<128x4xf32>
    %175 = math.exp %174 : vector<128x4xf32>
    %176 = vector.broadcast %4 : vector<128x1xf32> to vector<128x4xf32>
    %177 = arith.mulf %175, %176 : vector<128x4xf32>
    %178 = vector.extract_strided_slice %177 {offsets = [0, 0], sizes = [32, 4], strides = [1, 1]} : vector<128x4xf32> to vector<32x4xf32>
    %179 = vector.extract_strided_slice %177 {offsets = [32, 0], sizes = [32, 4], strides = [1, 1]} : vector<128x4xf32> to vector<32x4xf32>
    %180 = arith.addf %178, %179 : vector<32x4xf32>
    %181 = vector.extract_strided_slice %177 {offsets = [64, 0], sizes = [32, 4], strides = [1, 1]} : vector<128x4xf32> to vector<32x4xf32>
    %182 = arith.addf %180, %181 : vector<32x4xf32>
    %183 = vector.extract_strided_slice %177 {offsets = [96, 0], sizes = [32, 4], strides = [1, 1]} : vector<128x4xf32> to vector<32x4xf32>
    %184 = arith.addf %182, %183 : vector<32x4xf32>
    %cst_51 = arith.constant 9.99999971E-10 : f32
    %185 = vector.broadcast %cst_51 : f32 to vector<32x4xf32>
    %186 = arith.addf %184, %185 : vector<32x4xf32>
    %187 = tpu.reciprocal %186 {approx = true} : vector<32x4xf32> -> vector<32x4xf32>
    %188 = tpu.concatenate %187, %187, %187, %187 in 0 : vector<32x4xf32>, vector<32x4xf32>, vector<32x4xf32>, vector<32x4xf32> -> vector<128x4xf32>
    %189 = arith.mulf %177, %188 : vector<128x4xf32>
    %190 = arith.truncf %189 : vector<128x4xf32> to vector<128x4xbf16>
    %cst_52 = arith.constant dense<0.000000e+00> : vector<128x64xf32>
    %191 = tpu.matmul %190, %11, %cst_52 {dimension_numbers = #tpu.dot_dimension_numbers<[1], [0], [0], [1], [0, 0, 1, 1], [], []>} : vector<128x4xbf16>, vector<4x64xbf16>, vector<128x64xf32> -> vector<128x64xf32>
    %192 = arith.mulf %191, %148 : vector<128x64xf32>
    %193 = vector.extract_strided_slice %192 {offsets = [0, 0], sizes = [32, 64], strides = [1, 1]} : vector<128x64xf32> to vector<32x64xf32>
    %194 = vector.extract_strided_slice %192 {offsets = [32, 0], sizes = [32, 64], strides = [1, 1]} : vector<128x64xf32> to vector<32x64xf32>
    %195 = arith.addf %193, %194 : vector<32x64xf32>
    %196 = vector.extract_strided_slice %192 {offsets = [64, 0], sizes = [32, 64], strides = [1, 1]} : vector<128x64xf32> to vector<32x64xf32>
    %197 = arith.addf %195, %196 : vector<32x64xf32>
    %198 = vector.extract_strided_slice %192 {offsets = [96, 0], sizes = [32, 64], strides = [1, 1]} : vector<128x64xf32> to vector<32x64xf32>
    %199 = arith.addf %197, %198 : vector<32x64xf32>
    %200 = arith.truncf %199 : vector<32x64xf32> to vector<32x64xbf16>
    %201 = vector.extract_strided_slice %136 {offsets = [128, 0], sizes = [64, 32], strides = [1, 1]} : vector<192x64xbf16> to vector<64x32xbf16>
    %cst_53 = arith.constant dense<0.000000e+00> : vector<32x32xf32>
    %202 = tpu.matmul %200, %201, %cst_53 {dimension_numbers = #tpu.dot_dimension_numbers<[1], [0], [0], [1], [0, 0, 1, 1], [], []>} : vector<32x64xbf16>, vector<64x32xbf16>, vector<32x32xf32> -> vector<32x32xf32>
    %203 = vector.extract_strided_slice %138 {offsets = [1, 0], sizes = [1, 32], strides = [1, 1]} : vector<8x128xf32> to vector<1x32xf32>
    %204 = vector.broadcast %203 : vector<1x32xf32> to vector<32x32xf32>
    %205 = arith.addf %202, %204 : vector<32x32xf32>
    %206 = arith.truncf %205 : vector<32x32xf32> to vector<32x32xbf16>
    %207 = vector.extract_strided_slice %136 {offsets = [32, 0], sizes = [32, 32], strides = [1, 1]} : vector<192x64xbf16> to vector<32x32xbf16>
    %cst_54 = arith.constant dense<0.000000e+00> : vector<32x32xf32>
    %208 = tpu.matmul %206, %207, %cst_54 {dimension_numbers = #tpu.dot_dimension_numbers<[1], [0], [0], [1], [0, 0, 1, 1], [], []>} : vector<32x32xbf16>, vector<32x32xbf16>, vector<32x32xf32> -> vector<32x32xf32>
    %209 = vector.extract_strided_slice %138 {offsets = [2, 0], sizes = [1, 32], strides = [1, 1]} : vector<8x128xf32> to vector<1x32xf32>
    %210 = vector.broadcast %209 : vector<1x32xf32> to vector<32x32xf32>
    %211 = arith.addf %208, %210 : vector<32x32xf32>
    %cst_55 = arith.constant 0.000000e+00 : f32
    %212 = vector.broadcast %cst_55 : f32 to vector<32x32xf32>
    %213 = arith.cmpf ogt, %211, %212 : vector<32x32xf32>
    %cst_56 = arith.constant 0.000000e+00 : f32
    %214 = vector.broadcast %cst_56 : f32 to vector<32x32xf32>
    %215 = arith.minimumf %211, %214 : vector<32x32xf32>
    %216 = math.exp %215 : vector<32x32xf32>
    %cst_57 = arith.constant 1.000000e+00 : f32
    %217 = vector.broadcast %cst_57 : f32 to vector<32x32xf32>
    %218 = arith.subf %216, %217 : vector<32x32xf32>
    %219 = arith.select %213, %211, %218 : vector<32x32xi1>, vector<32x32xf32>
    %220 = arith.addf %219, %134 : vector<32x32xf32>
    %cst_58 = arith.constant dense<0.000000e+00> : vector<32xf32>
    %221 = vector.multi_reduction <add>, %220, %cst_58 [1] : vector<32x32xf32> to vector<32xf32>
    %222 = vector.shape_cast %221 : vector<32xf32> to vector<32x1xf32>
    %cst_59 = arith.constant 3.200000e+01 : f32
    %223 = vector.broadcast %cst_59 : f32 to vector<32x1xf32>
    %224 = arith.divf %222, %223 : vector<32x1xf32>
    %225 = vector.broadcast %224 : vector<32x1xf32> to vector<32x32xf32>
    %226 = arith.subf %220, %225 : vector<32x32xf32>
    %227 = arith.mulf %226, %226 : vector<32x32xf32>
    %cst_60 = arith.constant dense<0.000000e+00> : vector<32xf32>
    %228 = vector.multi_reduction <add>, %227, %cst_60 [1] : vector<32x32xf32> to vector<32xf32>
    %229 = vector.shape_cast %228 : vector<32xf32> to vector<32x1xf32>
    %cst_61 = arith.constant 3.200000e+01 : f32
    %230 = vector.broadcast %cst_61 : f32 to vector<32x1xf32>
    %231 = arith.divf %229, %230 : vector<32x1xf32>
    %232 = vector.broadcast %224 : vector<32x1xf32> to vector<32x32xf32>
    %233 = arith.subf %220, %232 : vector<32x32xf32>
    %cst_62 = arith.constant 9.99999974E-6 : f32
    %234 = vector.broadcast %cst_62 : f32 to vector<32x1xf32>
    %235 = arith.addf %231, %234 : vector<32x1xf32>
    %236 = math.rsqrt %235 : vector<32x1xf32>
    %237 = vector.broadcast %236 : vector<32x1xf32> to vector<32x32xf32>
    %238 = arith.mulf %233, %237 : vector<32x32xf32>
    %239 = vector.extract_strided_slice %138 {offsets = [3, 0], sizes = [1, 32], strides = [1, 1]} : vector<8x128xf32> to vector<1x32xf32>
    %240 = vector.broadcast %239 : vector<1x32xf32> to vector<32x32xf32>
    %241 = arith.mulf %238, %240 : vector<32x32xf32>
    %242 = vector.extract_strided_slice %138 {offsets = [4, 0], sizes = [1, 32], strides = [1, 1]} : vector<8x128xf32> to vector<1x32xf32>
    %243 = vector.broadcast %242 : vector<1x32xf32> to vector<32x32xf32>
    %244 = arith.addf %241, %243 : vector<32x32xf32>
    %245 = arith.truncf %244 : vector<32x32xf32> to vector<32x32xbf16>
    %cst_63 = arith.constant dense<0.000000e+00> : vector<2x32xf32>
    %246 = tpu.matmul %6, %245, %cst_63 {dimension_numbers = #tpu.dot_dimension_numbers<[1], [0], [0], [1], [0, 0, 1, 1], [], []>} : vector<2x32xbf16>, vector<32x32xbf16>, vector<2x32xf32> -> vector<2x32xf32>
    %247 = arith.truncf %246 : vector<2x32xf32> to vector<2x32xbf16>
    %248 = vector.extract_strided_slice %8 {offsets = [8, 0], sizes = [32, 18], strides = [1, 1]} : vector<64x64xbf16> to vector<32x18xbf16>
    %cst_64 = arith.constant dense<0.000000e+00> : vector<2x18xf32>
    %249 = tpu.matmul %247, %248, %cst_64 {dimension_numbers = #tpu.dot_dimension_numbers<[1], [0], [0], [1], [0, 0, 1, 1], [], []>} : vector<2x32xbf16>, vector<32x18xbf16>, vector<2x18xf32> -> vector<2x18xf32>
    %250 = vector.extract_strided_slice %249 {offsets = [0, 0], sizes = [2, 16], strides = [1, 1]} : vector<2x18xf32> to vector<2x16xf32>
    %251 = vector.extract_strided_slice %10 {offsets = [1, 0], sizes = [1, 16], strides = [1, 1]} : vector<8x128xf32> to vector<1x16xf32>
    %252 = vector.broadcast %251 : vector<1x16xf32> to vector<2x16xf32>
    %253 = arith.addf %250, %252 : vector<2x16xf32>
    %cst_65 = arith.constant 0.000000e+00 : f32
    %254 = vector.broadcast %cst_65 : f32 to vector<2x16xf32>
    %255 = arith.cmpf ogt, %253, %254 : vector<2x16xf32>
    %cst_66 = arith.constant 0.000000e+00 : f32
    %256 = vector.broadcast %cst_66 : f32 to vector<2x16xf32>
    %257 = arith.minimumf %253, %256 : vector<2x16xf32>
    %258 = math.exp %257 : vector<2x16xf32>
    %cst_67 = arith.constant 1.000000e+00 : f32
    %259 = vector.broadcast %cst_67 : f32 to vector<2x16xf32>
    %260 = arith.subf %258, %259 : vector<2x16xf32>
    %261 = arith.select %255, %253, %260 : vector<2x16xi1>, vector<2x16xf32>
    %262 = arith.truncf %261 : vector<2x16xf32> to vector<2x16xbf16>
    %263 = vector.extract_strided_slice %8 {offsets = [40, 0], sizes = [16, 1], strides = [1, 1]} : vector<64x64xbf16> to vector<16x1xbf16>
    %cst_68 = arith.constant dense<0.000000e+00> : vector<2x1xf32>
    %264 = tpu.matmul %262, %263, %cst_68 {dimension_numbers = #tpu.dot_dimension_numbers<[1], [0], [0], [1], [0, 0, 1, 1], [], []>} : vector<2x16xbf16>, vector<16x1xbf16>, vector<2x1xf32> -> vector<2x1xf32>
    %265 = vector.extract_strided_slice %10 {offsets = [3, 0], sizes = [1, 1], strides = [1, 1]} : vector<8x128xf32> to vector<1x1xf32>
    %266 = vector.broadcast %265 : vector<1x1xf32> to vector<2x1xf32>
    %267 = arith.addf %264, %266 : vector<2x1xf32>
    %cst_69 = arith.constant 0.000000e+00 : f32
    %268 = vector.broadcast %cst_69 : f32 to vector<2x1xf32>
    %269 = arith.cmpf ogt, %267, %268 : vector<2x1xf32>
    %cst_70 = arith.constant 0.000000e+00 : f32
    %270 = vector.broadcast %cst_70 : f32 to vector<2x1xf32>
    %271 = arith.minimumf %267, %270 : vector<2x1xf32>
    %272 = math.exp %271 : vector<2x1xf32>
    %cst_71 = arith.constant 1.000000e+00 : f32
    %273 = vector.broadcast %cst_71 : f32 to vector<2x1xf32>
    %274 = arith.subf %272, %273 : vector<2x1xf32>
    %275 = arith.select %269, %267, %274 : vector<2x1xi1>, vector<2x1xf32>
    %cst_72 = arith.constant 1999853.38 : f32
    %276 = vector.broadcast %cst_72 : f32 to vector<2x1xf32>
    %277 = arith.mulf %275, %276 : vector<2x1xf32>
    %278 = vector.extract_strided_slice %249 {offsets = [0, 16], sizes = [2, 2], strides = [1, 1]} : vector<2x18xf32> to vector<2x2xf32>
    %279 = vector.extract_strided_slice %10 {offsets = [2, 0], sizes = [1, 2], strides = [1, 1]} : vector<8x128xf32> to vector<1x2xf32>
    %280 = vector.broadcast %279 : vector<1x2xf32> to vector<2x2xf32>
    %281 = arith.addf %278, %280 : vector<2x2xf32>
    %282 = vector.extract_strided_slice %281 {offsets = [0, 1], sizes = [2, 1], strides = [1, 1]} : vector<2x2xf32> to vector<2x1xf32>
    %283 = vector.extract_strided_slice %281 {offsets = [0, 0], sizes = [2, 1], strides = [1, 1]} : vector<2x2xf32> to vector<2x1xf32>
    %284 = arith.subf %282, %283 : vector<2x1xf32>
    %285 = math.exp %284 : vector<2x1xf32>
    %cst_73 = arith.constant 1.000000e+00 : f32
    %286 = vector.broadcast %cst_73 : f32 to vector<2x1xf32>
    %287 = arith.addf %286, %285 : vector<2x1xf32>
    %cst_74 = arith.constant 1.000000e+00 : f32
    %288 = vector.broadcast %cst_74 : f32 to vector<2x1xf32>
    %289 = arith.divf %288, %287 : vector<2x1xf32>
    %290 = arith.mulf %289, %277 : vector<2x1xf32>
    %cst_75 = arith.constant 1.000000e+00 : f32
    %291 = vector.broadcast %cst_75 : f32 to vector<2x1xf32>
    %292 = arith.subf %291, %289 : vector<2x1xf32>
    %293 = arith.mulf %292, %7 : vector<2x1xf32>
    %294 = arith.addf %290, %293 : vector<2x1xf32>
    %c0_76 = arith.constant 0 : index
    %c0_77 = arith.constant 0 : index
    %295 = vector.load %arg5[%c0_76, %c0_77] : memref<2x1xf32, #tpu.memory_space<vmem>>, vector<2x1xf32>
    tpu.vector_store %arg5[%c0_76, %c0_77], %294 {strides = array<i32>} : memref<2x1xf32, #tpu.memory_space<vmem>>, vector<2x1xf32>,
    return
  }
  func.func @transform_0(%arg0: i32) -> (i32, i32) {
    %c0_i32 = arith.constant 0 : i32
    %c0_i32_0 = arith.constant 0 : i32
    %c0_i32_1 = arith.constant 0 : i32
    return %c0_i32, %c0_i32_0 : i32, i32
  }
  func.func @transform_1(%arg0: i32) -> (i32, i32, i32) {
    %c0_i32 = arith.constant 0 : i32
    %c0_i32_0 = arith.constant 0 : i32
    %c0_i32_1 = arith.constant 0 : i32
    %c0_i32_2 = arith.constant 0 : i32
    return %c0_i32, %c0_i32_0, %c0_i32_1 : i32, i32, i32
  }
  func.func @transform_2(%arg0: i32) -> (i32, i32, i32) {
    %c0_i32 = arith.constant 0 : i32
    %c0_i32_0 = arith.constant 0 : i32
    %c0_i32_1 = arith.constant 0 : i32
    %c0_i32_2 = arith.constant 0 : i32
    return %c0_i32, %c0_i32_0, %c0_i32_1 : i32, i32, i32
  }
  func.func @transform_3(%arg0: i32) -> (i32, i32) {
    %c0_i32 = arith.constant 0 : i32
    %c0_i32_0 = arith.constant 0 : i32
    %c0_i32_1 = arith.constant 0 : i32
    return %c0_i32, %c0_i32_0 : i32, i32
  }
  func.func @transform_4(%arg0: i32) -> (i32, i32) {
    %c0_i32 = arith.constant 0 : i32
    %c0_i32_0 = arith.constant 0 : i32
    %c0_i32_1 = arith.constant 0 : i32
    return %c0_i32, %c0_i32_0 : i32, i32
  }
}

</mosaic_0001>

<llo_original>
// kernel: eq.1
$region0: #{eq.1}
  %s0 = inlined_call_operand.vmem [shape: s32[4,32], index: 0, kind: input, shape index: {}]
  %s1 = inlined_call_operand.vmem [shape: s32[128], index: 1, kind: output, shape index: {}]
  $region1: #{eq.1} parent=0
    #allocation0 [shape = 'u8[4096]{0}', space=vmem, size = 0x1000, scoped, tag = 'scoped mem for output reshape']
    #allocation1 [shape = 'u8[4096]{0}', space=vmem, size = 0x1000, scoped, tag = 'scoped mem for input reshape']
    %s3 = sshllo.u32 0, 4
    %v4 = vld [vmem:[%s0] sm:%s3]
    %5 = vst [vmem:[#allocation1] sm:%s3] %v4
    %v6 = vld [vmem:[#allocation1] sm:$0x1]
    %vm7 = vcmask 261120
    %8 = vst.msk [vmem:[#allocation0] sm:$0x1] %vm7, %v6
    %s9 = scalar_lea.vmem [#allocation1], 3
    %v10 = vld [vmem:[%s9] sm:$0x1]
    %11 = vrot.lane.b32.xlu0 %v10, 96
    %v12 = vpop.permute.xlu0 %11
    %vm13 = vcmask 1048320
    %14 = vst.msk [vmem:[#allocation0] sm:$0x1] %vm13, %v12
    %s15 = scalar_lea.vmem [#allocation1], 2
    %v16 = vld [vmem:[%s15] sm:$0x1]
    %17 = vrot.lane.b32.xlu0 %v16, 64
    %v18 = vpop.permute.xlu0 %17
    %vm19 = vcmask 785920
    %20 = vst.msk [vmem:[#allocation0] sm:$0x1] %vm19, %v18
    %s21 = scalar_lea.vmem [#allocation1], 1
    %v22 = vld [vmem:[%s21] sm:$0x1]
    %23 = vrot.lane.b32.xlu0 %v22, 32
    %v24 = vpop.permute.xlu0 %23
    %vm25 = vcmask 523520
    %26 = vst.msk [vmem:[#allocation0] sm:$0x1] %vm25, %v24
    %s28 = sshllo.u32 0, 1
    %v30 = vld [vmem:[#allocation0] sm:%s28]
    %s31 = sshllo.u32 0, 1
    %32 = vst [vmem:[%s1] sm:%s31] %v30

// kernel: stacked_gat_forward.1
$region0: #{stacked_gat_forward.1}
  #allocation0 [shape = 'u32[]', space=smem, size = 0x4, offset = 0x4, fixed_abs, tag = 'smem constant byte address 0x4 - core index']
  #allocation1 [shape = 'u32[144,128]{1,0:T(1,128)}', space=vmem, size = 0x12000, scoped, tag = 'internal scratch']
  %s0 = inlined_call_operand.vmem [shape: f32[304,32], index: 0, kind: input, shape index: {}]
  %s1 = inlined_call_operand.vmem [shape: bf16[2,192,64], index: 1, kind: input, shape index: {}]
  %s2 = inlined_call_operand.vmem [shape: f32[3,8,128], index: 2, kind: input, shape index: {}]
  %s3 = inlined_call_operand.vmem [shape: bf16[64,64], index: 3, kind: input, shape index: {}]
  %s4 = inlined_call_operand.vmem [shape: f32[2,1], index: 4, kind: output, shape index: {}]
  %s5 = sld [smem:[#allocation0]]
  $region26: #{stacked_gat_forward.1} parent=0
    _
  %s7 = ssub.s32 1, %s5
  %s8 = scalar_select 0, %s7, %s5
  // Predicated region
  $region2: #{stacked_gat_forward.1} parent=0 // pred_check
    _
  $region3: #{stacked_gat_forward.1} parent=0 // pred_check_branch
    %10 = sbr.rel (0) target = $region5
  $region4: #{stacked_gat_forward.1} parent=0 // pred_region
    _
  $region5: #{stacked_gat_forward.1} parent=0 // pred_fallthru
    _
  // Predicated region
  $region6: #{stacked_gat_forward.1} parent=0 // pred_check
    _
  $region7: #{stacked_gat_forward.1} parent=0 // pred_check_branch
    %12 = sbr.rel (0) target = $region9
  $region8: #{stacked_gat_forward.1} parent=0 // pred_region
    _
  $region9: #{stacked_gat_forward.1} parent=0 // pred_fallthru
    _
  // Predicated region
  $region10: #{stacked_gat_forward.1} parent=0 // pred_check
    _
  $region11: #{stacked_gat_forward.1} parent=0 // pred_check_branch
    %14 = sbr.rel (0) target = $region13
  $region12: #{stacked_gat_forward.1} parent=0 // pred_region
    _
  $region13: #{stacked_gat_forward.1} parent=0 // pred_fallthru
    _
  // Predicated region
  $region14: #{stacked_gat_forward.1} parent=0 // pred_check
    _
  $region15: #{stacked_gat_forward.1} parent=0 // pred_check_branch
    %16 = sbr.rel (0) target = $region17
  $region16: #{stacked_gat_forward.1} parent=0 // pred_region
    _
  $region17: #{stacked_gat_forward.1} parent=0 // pred_fallthru
    _
  %v18 = vld [vmem:[%s0] sm:$0xff]
  %v19 = vld [vmem:[%s0 + $0x8] sm:$0xff]
  %v20 = vld [vmem:[%s0 + $0x10] sm:$0xff]
  %v21 = vld [vmem:[%s0 + $0x18] sm:$0xff]
  %v22 = vld [vmem:[%s0 + $0x20] sm:$0xff]
  %v23 = vld [vmem:[%s0 + $0x28] sm:$0xff]
  %v24 = vld [vmem:[%s0 + $0x30] sm:$0xff]
  %v25 = vld [vmem:[%s0 + $0x38] sm:$0xff]
  %v26 = vld [vmem:[%s0 + $0x40] sm:$0xff]
  %v27 = vld [vmem:[%s0 + $0x48] sm:$0xff]
  %v28 = vld [vmem:[%s0 + $0x50] sm:$0xff]
  %v29 = vld [vmem:[%s0 + $0x58] sm:$0xff]
  %v30 = vld [vmem:[%s0 + $0x60] sm:$0xff]
  %v31 = vld [vmem:[%s0 + $0x68] sm:$0xff]
  %v32 = vld [vmem:[%s0 + $0x70] sm:$0xff]
  %v33 = vld [vmem:[%s0 + $0x78] sm:$0xff]
  %v34 = vpack.c.bf16 %v19, %v18
  %v35 = vpack.c.bf16 %v21, %v20
  %v36 = vpack.c.bf16 %v23, %v22
  %v37 = vpack.c.bf16 %v25, %v24
  %v38 = vpack.c.bf16 %v27, %v26
  %v39 = vpack.c.bf16 %v29, %v28
  %v40 = vpack.c.bf16 %v31, %v30
  %v41 = vpack.c.bf16 %v33, %v32
  %v42 = vld [vmem:[%s0 + $0x80] sm:$0xff]
  %v43 = vld [vmem:[%s0 + $0x88] sm:$0xff]
  %v44 = vld [vmem:[%s0 + $0x90] sm:$0xff]
  %v45 = vld [vmem:[%s0 + $0x98] sm:$0xff]
  %v46 = vpack.c.bf16 %v43, %v42
  %v47 = vpack.c.bf16 %v45, %v44
  %v48 = vld [vmem:[%s0 + $0xa0] sm:$0xff]
  %v49 = vld [vmem:[%s0 + $0xa8] sm:$0xff]
  %v50 = vld [vmem:[%s0 + $0xb0] sm:$0xff]
  %v51 = vld [vmem:[%s0 + $0xb8] sm:$0xff]
  %v52 = vld [vmem:[%s0 + $0xc0] sm:$0xff]
  %v53 = vld [vmem:[%s0 + $0xc8] sm:$0xff]
  %v54 = vld [vmem:[%s0 + $0xd0] sm:$0xff]
  %v55 = vld [vmem:[%s0 + $0xd8] sm:$0xff]
  %v56 = vld [vmem:[%s0 + $0xe0] sm:$0xff]
  %v57 = vld [vmem:[%s0 + $0xe8] sm:$0xff]
  %v58 = vld [vmem:[%s0 + $0xf0] sm:$0xff]
  %v59 = vld [vmem:[%s0 + $0xf8] sm:$0xff]
  %v60 = vld [vmem:[%s0 + $0x100] sm:$0xff]
  %v61 = vld [vmem:[%s0 + $0x108] sm:$0xff]
  %v62 = vld [vmem:[%s0 + $0x110] sm:$0xff]
  %v63 = vld [vmem:[%s0 + $0x118] sm:$0xff]
  %v64 = vld [vmem:[%s0 + $0x120] sm:$0x3]
  %v65 = vpack.c.bf16 %v64, %v64
  %v66 = vld [vmem:[%s0 + $0x128] sm:$0x3]
  %v67 = vld [vmem:[%s3] sm:$0xf]
  %v68 = vld [vmem:[%s3 + $0x4] sm:$0xf]
  %v69 = vld [vmem:[%s3 + $0x8] sm:$0xf]
  %v70 = vld [vmem:[%s3 + $0xc] sm:$0xf]
  %v71 = vld [vmem:[%s3 + $0x10] sm:$0xf]
  %v72 = vld [vmem:[%s3 + $0x14] sm:$0xf]
  %v73 = vld [vmem:[%s3 + $0x18] sm:$0xf]
  %v74 = vld [vmem:[%s3 + $0x1c] sm:$0xf]
  %s75 = scalar_lea.vmem %s2, 16
  %v76 = vld [vmem:[%s75] sm:$0xff]
  %v77 = vlaneseq
  %v78 = vshrl.u32 %v77, 7
  %v79 = vsub.s32 0, %v78
  %v80 = vrot.slane %v76, %v79
  %vm81 = vcmask 64512
  %v83 = vsel %vm81, %v46, 0
  %v86 = vsel %vm81, %v47, 0
  %vm88 = vcmask 1043456
  %v90 = vsel %vm88, %v67, 0
  %92 = vmatprep.subr.bf16.mxu0 0
  %93 = vmatpush1.bf16.msra.mxu0 %v90
  %94 = vmatprep.subr.bf16.mxu0 0
  %95 = vmatpush1.bf16.msra.mxu0 0
  %96 = vmatprep.subr.bf16.mxu0 0
  %97 = vmatpush1.bf16.msra.mxu0 0
  %98 = vmatprep.subr.bf16.mxu0 0
  %99 = vmatpush1.bf16.msra.mxu0 0
  %100 = vmatprep.subr.bf16.mxu0 0
  %101 = vmatpush1.bf16.msra.mxu0 0
  %102 = vmatprep.subr.bf16.mxu0 0
  %103 = vmatpush1.bf16.msra.mxu0 0
  %104 = vmatprep.subr.bf16.mxu0 0
  %105 = vmatpush1.bf16.msra.mxu0 0
  %106 = vmatprep.subr.bf16.mxu0 0
  %107 = vmatpush1.bf16.msra.mxu0 0
  %108 = vmatprep.subr.bf16.mxu0 0
  %109 = vmatpush1.bf16.msra.mxu0 0
  %110 = vmatprep.subr.bf16.mxu0 0
  %111 = vmatpush1.bf16.msra.mxu0 0
  %112 = vmatprep.subr.bf16.mxu0 0
  %113 = vmatpush1.bf16.msra.mxu0 0
  %114 = vmatprep.subr.bf16.mxu0 0
  %115 = vmatpush1.bf16.msra.mxu0 0
  %116 = vmatprep.subr.bf16.mxu0 0
  %117 = vmatpush1.bf16.msra.mxu0 0
  %118 = vmatprep.subr.bf16.mxu0 0
  %119 = vmatpush1.bf16.msra.mxu0 0
  %120 = vmatprep.subr.bf16.mxu0 0
  %121 = vmatpush1.bf16.msra.mxu0 0
  %122 = vmatprep.subr.bf16.mxu0 0
  %123 = vmatpush1.bf16.msra.mxu0 0
  %124 = vmatprep.mubr.bf16.mxu0 0
  %125 = vmatmul.mubr.bf16.gmra.mrb[0].mxu0 %v83
  %v126 = vpop.f32.mrb[0].mxu0
  %v127 = vadd.f32 %v80, %v126
  %v128 = vpop.f32.mrb[0].mxu0
  %v129 = vpop.f32.mrb[0].mxu0
  %v130 = vadd.f32 %v80, %v129
  %v131 = vpop.f32.mrb[0].mxu0
  %132 = vmatprep.mubr.bf16.mxu0 0
  %133 = vmatmul.mubr.bf16.gmra.mrb[0].mxu0 %v86
  %v134 = vpop.f32.mrb[0].mxu0
  %v135 = vadd.f32 %v80, %v134
  %v136 = vpop.f32.mrb[0].mxu0
  %v137 = vpop.f32.mrb[0].mxu0
  %v138 = vadd.f32 %v80, %v137
  %v139 = vpop.f32.mrb[0].mxu0
  %140 = vdwg.mxu0
  %vm141 = vcmp.gt.f32.partialorder %v127, 0.0
  %vm142 = vcmp.gt.f32.partialorder %v130, 0.0
  %vm143 = vcmp.gt.f32.partialorder %v135, 0.0
  %vm144 = vcmp.gt.f32.partialorder %v138, 0.0
  %v145 = vmin.f32 %v127, 0.0
  %v146 = vmin.f32 %v130, 0.0
  %v147 = vmin.f32 %v135, 0.0
  %v148 = vmin.f32 %v138, 0.0
  %v149 = vmul.f32 %v145, 1.442695
  %v150 = vpow.pop %v149
  %v151 = vmul.f32 %v146, 1.442695
  %v152 = vpow.pop %v151
  %v153 = vmul.f32 %v147, 1.442695
  %v154 = vpow.pop %v153
  %v155 = vmul.f32 %v148, 1.442695
  %v156 = vpow.pop %v155
  %v157 = vsub.f32 %v150, 1.0
  %v158 = vsub.f32 %v152, 1.0
  %v159 = vsub.f32 %v154, 1.0
  %v160 = vsub.f32 %v156, 1.0
  %v161 = vsel %vm141, %v127, %v157
  %v162 = vsel %vm142, %v130, %v158
  %v163 = vsel %vm143, %v135, %v159
  %v164 = vsel %vm144, %v138, %v160
  %v165 = vld [vmem:[%s1] sm:$0xf]
  %v166 = vld [vmem:[%s1 + $0x4] sm:$0xf]
  %v167 = vld [vmem:[%s1 + $0x8] sm:$0xf]
  %v168 = vld [vmem:[%s1 + $0xc] sm:$0xf]
  %v169 = vld [vmem:[%s1 + $0x10] sm:$0xf]
  %v170 = vld [vmem:[%s1 + $0x14] sm:$0xf]
  %v171 = vld [vmem:[%s1 + $0x18] sm:$0xf]
  %v172 = vld [vmem:[%s1 + $0x1c] sm:$0xf]
  %v173 = vld [vmem:[%s1 + $0x20] sm:$0xf]
  %v174 = vld [vmem:[%s1 + $0x24] sm:$0xf]
  %v175 = vld [vmem:[%s1 + $0x28] sm:$0xf]
  %v176 = vld [vmem:[%s1 + $0x2c] sm:$0xf]
  %v177 = vld [vmem:[%s1 + $0x30] sm:$0xf]
  %v178 = vld [vmem:[%s1 + $0x34] sm:$0xf]
  %v179 = vld [vmem:[%s1 + $0x38] sm:$0xf]
  %v180 = vld [vmem:[%s1 + $0x3c] sm:$0xf]
  %v181 = vld [vmem:[%s1 + $0x40] sm:$0xf]
  %v182 = vld [vmem:[%s1 + $0x44] sm:$0xf]
  %v183 = vld [vmem:[%s1 + $0x48] sm:$0xf]
  %v184 = vld [vmem:[%s1 + $0x4c] sm:$0xf]
  %v185 = vld [vmem:[%s1 + $0x50] sm:$0xf]
  %v186 = vld [vmem:[%s1 + $0x54] sm:$0xf]
  %v187 = vld [vmem:[%s1 + $0x58] sm:$0xf]
  %v188 = vld [vmem:[%s1 + $0x5c] sm:$0xf]
  %v189 = vld [vmem:[%s2] sm:$0xff]
  %v190 = vpack.c.bf16 %v162, %v161
  %v191 = vpack.c.bf16 %v164, %v163
  %v192 = vlaneseq
  %v193 = vshrl.u32 %v192, 7
  %v194 = vsub.s32 0, %v193
  %v195 = vrot.slane %v189, %v194
  %v200 = vunpack.c.l.b16 %v165
  %v201 = vunpack.c.l.b16 %v166
  %v202 = vunpack.c.l.b16 %v167
  %v203 = vunpack.c.l.b16 %v168
  %v204 = vpack.c.b16 %v201, %v200
  %v205 = vpack.c.b16 %v203, %v202
  %vm208 = vcmask 261120
  %v210 = vsel %vm208, %v190, 0
  %v213 = vsel %vm208, %v191, 0
  %215 = vmatprep.subr.bf16.mxu0 0
  %216 = vmatpush1.bf16.msra.mxu0 %v204
  %217 = vmatprep.subr.bf16.mxu0 0
  %218 = vmatpush1.bf16.msra.mxu0 %v205
  %219 = vmatprep.subr.bf16.mxu0 0
  %220 = vmatpush1.bf16.msra.mxu0 0
  %221 = vmatprep.subr.bf16.mxu0 0
  %222 = vmatpush1.bf16.msra.mxu0 0
  %223 = vmatprep.subr.bf16.mxu0 0
  %224 = vmatpush1.bf16.msra.mxu0 0
  %225 = vmatprep.subr.bf16.mxu0 0
  %226 = vmatpush1.bf16.msra.mxu0 0
  %227 = vmatprep.subr.bf16.mxu0 0
  %228 = vmatpush1.bf16.msra.mxu0 0
  %229 = vmatprep.subr.bf16.mxu0 0
  %230 = vmatpush1.bf16.msra.mxu0 0
  %231 = vmatprep.subr.bf16.mxu0 0
  %232 = vmatpush1.bf16.msra.mxu0 0
  %233 = vmatprep.subr.bf16.mxu0 0
  %234 = vmatpush1.bf16.msra.mxu0 0
  %235 = vmatprep.subr.bf16.mxu0 0
  %236 = vmatpush1.bf16.msra.mxu0 0
  %237 = vmatprep.subr.bf16.mxu0 0
  %238 = vmatpush1.bf16.msra.mxu0 0
  %239 = vmatprep.subr.bf16.mxu0 0
  %240 = vmatpush1.bf16.msra.mxu0 0
  %241 = vmatprep.subr.bf16.mxu0 0
  %242 = vmatpush1.bf16.msra.mxu0 0
  %243 = vmatprep.subr.bf16.mxu0 0
  %244 = vmatpush1.bf16.msra.mxu0 0
  %245 = vmatprep.subr.bf16.mxu0 0
  %246 = vmatpush1.bf16.msra.mxu0 0
  %247 = vmatprep.mubr.bf16.mxu0 0
  %248 = vmatmul.mubr.bf16.gmra.mrb[0].mxu0 %v210
  %v249 = vpop.f32.mrb[0].mxu0
  %v250 = vadd.f32 %v195, %v249
  %v251 = vpop.f32.mrb[0].mxu0
  %v252 = vpop.f32.mrb[0].mxu0
  %v253 = vadd.f32 %v195, %v252
  %v254 = vpop.f32.mrb[0].mxu0
  %255 = vmatprep.mubr.bf16.mxu0 0
  %256 = vmatmul.mubr.bf16.gmra.mrb[0].mxu0 %v213
  %v257 = vpop.f32.mrb[0].mxu0
  %v258 = vadd.f32 %v195, %v257
  %v259 = vpop.f32.mrb[0].mxu0
  %v260 = vpop.f32.mrb[0].mxu0
  %v261 = vadd.f32 %v195, %v260
  %v262 = vpop.f32.mrb[0].mxu0
  %263 = vdwg.mxu0
  %v264 = vpack.c.bf16 %v253, %v250
  %v265 = vpack.c.bf16 %v261, %v258
  %v274 = vunpack.c.l.b16 %v173
  %v275 = vunpack.c.l.b16 %v174
  %v276 = vunpack.c.l.b16 %v175
  %v277 = vunpack.c.l.b16 %v176
  %v278 = vunpack.c.l.b16 %v177
  %v279 = vunpack.c.l.b16 %v178
  %v280 = vunpack.c.l.b16 %v179
  %v281 = vunpack.c.l.b16 %v180
  %v282 = vpack.c.b16 %v275, %v274
  %v283 = vpack.c.b16 %v277, %v276
  %v284 = vpack.c.b16 %v279, %v278
  %v285 = vpack.c.b16 %v281, %v280
  %vm290 = vcmask 523264
  %v292 = vsel %vm290, %v264, 0
  %v295 = vsel %vm290, %v265, 0
  %297 = vmatprep.subr.bf16.mxu0 0
  %298 = vmatpush1.bf16.msra.mxu0 %v282
  %299 = vmatprep.subr.bf16.mxu0 0
  %300 = vmatpush1.bf16.msra.mxu0 %v283
  %301 = vmatprep.subr.bf16.mxu0 0
  %302 = vmatpush1.bf16.msra.mxu0 %v284
  %303 = vmatprep.subr.bf16.mxu0 0
  %304 = vmatpush1.bf16.msra.mxu0 %v285
  %305 = vmatprep.subr.bf16.mxu0 0
  %306 = vmatpush1.bf16.msra.mxu0 0
  %307 = vmatprep.subr.bf16.mxu0 0
  %308 = vmatpush1.bf16.msra.mxu0 0
  %309 = vmatprep.subr.bf16.mxu0 0
  %310 = vmatpush1.bf16.msra.mxu0 0
  %311 = vmatprep.subr.bf16.mxu0 0
  %312 = vmatpush1.bf16.msra.mxu0 0
  %313 = vmatprep.subr.bf16.mxu0 0
  %314 = vmatpush1.bf16.msra.mxu0 0
  %315 = vmatprep.subr.bf16.mxu0 0
  %316 = vmatpush1.bf16.msra.mxu0 0
  %317 = vmatprep.subr.bf16.mxu0 0
  %318 = vmatpush1.bf16.msra.mxu0 0
  %319 = vmatprep.subr.bf16.mxu0 0
  %320 = vmatpush1.bf16.msra.mxu0 0
  %321 = vmatprep.subr.bf16.mxu0 0
  %322 = vmatpush1.bf16.msra.mxu0 0
  %323 = vmatprep.subr.bf16.mxu0 0
  %324 = vmatpush1.bf16.msra.mxu0 0
  %325 = vmatprep.subr.bf16.mxu0 0
  %326 = vmatpush1.bf16.msra.mxu0 0
  %327 = vmatprep.subr.bf16.mxu0 0
  %328 = vmatpush1.bf16.msra.mxu0 0
  %329 = vmatprep.mubr.bf16.mxu0 0
  %330 = vmatmul.mubr.bf16.gmra.mrb[0].mxu0 %v292
  %v331 = vpop.f32.mrb[0].mxu0
  %v332 = vadd.f32 0.0, %v331
  %v333 = vpop.f32.mrb[0].mxu0
  %v334 = vpop.f32.mrb[0].mxu0
  %v335 = vadd.f32 0.0, %v334
  %v336 = vpop.f32.mrb[0].mxu0
  %337 = vmatprep.mubr.bf16.mxu0 0
  %338 = vmatmul.mubr.bf16.gmra.mrb[0].mxu0 %v295
  %v339 = vpop.f32.mrb[0].mxu0
  %v340 = vadd.f32 0.0, %v339
  %v341 = vpop.f32.mrb[0].mxu0
  %v342 = vpop.f32.mrb[0].mxu0
  %v343 = vadd.f32 0.0, %v342
  %v344 = vpop.f32.mrb[0].mxu0
  %345 = vdwg.mxu0
  %v347 = vsel %vm208, %v34, 0
  %v350 = vsel %vm208, %v35, 0
  %v353 = vsel %vm208, %v36, 0
  %v356 = vsel %vm208, %v37, 0
  %v359 = vsel %vm208, %v38, 0
  %v362 = vsel %vm208, %v39, 0
  %v365 = vsel %vm208, %v40, 0
  %v368 = vsel %vm208, %v41, 0
  %370 = vmatprep.subr.bf16.mxu0 0
  %371 = vmatpush1.bf16.msra.mxu0 %v264
  %372 = vmatprep.subr.bf16.mxu0 0
  %373 = vmatpush1.bf16.msra.mxu0 %v265
  %374 = vmatprep.subr.bf16.mxu0 0
  %375 = vmatpush1.bf16.msra.mxu0 0
  %376 = vmatprep.subr.bf16.mxu0 0
  %377 = vmatpush1.bf16.msra.mxu0 0
  %378 = vmatprep.subr.bf16.mxu0 0
  %379 = vmatpush1.bf16.msra.mxu0 0
  %380 = vmatprep.subr.bf16.mxu0 0
  %381 = vmatpush1.bf16.msra.mxu0 0
  %382 = vmatprep.subr.bf16.mxu0 0
  %383 = vmatpush1.bf16.msra.mxu0 0
  %384 = vmatprep.subr.bf16.mxu0 0
  %385 = vmatpush1.bf16.msra.mxu0 0
  %386 = vmatprep.subr.bf16.mxu0 0
  %387 = vmatpush1.bf16.msra.mxu0 0
  %388 = vmatprep.subr.bf16.mxu0 0
  %389 = vmatpush1.bf16.msra.mxu0 0
  %390 = vmatprep.subr.bf16.mxu0 0
  %391 = vmatpush1.bf16.msra.mxu0 0
  %392 = vmatprep.subr.bf16.mxu0 0
  %393 = vmatpush1.bf16.msra.mxu0 0
  %394 = vmatprep.subr.bf16.mxu0 0
  %395 = vmatpush1.bf16.msra.mxu0 0
  %396 = vmatprep.subr.bf16.mxu0 0
  %397 = vmatpush1.bf16.msra.mxu0 0
  %398 = vmatprep.subr.bf16.mxu0 0
  %399 = vmatpush1.bf16.msra.mxu0 0
  %400 = vmatprep.subr.bf16.mxu0 0
  %401 = vmatpush1.bf16.msra.mxu0 0
  %402 = vmatprep.mubr.bf16.mxu0 0
  %403 = vmatmul.mubr.bf16.gmra.mrb[0].mxu0 %v347
  %v404 = vpop.f32.mrb[0].mxu0
  %v405 = vadd.f32 0.0, %v404
  %v406 = vpop.f32.mrb[0].mxu0
  %v407 = vpop.f32.mrb[0].mxu0
  %v408 = vadd.f32 0.0, %v407
  %v409 = vpop.f32.mrb[0].mxu0
  %410 = vmatprep.mubr.bf16.mxu0 0
  %411 = vmatmul.mubr.bf16.gmra.mrb[0].mxu0 %v350
  %v412 = vpop.f32.mrb[0].mxu0
  %v413 = vadd.f32 0.0, %v412
  %v414 = vpop.f32.mrb[0].mxu0
  %v415 = vpop.f32.mrb[0].mxu0
  %v416 = vadd.f32 0.0, %v415
  %v417 = vpop.f32.mrb[0].mxu0
  %418 = vmatprep.mubr.bf16.mxu0 0
  %419 = vmatmul.mubr.bf16.gmra.mrb[0].mxu0 %v353
  %v420 = vpop.f32.mrb[0].mxu0
  %v421 = vadd.f32 0.0, %v420
  %v422 = vpop.f32.mrb[0].mxu0
  %v423 = vpop.f32.mrb[0].mxu0
  %v424 = vadd.f32 0.0, %v423
  %v425 = vpop.f32.mrb[0].mxu0
  %426 = vmatprep.mubr.bf16.mxu0 0
  %427 = vmatmul.mubr.bf16.gmra.mrb[0].mxu0 %v356
  %v428 = vpop.f32.mrb[0].mxu0
  %v429 = vadd.f32 0.0, %v428
  %v430 = vpop.f32.mrb[0].mxu0
  %v431 = vpop.f32.mrb[0].mxu0
  %v432 = vadd.f32 0.0, %v431
  %v433 = vpop.f32.mrb[0].mxu0
  %434 = vmatprep.mubr.bf16.mxu0 0
  %435 = vmatmul.mubr.bf16.gmra.mrb[0].mxu0 %v359
  %v436 = vpop.f32.mrb[0].mxu0
  %v437 = vadd.f32 0.0, %v436
  %v438 = vpop.f32.mrb[0].mxu0
  %v439 = vpop.f32.mrb[0].mxu0
  %v440 = vadd.f32 0.0, %v439
  %v441 = vpop.f32.mrb[0].mxu0
  %442 = vmatprep.mubr.bf16.mxu0 0
  %443 = vmatmul.mubr.bf16.gmra.mrb[0].mxu0 %v362
  %v444 = vpop.f32.mrb[0].mxu0
  %v445 = vadd.f32 0.0, %v444
  %v446 = vpop.f32.mrb[0].mxu0
  %v447 = vpop.f32.mrb[0].mxu0
  %v448 = vadd.f32 0.0, %v447
  %v449 = vpop.f32.mrb[0].mxu0
  %450 = vmatprep.mubr.bf16.mxu0 0
  %451 = vmatmul.mubr.bf16.gmra.mrb[0].mxu0 %v365
  %v452 = vpop.f32.mrb[0].mxu0
  %v453 = vadd.f32 0.0, %v452
  %v454 = vpop.f32.mrb[0].mxu0
  %v455 = vpop.f32.mrb[0].mxu0
  %v456 = vadd.f32 0.0, %v455
  %v457 = vpop.f32.mrb[0].mxu0
  %458 = vmatprep.mubr.bf16.mxu0 0
  %459 = vmatmul.mubr.bf16.gmra.mrb[0].mxu0 %v368
  %v460 = vpop.f32.mrb[0].mxu0
  %v461 = vadd.f32 0.0, %v460
  %v462 = vpop.f32.mrb[0].mxu0
  %v463 = vpop.f32.mrb[0].mxu0
  %v464 = vadd.f32 0.0, %v463
  %v465 = vpop.f32.mrb[0].mxu0
  %466 = vdwg.mxu0
  %v467 = vpack.c.bf16 %v335, %v332
  %v468 = vpack.c.bf16 %v343, %v340
  %469 = vmatprep.subr.bf16.mxu0 0
  %470 = vmatpush1.bf16.msra.mxu0 %v467
  %471 = vmatprep.subr.bf16.mxu0 0
  %472 = vmatpush1.bf16.msra.mxu0 %v468
  %473 = vmatprep.subr.bf16.mxu0 0
  %474 = vmatpush1.bf16.msra.mxu0 0
  %475 = vmatprep.subr.bf16.mxu0 0
  %476 = vmatpush1.bf16.msra.mxu0 0
  %477 = vmatprep.subr.bf16.mxu0 0
  %478 = vmatpush1.bf16.msra.mxu0 0
  %479 = vmatprep.subr.bf16.mxu0 0
  %480 = vmatpush1.bf16.msra.mxu0 0
  %481 = vmatprep.subr.bf16.mxu0 0
  %482 = vmatpush1.bf16.msra.mxu0 0
  %483 = vmatprep.subr.bf16.mxu0 0
  %484 = vmatpush1.bf16.msra.mxu0 0
  %485 = vmatprep.subr.bf16.mxu0 0
  %486 = vmatpush1.bf16.msra.mxu0 0
  %487 = vmatprep.subr.bf16.mxu0 0
  %488 = vmatpush1.bf16.msra.mxu0 0
  %489 = vmatprep.subr.bf16.mxu0 0
  %490 = vmatpush1.bf16.msra.mxu0 0
  %491 = vmatprep.subr.bf16.mxu0 0
  %492 = vmatpush1.bf16.msra.mxu0 0
  %493 = vmatprep.subr.bf16.mxu0 0
  %494 = vmatpush1.bf16.msra.mxu0 0
  %495 = vmatprep.subr.bf16.mxu0 0
  %496 = vmatpush1.bf16.msra.mxu0 0
  %497 = vmatprep.subr.bf16.mxu0 0
  %498 = vmatpush1.bf16.msra.mxu0 0
  %499 = vmatprep.subr.bf16.mxu0 0
  %500 = vmatpush1.bf16.msra.mxu0 0
  %501 = vmatprep.mubr.bf16.mxu0 0
  %502 = vmatmul.mubr.bf16.gmra.mrb[0].mxu0 %v347
  %v503 = vpop.f32.mrb[0].mxu0
  %v504 = vadd.f32 0.0, %v503
  %v505 = vpop.f32.mrb[0].mxu0
  %v506 = vpop.f32.mrb[0].mxu0
  %v507 = vadd.f32 0.0, %v506
  %v508 = vpop.f32.mrb[0].mxu0
  %509 = vmatprep.mubr.bf16.mxu0 0
  %510 = vmatmul.mubr.bf16.gmra.mrb[0].mxu0 %v350
  %v511 = vpop.f32.mrb[0].mxu0
  %v512 = vadd.f32 0.0, %v511
  %v513 = vpop.f32.mrb[0].mxu0
  %v514 = vpop.f32.mrb[0].mxu0
  %v515 = vadd.f32 0.0, %v514
  %v516 = vpop.f32.mrb[0].mxu0
  %517 = vmatprep.mubr.bf16.mxu0 0
  %518 = vmatmul.mubr.bf16.gmra.mrb[0].mxu0 %v353
  %v519 = vpop.f32.mrb[0].mxu0
  %v520 = vadd.f32 0.0, %v519
  %v521 = vpop.f32.mrb[0].mxu0
  %v522 = vpop.f32.mrb[0].mxu0
  %v523 = vadd.f32 0.0, %v522
  %v524 = vpop.f32.mrb[0].mxu0
  %525 = vmatprep.mubr.bf16.mxu0 0
  %526 = vmatmul.mubr.bf16.gmra.mrb[0].mxu0 %v356
  %v527 = vpop.f32.mrb[0].mxu0
  %v528 = vadd.f32 0.0, %v527
  %v529 = vpop.f32.mrb[0].mxu0
  %v530 = vpop.f32.mrb[0].mxu0
  %v531 = vadd.f32 0.0, %v530
  %v532 = vpop.f32.mrb[0].mxu0
  %533 = vmatprep.mubr.bf16.mxu0 0
  %534 = vmatmul.mubr.bf16.gmra.mrb[0].mxu0 %v359
  %v535 = vpop.f32.mrb[0].mxu0
  %v536 = vadd.f32 0.0, %v535
  %v537 = vpop.f32.mrb[0].mxu0
  %v538 = vpop.f32.mrb[0].mxu0
  %v539 = vadd.f32 0.0, %v538
  %v540 = vpop.f32.mrb[0].mxu0
  %541 = vmatprep.mubr.bf16.mxu0 0
  %542 = vmatmul.mubr.bf16.gmra.mrb[0].mxu0 %v362
  %v543 = vpop.f32.mrb[0].mxu0
  %v544 = vadd.f32 0.0, %v543
  %v545 = vpop.f32.mrb[0].mxu0
  %v546 = vpop.f32.mrb[0].mxu0
  %v547 = vadd.f32 0.0, %v546
  %v548 = vpop.f32.mrb[0].mxu0
  %549 = vmatprep.mubr.bf16.mxu0 0
  %550 = vmatmul.mubr.bf16.gmra.mrb[0].mxu0 %v365
  %v551 = vpop.f32.mrb[0].mxu0
  %v552 = vadd.f32 0.0, %v551
  %v553 = vpop.f32.mrb[0].mxu0
  %v554 = vpop.f32.mrb[0].mxu0
  %v555 = vadd.f32 0.0, %v554
  %v556 = vpop.f32.mrb[0].mxu0
  %557 = vmatprep.mubr.bf16.mxu0 0
  %558 = vmatmul.mubr.bf16.gmra.mrb[0].mxu0 %v368
  %v559 = vpop.f32.mrb[0].mxu0
  %v560 = vadd.f32 0.0, %v559
  %v561 = vpop.f32.mrb[0].mxu0
  %v562 = vpop.f32.mrb[0].mxu0
  %v563 = vadd.f32 0.0, %v562
  %v564 = vpop.f32.mrb[0].mxu0
  %565 = vdwg.mxu0
  %582 = vrot.lane.b32.xlu0 %v504, 4
  %v583 = vpop.permute.xlu0 %582
  %584 = vrot.lane.b32.xlu0 %v507, 4
  %v585 = vpop.permute.xlu0 %584
  %586 = vrot.lane.b32.xlu0 %v512, 4
  %v587 = vpop.permute.xlu0 %586
  %588 = vrot.lane.b32.xlu0 %v515, 4
  %v589 = vpop.permute.xlu0 %588
  %590 = vrot.lane.b32.xlu0 %v520, 4
  %v591 = vpop.permute.xlu0 %590
  %592 = vrot.lane.b32.xlu0 %v523, 4
  %v593 = vpop.permute.xlu0 %592
  %594 = vrot.lane.b32.xlu0 %v528, 4
  %v595 = vpop.permute.xlu0 %594
  %596 = vrot.lane.b32.xlu0 %v531, 4
  %v597 = vpop.permute.xlu0 %596
  %598 = vrot.lane.b32.xlu0 %v536, 4
  %v599 = vpop.permute.xlu0 %598
  %600 = vrot.lane.b32.xlu0 %v539, 4
  %v601 = vpop.permute.xlu0 %600
  %602 = vrot.lane.b32.xlu0 %v544, 4
  %v603 = vpop.permute.xlu0 %602
  %604 = vrot.lane.b32.xlu0 %v547, 4
  %v605 = vpop.permute.xlu0 %604
  %606 = vrot.lane.b32.xlu0 %v552, 4
  %v607 = vpop.permute.xlu0 %606
  %608 = vrot.lane.b32.xlu0 %v555, 4
  %v609 = vpop.permute.xlu0 %608
  %610 = vrot.lane.b32.xlu0 %v560, 4
  %v611 = vpop.permute.xlu0 %610
  %612 = vrot.lane.b32.xlu0 %v563, 4
  %v613 = vpop.permute.xlu0 %612
  %v630 = vadd.f32 %v332, %v583
  %v631 = vadd.f32 %v335, %v585
  %v632 = vadd.f32 %v340, %v587
  %v633 = vadd.f32 %v343, %v589
  %v634 = vadd.f32 %v332, %v591
  %v635 = vadd.f32 %v335, %v593
  %v636 = vadd.f32 %v340, %v595
  %v637 = vadd.f32 %v343, %v597
  %v638 = vadd.f32 %v332, %v599
  %v639 = vadd.f32 %v335, %v601
  %v640 = vadd.f32 %v340, %v603
  %v641 = vadd.f32 %v343, %v605
  %v642 = vadd.f32 %v332, %v607
  %v643 = vadd.f32 %v335, %v609
  %v644 = vadd.f32 %v340, %v611
  %v645 = vadd.f32 %v343, %v613
  %vm646 = vcmp.gt.f32.partialorder %v630, 0.0
  %vm647 = vcmp.gt.f32.partialorder %v631, 0.0
  %vm648 = vcmp.gt.f32.partialorder %v632, 0.0
  %vm649 = vcmp.gt.f32.partialorder %v633, 0.0
  %vm650 = vcmp.gt.f32.partialorder %v634, 0.0
  %vm651 = vcmp.gt.f32.partialorder %v635, 0.0
  %vm652 = vcmp.gt.f32.partialorder %v636, 0.0
  %vm653 = vcmp.gt.f32.partialorder %v637, 0.0
  %vm654 = vcmp.gt.f32.partialorder %v638, 0.0
  %vm655 = vcmp.gt.f32.partialorder %v639, 0.0
  %vm656 = vcmp.gt.f32.partialorder %v640, 0.0
  %vm657 = vcmp.gt.f32.partialorder %v641, 0.0
  %vm658 = vcmp.gt.f32.partialorder %v642, 0.0
  %vm659 = vcmp.gt.f32.partialorder %v643, 0.0
  %vm660 = vcmp.gt.f32.partialorder %v644, 0.0
  %vm661 = vcmp.gt.f32.partialorder %v645, 0.0
  %v662 = vmul.f32 %v630, 0.2
  %v663 = vmul.f32 %v631, 0.2
  %v664 = vmul.f32 %v632, 0.2
  %v665 = vmul.f32 %v633, 0.2
  %v666 = vmul.f32 %v634, 0.2
  %v667 = vmul.f32 %v635, 0.2
  %v668 = vmul.f32 %v636, 0.2
  %v669 = vmul.f32 %v637, 0.2
  %v670 = vmul.f32 %v638, 0.2
  %v671 = vmul.f32 %v639, 0.2
  %v672 = vmul.f32 %v640, 0.2
  %v673 = vmul.f32 %v641, 0.2
  %v674 = vmul.f32 %v642, 0.2
  %v675 = vmul.f32 %v643, 0.2
  %v676 = vmul.f32 %v644, 0.2
  %v677 = vmul.f32 %v645, 0.2
  %v678 = vsel %vm646, %v630, %v662
  %v679 = vsel %vm647, %v631, %v663
  %v680 = vsel %vm648, %v632, %v664
  %v681 = vsel %vm649, %v633, %v665
  %v682 = vsel %vm650, %v634, %v666
  %v683 = vsel %vm651, %v635, %v667
  %v684 = vsel %vm652, %v636, %v668
  %v685 = vsel %vm653, %v637, %v669
  %v686 = vsel %vm654, %v638, %v670
  %v687 = vsel %vm655, %v639, %v671
  %v688 = vsel %vm656, %v640, %v672
  %v689 = vsel %vm657, %v641, %v673
  %v690 = vsel %vm658, %v642, %v674
  %v691 = vsel %vm659, %v643, %v675
  %v692 = vsel %vm660, %v644, %v676
  %v693 = vsel %vm661, %v645, %v677
  %vm694 = vcmp.gt.f32.partialorder %v48, 0.0
  %vm695 = vcmp.gt.f32.partialorder %v49, 0.0
  %vm696 = vcmp.gt.f32.partialorder %v50, 0.0
  %vm697 = vcmp.gt.f32.partialorder %v51, 0.0
  %vm698 = vcmp.gt.f32.partialorder %v52, 0.0
  %vm699 = vcmp.gt.f32.partialorder %v53, 0.0
  %vm700 = vcmp.gt.f32.partialorder %v54, 0.0
  %vm701 = vcmp.gt.f32.partialorder %v55, 0.0
  %vm702 = vcmp.gt.f32.partialorder %v56, 0.0
  %vm703 = vcmp.gt.f32.partialorder %v57, 0.0
  %vm704 = vcmp.gt.f32.partialorder %v58, 0.0
  %vm705 = vcmp.gt.f32.partialorder %v59, 0.0
  %vm706 = vcmp.gt.f32.partialorder %v60, 0.0
  %vm707 = vcmp.gt.f32.partialorder %v61, 0.0
  %vm708 = vcmp.gt.f32.partialorder %v62, 0.0
  %vm709 = vcmp.gt.f32.partialorder %v63, 0.0
  %v710 = vsel %vm694, 1, 0
  %v711 = vsel %vm695, 1, 0
  %v712 = vsel %vm696, 1, 0
  %v713 = vsel %vm697, 1, 0
  %v714 = vsel %vm698, 1, 0
  %v715 = vsel %vm699, 1, 0
  %v716 = vsel %vm700, 1, 0
  %v717 = vsel %vm701, 1, 0
  %v718 = vsel %vm702, 1, 0
  %v719 = vsel %vm703, 1, 0
  %v720 = vsel %vm704, 1, 0
  %v721 = vsel %vm705, 1, 0
  %v722 = vsel %vm706, 1, 0
  %v723 = vsel %vm707, 1, 0
  %v724 = vsel %vm708, 1, 0
  %v725 = vsel %vm709, 1, 0
  %726 = vset.pattern.permute.xlu0 0
  %727 = vperm.xlu0 %726, %v710
  %v728 = vpop.permute.xlu0 %727
  %729 = vset.pattern.permute.xlu0 0
  %730 = vperm.xlu0 %729, %v711
  %v731 = vpop.permute.xlu0 %730
  %732 = vset.pattern.permute.xlu0 0
  %733 = vperm.xlu0 %732, %v712
  %v734 = vpop.permute.xlu0 %733
  %735 = vset.pattern.permute.xlu0 0
  %736 = vperm.xlu0 %735, %v713
  %v737 = vpop.permute.xlu0 %736
  %738 = vset.pattern.permute.xlu0 0
  %739 = vperm.xlu0 %738, %v714
  %v740 = vpop.permute.xlu0 %739
  %741 = vset.pattern.permute.xlu0 0
  %742 = vperm.xlu0 %741, %v715
  %v743 = vpop.permute.xlu0 %742
  %744 = vset.pattern.permute.xlu0 0
  %745 = vperm.xlu0 %744, %v716
  %v746 = vpop.permute.xlu0 %745
  %747 = vset.pattern.permute.xlu0 0
  %748 = vperm.xlu0 %747, %v717
  %v749 = vpop.permute.xlu0 %748
  %750 = vset.pattern.permute.xlu0 0
  %751 = vperm.xlu0 %750, %v718
  %v752 = vpop.permute.xlu0 %751
  %753 = vset.pattern.permute.xlu0 0
  %754 = vperm.xlu0 %753, %v719
  %v755 = vpop.permute.xlu0 %754
  %756 = vset.pattern.permute.xlu0 0
  %757 = vperm.xlu0 %756, %v720
  %v758 = vpop.permute.xlu0 %757
  %759 = vset.pattern.permute.xlu0 0
  %760 = vperm.xlu0 %759, %v721
  %v761 = vpop.permute.xlu0 %760
  %762 = vset.pattern.permute.xlu0 0
  %763 = vperm.xlu0 %762, %v722
  %v764 = vpop.permute.xlu0 %763
  %765 = vset.pattern.permute.xlu0 0
  %766 = vperm.xlu0 %765, %v723
  %v767 = vpop.permute.xlu0 %766
  %768 = vset.pattern.permute.xlu0 0
  %769 = vperm.xlu0 %768, %v724
  %v770 = vpop.permute.xlu0 %769
  %771 = vset.pattern.permute.xlu0 0
  %772 = vperm.xlu0 %771, %v725
  %v773 = vpop.permute.xlu0 %772
  %vm774 = vcmp.eq.s32.totalorder %v728, 1
  %vm775 = vcmp.eq.s32.totalorder %v731, 1
  %vm776 = vcmp.eq.s32.totalorder %v734, 1
  %vm777 = vcmp.eq.s32.totalorder %v737, 1
  %vm778 = vcmp.eq.s32.totalorder %v740, 1
  %vm779 = vcmp.eq.s32.totalorder %v743, 1
  %vm780 = vcmp.eq.s32.totalorder %v746, 1
  %vm781 = vcmp.eq.s32.totalorder %v749, 1
  %vm782 = vcmp.eq.s32.totalorder %v752, 1
  %vm783 = vcmp.eq.s32.totalorder %v755, 1
  %vm784 = vcmp.eq.s32.totalorder %v758, 1
  %vm785 = vcmp.eq.s32.totalorder %v761, 1
  %vm786 = vcmp.eq.s32.totalorder %v764, 1
  %vm787 = vcmp.eq.s32.totalorder %v767, 1
  %vm788 = vcmp.eq.s32.totalorder %v770, 1
  %vm789 = vcmp.eq.s32.totalorder %v773, 1
  %v790 = vsel %vm774, %v678, -1e+09
  %v791 = vsel %vm775, %v679, -1e+09
  %v792 = vsel %vm776, %v680, -1e+09
  %v793 = vsel %vm777, %v681, -1e+09
  %v794 = vsel %vm778, %v682, -1e+09
  %v795 = vsel %vm779, %v683, -1e+09
  %v796 = vsel %vm780, %v684, -1e+09
  %v797 = vsel %vm781, %v685, -1e+09
  %v798 = vsel %vm782, %v686, -1e+09
  %v799 = vsel %vm783, %v687, -1e+09
  %v800 = vsel %vm784, %v688, -1e+09
  %v801 = vsel %vm785, %v689, -1e+09
  %v802 = vsel %vm786, %v690, -1e+09
  %v803 = vsel %vm787, %v691, -1e+09
  %v804 = vsel %vm788, %v692, -1e+09
  %v805 = vsel %vm789, %v693, -1e+09
  %v806 = vmax.f32 %v790, %v794
  %v807 = vmax.f32 %v791, %v795
  %v808 = vmax.f32 %v792, %v796
  %v809 = vmax.f32 %v793, %v797
  %v810 = vmax.f32 %v798, %v802
  %v811 = vmax.f32 %v799, %v803
  %v812 = vmax.f32 %v800, %v804
  %v813 = vmax.f32 %v801, %v805
  %v814 = vmax.f32 %v806, %v810
  %v815 = vmax.f32 %v807, %v811
  %v816 = vmax.f32 %v808, %v812
  %v817 = vmax.f32 %v809, %v813
  %v818 = vsub.f32 %v790, %v814
  %v819 = vsub.f32 %v791, %v815
  %v820 = vsub.f32 %v792, %v816
  %v821 = vsub.f32 %v793, %v817
  %v822 = vsub.f32 %v794, %v814
  %v823 = vsub.f32 %v795, %v815
  %v824 = vsub.f32 %v796, %v816
  %v825 = vsub.f32 %v797, %v817
  %v826 = vsub.f32 %v798, %v814
  %v827 = vsub.f32 %v799, %v815
  %v828 = vsub.f32 %v800, %v816
  %v829 = vsub.f32 %v801, %v817
  %v830 = vsub.f32 %v802, %v814
  %v831 = vsub.f32 %v803, %v815
  %v832 = vsub.f32 %v804, %v816
  %v833 = vsub.f32 %v805, %v817
  %v834 = vmul.f32 %v818, 1.442695
  %v835 = vpow.pop %v834
  %v836 = vmul.f32 %v819, 1.442695
  %v837 = vpow.pop %v836
  %v838 = vmul.f32 %v820, 1.442695
  %v839 = vpow.pop %v838
  %v840 = vmul.f32 %v821, 1.442695
  %v841 = vpow.pop %v840
  %v842 = vmul.f32 %v822, 1.442695
  %v843 = vpow.pop %v842
  %v844 = vmul.f32 %v823, 1.442695
  %v845 = vpow.pop %v844
  %v846 = vmul.f32 %v824, 1.442695
  %v847 = vpow.pop %v846
  %v848 = vmul.f32 %v825, 1.442695
  %v849 = vpow.pop %v848
  %v850 = vmul.f32 %v826, 1.442695
  %v851 = vpow.pop %v850
  %v852 = vmul.f32 %v827, 1.442695
  %v853 = vpow.pop %v852
  %v854 = vmul.f32 %v828, 1.442695
  %v855 = vpow.pop %v854
  %v856 = vmul.f32 %v829, 1.442695
  %v857 = vpow.pop %v856
  %v858 = vmul.f32 %v830, 1.442695
  %v859 = vpow.pop %v858
  %v860 = vmul.f32 %v831, 1.442695
  %v861 = vpow.pop %v860
  %v862 = vmul.f32 %v832, 1.442695
  %v863 = vpow.pop %v862
  %v864 = vmul.f32 %v833, 1.442695
  %v865 = vpow.pop %v864
  %867 = vset.pattern.permute.xlu0 0
  %868 = vperm.xlu0 %867, %v48
  %v869 = vpop.permute.xlu0 %868
  %872 = vset.pattern.permute.xlu0 0
  %873 = vperm.xlu0 %872, %v49
  %v874 = vpop.permute.xlu0 %873
  %877 = vset.pattern.permute.xlu0 0
  %878 = vperm.xlu0 %877, %v50
  %v879 = vpop.permute.xlu0 %878
  %882 = vset.pattern.permute.xlu0 0
  %883 = vperm.xlu0 %882, %v51
  %v884 = vpop.permute.xlu0 %883
  %887 = vset.pattern.permute.xlu0 0
  %888 = vperm.xlu0 %887, %v52
  %v889 = vpop.permute.xlu0 %888
  %892 = vset.pattern.permute.xlu0 0
  %893 = vperm.xlu0 %892, %v53
  %v894 = vpop.permute.xlu0 %893
  %897 = vset.pattern.permute.xlu0 0
  %898 = vperm.xlu0 %897, %v54
  %v899 = vpop.permute.xlu0 %898
  %902 = vset.pattern.permute.xlu0 0
  %903 = vperm.xlu0 %902, %v55
  %v904 = vpop.permute.xlu0 %903
  %907 = vset.pattern.permute.xlu0 0
  %908 = vperm.xlu0 %907, %v56
  %v909 = vpop.permute.xlu0 %908
  %912 = vset.pattern.permute.xlu0 0
  %913 = vperm.xlu0 %912, %v57
  %v914 = vpop.permute.xlu0 %913
  %917 = vset.pattern.permute.xlu0 0
  %918 = vperm.xlu0 %917, %v58
  %v919 = vpop.permute.xlu0 %918
  %922 = vset.pattern.permute.xlu0 0
  %923 = vperm.xlu0 %922, %v59
  %v924 = vpop.permute.xlu0 %923
  %927 = vset.pattern.permute.xlu0 0
  %928 = vperm.xlu0 %927, %v60
  %v929 = vpop.permute.xlu0 %928
  %932 = vset.pattern.permute.xlu0 0
  %933 = vperm.xlu0 %932, %v61
  %v934 = vpop.permute.xlu0 %933
  %937 = vset.pattern.permute.xlu0 0
  %938 = vperm.xlu0 %937, %v62
  %v939 = vpop.permute.xlu0 %938
  %942 = vset.pattern.permute.xlu0 0
  %943 = vperm.xlu0 %942, %v63
  %v944 = vpop.permute.xlu0 %943
  %v946 = vmul.f32 %v835, %v869
  %v947 = vmul.f32 %v837, %v874
  %v948 = vmul.f32 %v839, %v879
  %v949 = vmul.f32 %v841, %v884
  %v950 = vmul.f32 %v843, %v889
  %v951 = vmul.f32 %v845, %v894
  %v952 = vmul.f32 %v847, %v899
  %v953 = vmul.f32 %v849, %v904
  %v954 = vmul.f32 %v851, %v909
  %v955 = vmul.f32 %v853, %v914
  %v956 = vmul.f32 %v855, %v919
  %v957 = vmul.f32 %v857, %v924
  %v958 = vmul.f32 %v859, %v929
  %v959 = vmul.f32 %v861, %v934
  %v960 = vmul.f32 %v863, %v939
  %v961 = vmul.f32 %v865, %v944
  %v962 = vadd.f32 %v946, %v950
  %v963 = vadd.f32 %v947, %v951
  %v964 = vadd.f32 %v948, %v952
  %v965 = vadd.f32 %v949, %v953
  %v966 = vadd.f32 %v962, %v954
  %v967 = vadd.f32 %v963, %v955
  %v968 = vadd.f32 %v964, %v956
  %v969 = vadd.f32 %v965, %v957
  %v970 = vadd.f32 %v966, %v958
  %v971 = vadd.f32 %v967, %v959
  %v972 = vadd.f32 %v968, %v960
  %v973 = vadd.f32 %v969, %v961
  %v974 = vadd.f32 %v970, 1e-09
  %v975 = vadd.f32 %v971, 1e-09
  %v976 = vadd.f32 %v972, 1e-09
  %v977 = vadd.f32 %v973, 1e-09
  %v978 = vrcp.pop %v974
  %v979 = vrcp.pop %v975
  %v980 = vrcp.pop %v976
  %v981 = vrcp.pop %v977
  %v982 = vmul.f32 %v946, %v978
  %v983 = vmul.f32 %v947, %v979
  %v984 = vmul.f32 %v948, %v980
  %v985 = vmul.f32 %v949, %v981
  %v986 = vmul.f32 %v950, %v978
  %v987 = vmul.f32 %v951, %v979
  %v988 = vmul.f32 %v952, %v980
  %v989 = vmul.f32 %v953, %v981
  %v990 = vmul.f32 %v954, %v978
  %v991 = vmul.f32 %v955, %v979
  %v992 = vmul.f32 %v956, %v980
  %v993 = vmul.f32 %v957, %v981
  %v994 = vmul.f32 %v958, %v978
  %v995 = vmul.f32 %v959, %v979
  %v996 = vmul.f32 %v960, %v980
  %v997 = vmul.f32 %v961, %v981
  %v998 = vpack.c.bf16 %v983, %v982
  %v999 = vpack.c.bf16 %v985, %v984
  %v1000 = vpack.c.bf16 %v987, %v986
  %v1001 = vpack.c.bf16 %v989, %v988
  %v1002 = vpack.c.bf16 %v991, %v990
  %v1003 = vpack.c.bf16 %v993, %v992
  %v1004 = vpack.c.bf16 %v995, %v994
  %v1005 = vpack.c.bf16 %v997, %v996
  %1014 = vrot.lane.b32.xlu0 %v998, 124
  %v1015 = vpop.permute.xlu0 %1014
  %1016 = vrot.lane.b32.xlu0 %v999, 124
  %v1017 = vpop.permute.xlu0 %1016
  %1018 = vrot.lane.b32.xlu0 %v1000, 124
  %v1019 = vpop.permute.xlu0 %1018
  %1020 = vrot.lane.b32.xlu0 %v1001, 124
  %v1021 = vpop.permute.xlu0 %1020
  %1022 = vrot.lane.b32.xlu0 %v1002, 124
  %v1023 = vpop.permute.xlu0 %1022
  %1024 = vrot.lane.b32.xlu0 %v1003, 124
  %v1025 = vpop.permute.xlu0 %1024
  %1026 = vrot.lane.b32.xlu0 %v1004, 124
  %v1027 = vpop.permute.xlu0 %1026
  %1028 = vrot.lane.b32.xlu0 %v1005, 124
  %v1029 = vpop.permute.xlu0 %1028
  %vm1030 = vcmask 31744
  %v1032 = vsel %vm1030, %v1015, 0
  %v1035 = vsel %vm1030, %v1017, 0
  %v1038 = vsel %vm1030, %v1019, 0
  %v1041 = vsel %vm1030, %v1021, 0
  %v1044 = vsel %vm1030, %v1023, 0
  %v1047 = vsel %vm1030, %v1025, 0
  %v1050 = vsel %vm1030, %v1027, 0
  %v1053 = vsel %vm1030, %v1029, 0
  %vm1055 = vcmask 1041408
  %v1057 = vsel %vm1055, %v74, 0
  %1059 = vmatprep.subr.bf16.mxu0 0
  %1060 = vmatpush1.bf16.msra.mxu0 %v1057
  %1061 = vmatprep.subr.bf16.mxu0 0
  %1062 = vmatpush1.bf16.msra.mxu0 0
  %1063 = vmatprep.subr.bf16.mxu0 0
  %1064 = vmatpush1.bf16.msra.mxu0 0
  %1065 = vmatprep.subr.bf16.mxu0 0
  %1066 = vmatpush1.bf16.msra.mxu0 0
  %1067 = vmatprep.subr.bf16.mxu0 0
  %1068 = vmatpush1.bf16.msra.mxu0 0
  %1069 = vmatprep.subr.bf16.mxu0 0
  %1070 = vmatpush1.bf16.msra.mxu0 0
  %1071 = vmatprep.subr.bf16.mxu0 0
  %1072 = vmatpush1.bf16.msra.mxu0 0
  %1073 = vmatprep.subr.bf16.mxu0 0
  %1074 = vmatpush1.bf16.msra.mxu0 0
  %1075 = vmatprep.subr.bf16.mxu0 0
  %1076 = vmatpush1.bf16.msra.mxu0 0
  %1077 = vmatprep.subr.bf16.mxu0 0
  %1078 = vmatpush1.bf16.msra.mxu0 0
  %1079 = vmatprep.subr.bf16.mxu0 0
  %1080 = vmatpush1.bf16.msra.mxu0 0
  %1081 = vmatprep.subr.bf16.mxu0 0
  %1082 = vmatpush1.bf16.msra.mxu0 0
  %1083 = vmatprep.subr.bf16.mxu0 0
  %1084 = vmatpush1.bf16.msra.mxu0 0
  %1085 = vmatprep.subr.bf16.mxu0 0
  %1086 = vmatpush1.bf16.msra.mxu0 0
  %1087 = vmatprep.subr.bf16.mxu0 0
  %1088 = vmatpush1.bf16.msra.mxu0 0
  %1089 = vmatprep.subr.bf16.mxu0 0
  %1090 = vmatpush1.bf16.msra.mxu0 0
  %1091 = vmatprep.mubr.bf16.mxu0 0
  %1092 = vmatmul.mubr.bf16.gmra.mrb[0].mxu0 %v1032
  %v1093 = vpop.f32.mrb[0].mxu0
  %v1094 = vadd.f32 0.0, %v1093
  %v1095 = vpop.f32.mrb[0].mxu0
  %v1096 = vpop.f32.mrb[0].mxu0
  %v1097 = vadd.f32 0.0, %v1096
  %v1098 = vpop.f32.mrb[0].mxu0
  %1099 = vmatprep.mubr.bf16.mxu0 0
  %1100 = vmatmul.mubr.bf16.gmra.mrb[0].mxu0 %v1035
  %v1101 = vpop.f32.mrb[0].mxu0
  %v1102 = vadd.f32 0.0, %v1101
  %v1103 = vpop.f32.mrb[0].mxu0
  %v1104 = vpop.f32.mrb[0].mxu0
  %v1105 = vadd.f32 0.0, %v1104
  %v1106 = vpop.f32.mrb[0].mxu0
  %1107 = vmatprep.mubr.bf16.mxu0 0
  %1108 = vmatmul.mubr.bf16.gmra.mrb[0].mxu0 %v1038
  %v1109 = vpop.f32.mrb[0].mxu0
  %v1110 = vadd.f32 0.0, %v1109
  %v1111 = vpop.f32.mrb[0].mxu0
  %v1112 = vpop.f32.mrb[0].mxu0
  %v1113 = vadd.f32 0.0, %v1112
  %v1114 = vpop.f32.mrb[0].mxu0
  %1115 = vmatprep.mubr.bf16.mxu0 0
  %1116 = vmatmul.mubr.bf16.gmra.mrb[0].mxu0 %v1041
  %v1117 = vpop.f32.mrb[0].mxu0
  %v1118 = vadd.f32 0.0, %v1117
  %v1119 = vpop.f32.mrb[0].mxu0
  %v1120 = vpop.f32.mrb[0].mxu0
  %v1121 = vadd.f32 0.0, %v1120
  %v1122 = vpop.f32.mrb[0].mxu0
  %1123 = vmatprep.mubr.bf16.mxu0 0
  %1124 = vmatmul.mubr.bf16.gmra.mrb[0].mxu0 %v1044
  %v1125 = vpop.f32.mrb[0].mxu0
  %v1126 = vadd.f32 0.0, %v1125
  %v1127 = vpop.f32.mrb[0].mxu0
  %v1128 = vpop.f32.mrb[0].mxu0
  %v1129 = vadd.f32 0.0, %v1128
  %v1130 = vpop.f32.mrb[0].mxu0
  %1131 = vmatprep.mubr.bf16.mxu0 0
  %1132 = vmatmul.mubr.bf16.gmra.mrb[0].mxu0 %v1047
  %v1133 = vpop.f32.mrb[0].mxu0
  %v1134 = vadd.f32 0.0, %v1133
  %v1135 = vpop.f32.mrb[0].mxu0
  %v1136 = vpop.f32.mrb[0].mxu0
  %v1137 = vadd.f32 0.0, %v1136
  %v1138 = vpop.f32.mrb[0].mxu0
  %1139 = vmatprep.mubr.bf16.mxu0 0
  %1140 = vmatmul.mubr.bf16.gmra.mrb[0].mxu0 %v1050
  %v1141 = vpop.f32.mrb[0].mxu0
  %v1142 = vadd.f32 0.0, %v1141
  %v1143 = vpop.f32.mrb[0].mxu0
  %v1144 = vpop.f32.mrb[0].mxu0
  %v1145 = vadd.f32 0.0, %v1144
  %v1146 = vpop.f32.mrb[0].mxu0
  %1147 = vmatprep.mubr.bf16.mxu0 0
  %1148 = vmatmul.mubr.bf16.gmra.mrb[0].mxu0 %v1053
  %v1149 = vpop.f32.mrb[0].mxu0
  %v1150 = vadd.f32 0.0, %v1149
  %v1151 = vpop.f32.mrb[0].mxu0
  %v1152 = vpop.f32.mrb[0].mxu0
  %v1153 = vadd.f32 0.0, %v1152
  %v1154 = vpop.f32.mrb[0].mxu0
  %1155 = vdwg.mxu0
  %v1156 = vmul.f32 %v1094, %v405
  %v1157 = vmul.f32 %v1097, %v408
  %v1158 = vmul.f32 %v1102, %v413
  %v1159 = vmul.f32 %v1105, %v416
  %v1160 = vmul.f32 %v1110, %v421
  %v1161 = vmul.f32 %v1113, %v424
  %v1162 = vmul.f32 %v1118, %v429
  %v1163 = vmul.f32 %v1121, %v432
  %v1164 = vmul.f32 %v1126, %v437
  %v1165 = vmul.f32 %v1129, %v440
  %v1166 = vmul.f32 %v1134, %v445
  %v1167 = vmul.f32 %v1137, %v448
  %v1168 = vmul.f32 %v1142, %v453
  %v1169 = vmul.f32 %v1145, %v456
  %v1170 = vmul.f32 %v1150, %v461
  %v1171 = vmul.f32 %v1153, %v464
  %v1172 = vadd.f32 %v1156, %v1160
  %v1173 = vadd.f32 %v1157, %v1161
  %v1174 = vadd.f32 %v1158, %v1162
  %v1175 = vadd.f32 %v1159, %v1163
  %v1176 = vadd.f32 %v1172, %v1164
  %v1177 = vadd.f32 %v1173, %v1165
  %v1178 = vadd.f32 %v1174, %v1166
  %v1179 = vadd.f32 %v1175, %v1167
  %v1180 = vadd.f32 %v1176, %v1168
  %v1181 = vadd.f32 %v1177, %v1169
  %v1182 = vadd.f32 %v1178, %v1170
  %v1183 = vadd.f32 %v1179, %v1171
  %v1184 = vpack.c.bf16 %v1181, %v1180
  %v1185 = vpack.c.bf16 %v1183, %v1182
  %v1186 = vlaneseq
  %v1187 = vshrl.u32 %v1186, 7
  %v1188 = vsub.s32 1, %v1187
  %v1189 = vrot.slane %v189, %v1188
  %v1198 = vunpack.c.l.b16 %v181
  %v1199 = vunpack.c.l.b16 %v182
  %v1200 = vunpack.c.l.b16 %v183
  %v1201 = vunpack.c.l.b16 %v184
  %v1202 = vunpack.c.l.b16 %v185
  %v1203 = vunpack.c.l.b16 %v186
  %v1204 = vunpack.c.l.b16 %v187
  %v1205 = vunpack.c.l.b16 %v188
  %v1206 = vpack.c.b16 %v1199, %v1198
  %v1207 = vpack.c.b16 %v1201, %v1200
  %v1208 = vpack.c.b16 %v1203, %v1202
  %v1209 = vpack.c.b16 %v1205, %v1204
  %v1215 = vsel %vm290, %v1184, 0
  %v1218 = vsel %vm290, %v1185, 0
  %1220 = vmatprep.subr.bf16.mxu0 0
  %1221 = vmatpush1.bf16.msra.mxu0 %v1206
  %1222 = vmatprep.subr.bf16.mxu0 0
  %1223 = vmatpush1.bf16.msra.mxu0 %v1207
  %1224 = vmatprep.subr.bf16.mxu0 0
  %1225 = vmatpush1.bf16.msra.mxu0 %v1208
  %1226 = vmatprep.subr.bf16.mxu0 0
  %1227 = vmatpush1.bf16.msra.mxu0 %v1209
  %1228 = vmatprep.subr.bf16.mxu0 0
  %1229 = vmatpush1.bf16.msra.mxu0 0
  %1230 = vmatprep.subr.bf16.mxu0 0
  %1231 = vmatpush1.bf16.msra.mxu0 0
  %1232 = vmatprep.subr.bf16.mxu0 0
  %1233 = vmatpush1.bf16.msra.mxu0 0
  %1234 = vmatprep.subr.bf16.mxu0 0
  %1235 = vmatpush1.bf16.msra.mxu0 0
  %1236 = vmatprep.subr.bf16.mxu0 0
  %1237 = vmatpush1.bf16.msra.mxu0 0
  %1238 = vmatprep.subr.bf16.mxu0 0
  %1239 = vmatpush1.bf16.msra.mxu0 0
  %1240 = vmatprep.subr.bf16.mxu0 0
  %1241 = vmatpush1.bf16.msra.mxu0 0
  %1242 = vmatprep.subr.bf16.mxu0 0
  %1243 = vmatpush1.bf16.msra.mxu0 0
  %1244 = vmatprep.subr.bf16.mxu0 0
  %1245 = vmatpush1.bf16.msra.mxu0 0
  %1246 = vmatprep.subr.bf16.mxu0 0
  %1247 = vmatpush1.bf16.msra.mxu0 0
  %1248 = vmatprep.subr.bf16.mxu0 0
  %1249 = vmatpush1.bf16.msra.mxu0 0
  %1250 = vmatprep.subr.bf16.mxu0 0
  %1251 = vmatpush1.bf16.msra.mxu0 0
  %1252 = vmatprep.mubr.bf16.mxu0 0
  %1253 = vmatmul.mubr.bf16.gmra.mrb[0].mxu0 %v1215
  %v1254 = vpop.f32.mrb[0].mxu0
  %v1255 = vadd.f32 %v1189, %v1254
  %v1256 = vpop.f32.mrb[0].mxu0
  %v1257 = vpop.f32.mrb[0].mxu0
  %v1258 = vadd.f32 %v1189, %v1257
  %v1259 = vpop.f32.mrb[0].mxu0
  %1260 = vmatprep.mubr.bf16.mxu0 0
  %1261 = vmatmul.mubr.bf16.gmra.mrb[0].mxu0 %v1218
  %v1262 = vpop.f32.mrb[0].mxu0
  %v1263 = vadd.f32 %v1189, %v1262
  %v1264 = vpop.f32.mrb[0].mxu0
  %v1265 = vpop.f32.mrb[0].mxu0
  %v1266 = vadd.f32 %v1189, %v1265
  %v1267 = vpop.f32.mrb[0].mxu0
  %1268 = vdwg.mxu0
  %v1269 = vpack.c.bf16 %v1258, %v1255
  %v1270 = vpack.c.bf16 %v1266, %v1263
  %v1271 = vlaneseq
  %v1272 = vshrl.u32 %v1271, 7
  %v1273 = vsub.s32 2, %v1272
  %v1274 = vrot.slane %v189, %v1273
  %v1279 = vunpack.c.l.b16 %v169
  %v1280 = vunpack.c.l.b16 %v170
  %v1281 = vunpack.c.l.b16 %v171
  %v1282 = vunpack.c.l.b16 %v172
  %v1283 = vpack.c.b16 %v1280, %v1279
  %v1284 = vpack.c.b16 %v1282, %v1281
  %v1288 = vsel %vm208, %v1269, 0
  %v1291 = vsel %vm208, %v1270, 0
  %1293 = vmatprep.subr.bf16.mxu0 0
  %1294 = vmatpush1.bf16.msra.mxu0 %v1283
  %1295 = vmatprep.subr.bf16.mxu0 0
  %1296 = vmatpush1.bf16.msra.mxu0 %v1284
  %1297 = vmatprep.subr.bf16.mxu0 0
  %1298 = vmatpush1.bf16.msra.mxu0 0
  %1299 = vmatprep.subr.bf16.mxu0 0
  %1300 = vmatpush1.bf16.msra.mxu0 0
  %1301 = vmatprep.subr.bf16.mxu0 0
  %1302 = vmatpush1.bf16.msra.mxu0 0
  %1303 = vmatprep.subr.bf16.mxu0 0
  %1304 = vmatpush1.bf16.msra.mxu0 0
  %1305 = vmatprep.subr.bf16.mxu0 0
  %1306 = vmatpush1.bf16.msra.mxu0 0
  %1307 = vmatprep.subr.bf16.mxu0 0
  %1308 = vmatpush1.bf16.msra.mxu0 0
  %1309 = vmatprep.subr.bf16.mxu0 0
  %1310 = vmatpush1.bf16.msra.mxu0 0
  %1311 = vmatprep.subr.bf16.mxu0 0
  %1312 = vmatpush1.bf16.msra.mxu0 0
  %1313 = vmatprep.subr.bf16.mxu0 0
  %1314 = vmatpush1.bf16.msra.mxu0 0
  %1315 = vmatprep.subr.bf16.mxu0 0
  %1316 = vmatpush1.bf16.msra.mxu0 0
  %1317 = vmatprep.subr.bf16.mxu0 0
  %1318 = vmatpush1.bf16.msra.mxu0 0
  %1319 = vmatprep.subr.bf16.mxu0 0
  %1320 = vmatpush1.bf16.msra.mxu0 0
  %1321 = vmatprep.subr.bf16.mxu0 0
  %1322 = vmatpush1.bf16.msra.mxu0 0
  %1323 = vmatprep.subr.bf16.mxu0 0
  %1324 = vmatpush1.bf16.msra.mxu0 0
  %1325 = vmatprep.mubr.bf16.mxu0 0
  %1326 = vmatmul.mubr.bf16.gmra.mrb[0].mxu0 %v1288
  %v1327 = vpop.f32.mrb[0].mxu0
  %v1328 = vadd.f32 %v1274, %v1327
  %v1329 = vpop.f32.mrb[0].mxu0
  %v1330 = vpop.f32.mrb[0].mxu0
  %v1331 = vadd.f32 %v1274, %v1330
  %v1332 = vpop.f32.mrb[0].mxu0
  %1333 = vmatprep.mubr.bf16.mxu0 0
  %1334 = vmatmul.mubr.bf16.gmra.mrb[0].mxu0 %v1291
  %v1335 = vpop.f32.mrb[0].mxu0
  %v1336 = vadd.f32 %v1274, %v1335
  %v1337 = vpop.f32.mrb[0].mxu0
  %v1338 = vpop.f32.mrb[0].mxu0
  %v1339 = vadd.f32 %v1274, %v1338
  %v1340 = vpop.f32.mrb[0].mxu0
  %1341 = vdwg.mxu0
  %vm1342 = vcmp.gt.f32.partialorder %v1328, 0.0
  %vm1343 = vcmp.gt.f32.partialorder %v1331, 0.0
  %vm1344 = vcmp.gt.f32.partialorder %v1336, 0.0
  %vm1345 = vcmp.gt.f32.partialorder %v1339, 0.0
  %v1346 = vmin.f32 %v1328, 0.0
  %v1347 = vmin.f32 %v1331, 0.0
  %v1348 = vmin.f32 %v1336, 0.0
  %v1349 = vmin.f32 %v1339, 0.0
  %v1350 = vmul.f32 %v1346, 1.442695
  %v1351 = vpow.pop %v1350
  %v1352 = vmul.f32 %v1347, 1.442695
  %v1353 = vpow.pop %v1352
  %v1354 = vmul.f32 %v1348, 1.442695
  %v1355 = vpow.pop %v1354
  %v1356 = vmul.f32 %v1349, 1.442695
  %v1357 = vpow.pop %v1356
  %v1358 = vsub.f32 %v1351, 1.0
  %v1359 = vsub.f32 %v1353, 1.0
  %v1360 = vsub.f32 %v1355, 1.0
  %v1361 = vsub.f32 %v1357, 1.0
  %v1362 = vsel %vm1342, %v1328, %v1358
  %v1363 = vsel %vm1343, %v1331, %v1359
  %v1364 = vsel %vm1344, %v1336, %v1360
  %v1365 = vsel %vm1345, %v1339, %v1361
  %v1366 = vadd.f32 %v1362, %v161
  %v1367 = vadd.f32 %v1363, %v162
  %v1368 = vadd.f32 %v1364, %v163
  %v1369 = vadd.f32 %v1365, %v164
  %v1370 = vsel %vm208, %v1366, 0.0
  %1371 = vadd.xlane.f32.xlu0 %v1370
  %v1372 = vpop.xlane.xlu0 %1371
  %v1373 = vsel %vm208, %v1367, 0.0
  %1374 = vadd.xlane.f32.xlu0 %v1373
  %v1375 = vpop.xlane.xlu0 %1374
  %v1376 = vsel %vm208, %v1368, 0.0
  %1377 = vadd.xlane.f32.xlu0 %v1376
  %v1378 = vpop.xlane.xlu0 %1377
  %v1379 = vsel %vm208, %v1369, 0.0
  %1380 = vadd.xlane.f32.xlu0 %v1379
  %v1381 = vpop.xlane.xlu0 %1380
  %v1382 = vrcp.pop 32.0
  %v1383 = vmul.f32 %v1372, %v1382
  %v1384 = vmul.f32 %v1375, %v1382
  %v1385 = vmul.f32 %v1378, %v1382
  %v1386 = vmul.f32 %v1381, %v1382
  %v1387 = vsub.f32 %v1366, %v1383
  %v1388 = vsub.f32 %v1367, %v1384
  %v1389 = vsub.f32 %v1368, %v1385
  %v1390 = vsub.f32 %v1369, %v1386
  %v1391 = vmul.f32 %v1387, %v1387
  %v1392 = vmul.f32 %v1388, %v1388
  %v1393 = vmul.f32 %v1389, %v1389
  %v1394 = vmul.f32 %v1390, %v1390
  %v1395 = vsel %vm208, %v1391, 0.0
  %1396 = vadd.xlane.f32.xlu0 %v1395
  %v1397 = vpop.xlane.xlu0 %1396
  %v1398 = vsel %vm208, %v1392, 0.0
  %1399 = vadd.xlane.f32.xlu0 %v1398
  %v1400 = vpop.xlane.xlu0 %1399
  %v1401 = vsel %vm208, %v1393, 0.0
  %1402 = vadd.xlane.f32.xlu0 %v1401
  %v1403 = vpop.xlane.xlu0 %1402
  %v1404 = vsel %vm208, %v1394, 0.0
  %1405 = vadd.xlane.f32.xlu0 %v1404
  %v1406 = vpop.xlane.xlu0 %1405
  %v1407 = vmul.f32 %v1397, %v1382
  %v1408 = vmul.f32 %v1400, %v1382
  %v1409 = vmul.f32 %v1403, %v1382
  %v1410 = vmul.f32 %v1406, %v1382
  %v1411 = vadd.f32 %v1407, 1e-05
  %v1412 = vadd.f32 %v1408, 1e-05
  %v1413 = vadd.f32 %v1409, 1e-05
  %v1414 = vadd.f32 %v1410, 1e-05
  %v1415 = vrsqrt.pop %v1411
  %v1416 = vrsqrt.pop %v1412
  %v1417 = vrsqrt.pop %v1413
  %v1418 = vrsqrt.pop %v1414
  %v1419 = vmul.f32 %v1387, %v1415
  %v1420 = vmul.f32 %v1388, %v1416
  %v1421 = vmul.f32 %v1389, %v1417
  %v1422 = vmul.f32 %v1390, %v1418
  %v1423 = vlaneseq
  %v1424 = vshrl.u32 %v1423, 7
  %v1425 = vsub.s32 3, %v1424
  %v1426 = vrot.slane %v189, %v1425
  %v1427 = vmul.f32 %v1419, %v1426
  %v1428 = vmul.f32 %v1420, %v1426
  %v1429 = vmul.f32 %v1421, %v1426
  %v1430 = vmul.f32 %v1422, %v1426
  %v1431 = vlaneseq
  %v1432 = vshrl.u32 %v1431, 7
  %v1433 = vsub.s32 4, %v1432
  %v1434 = vrot.slane %v189, %v1433
  %v1435 = vadd.f32 %v1427, %v1434
  %v1436 = vadd.f32 %v1428, %v1434
  %v1437 = vadd.f32 %v1429, %v1434
  %v1438 = vadd.f32 %v1430, %v1434
  %s1439 = scalar_lea.vmem %s1, 96
  %v1440 = vld [vmem:[%s1439] sm:$0xf]
  %v1441 = vld [vmem:[%s1439 + $0x4] sm:$0xf]
  %v1442 = vld [vmem:[%s1439 + $0x8] sm:$0xf]
  %v1443 = vld [vmem:[%s1439 + $0xc] sm:$0xf]
  %v1444 = vld [vmem:[%s1439 + $0x10] sm:$0xf]
  %v1445 = vld [vmem:[%s1439 + $0x14] sm:$0xf]
  %v1446 = vld [vmem:[%s1439 + $0x18] sm:$0xf]
  %v1447 = vld [vmem:[%s1439 + $0x1c] sm:$0xf]
  %v1448 = vld [vmem:[%s1439 + $0x20] sm:$0xf]
  %v1449 = vld [vmem:[%s1439 + $0x24] sm:$0xf]
  %v1450 = vld [vmem:[%s1439 + $0x28] sm:$0xf]
  %v1451 = vld [vmem:[%s1439 + $0x2c] sm:$0xf]
  %v1452 = vld [vmem:[%s1439 + $0x30] sm:$0xf]
  %v1453 = vld [vmem:[%s1439 + $0x34] sm:$0xf]
  %v1454 = vld [vmem:[%s1439 + $0x38] sm:$0xf]
  %v1455 = vld [vmem:[%s1439 + $0x3c] sm:$0xf]
  %v1456 = vld [vmem:[%s1439 + $0x40] sm:$0xf]
  %v1457 = vld [vmem:[%s1439 + $0x44] sm:$0xf]
  %v1458 = vld [vmem:[%s1439 + $0x48] sm:$0xf]
  %v1459 = vld [vmem:[%s1439 + $0x4c] sm:$0xf]
  %v1460 = vld [vmem:[%s1439 + $0x50] sm:$0xf]
  %v1461 = vld [vmem:[%s1439 + $0x54] sm:$0xf]
  %v1462 = vld [vmem:[%s1439 + $0x58] sm:$0xf]
  %v1463 = vld [vmem:[%s1439 + $0x5c] sm:$0xf]
  %s1464 = scalar_lea.vmem %s2, 8
  %v1465 = vld [vmem:[%s1464] sm:$0xff]
  %v1466 = vpack.c.bf16 %v1436, %v1435
  %v1467 = vpack.c.bf16 %v1438, %v1437
  %v1468 = vlaneseq
  %v1469 = vshrl.u32 %v1468, 7
  %v1470 = vsub.s32 0, %v1469
  %v1471 = vrot.slane %v1465, %v1470
  %v1476 = vunpack.c.l.b16 %v1440
  %v1477 = vunpack.c.l.b16 %v1441
  %v1478 = vunpack.c.l.b16 %v1442
  %v1479 = vunpack.c.l.b16 %v1443
  %v1480 = vpack.c.b16 %v1477, %v1476
  %v1481 = vpack.c.b16 %v1479, %v1478
  %v1485 = vsel %vm208, %v1466, 0
  %v1488 = vsel %vm208, %v1467, 0
  %1490 = vmatprep.subr.bf16.mxu0 0
  %1491 = vmatpush1.bf16.msra.mxu0 %v1480
  %1492 = vmatprep.subr.bf16.mxu0 0
  %1493 = vmatpush1.bf16.msra.mxu0 %v1481
  %1494 = vmatprep.subr.bf16.mxu0 0
  %1495 = vmatpush1.bf16.msra.mxu0 0
  %1496 = vmatprep.subr.bf16.mxu0 0
  %1497 = vmatpush1.bf16.msra.mxu0 0
  %1498 = vmatprep.subr.bf16.mxu0 0
  %1499 = vmatpush1.bf16.msra.mxu0 0
  %1500 = vmatprep.subr.bf16.mxu0 0
  %1501 = vmatpush1.bf16.msra.mxu0 0
  %1502 = vmatprep.subr.bf16.mxu0 0
  %1503 = vmatpush1.bf16.msra.mxu0 0
  %1504 = vmatprep.subr.bf16.mxu0 0
  %1505 = vmatpush1.bf16.msra.mxu0 0
  %1506 = vmatprep.subr.bf16.mxu0 0
  %1507 = vmatpush1.bf16.msra.mxu0 0
  %1508 = vmatprep.subr.bf16.mxu0 0
  %1509 = vmatpush1.bf16.msra.mxu0 0
  %1510 = vmatprep.subr.bf16.mxu0 0
  %1511 = vmatpush1.bf16.msra.mxu0 0
  %1512 = vmatprep.subr.bf16.mxu0 0
  %1513 = vmatpush1.bf16.msra.mxu0 0
  %1514 = vmatprep.subr.bf16.mxu0 0
  %1515 = vmatpush1.bf16.msra.mxu0 0
  %1516 = vmatprep.subr.bf16.mxu0 0
  %1517 = vmatpush1.bf16.msra.mxu0 0
  %1518 = vmatprep.subr.bf16.mxu0 0
  %1519 = vmatpush1.bf16.msra.mxu0 0
  %1520 = vmatprep.subr.bf16.mxu0 0
  %1521 = vmatpush1.bf16.msra.mxu0 0
  %1522 = vmatprep.mubr.bf16.mxu0 0
  %1523 = vmatmul.mubr.bf16.gmra.mrb[0].mxu0 %v1485
  %v1524 = vpop.f32.mrb[0].mxu0
  %v1525 = vadd.f32 %v1471, %v1524
  %v1526 = vpop.f32.mrb[0].mxu0
  %v1527 = vpop.f32.mrb[0].mxu0
  %v1528 = vadd.f32 %v1471, %v1527
  %v1529 = vpop.f32.mrb[0].mxu0
  %1530 = vmatprep.mubr.bf16.mxu0 0
  %1531 = vmatmul.mubr.bf16.gmra.mrb[0].mxu0 %v1488
  %v1532 = vpop.f32.mrb[0].mxu0
  %v1533 = vadd.f32 %v1471, %v1532
  %v1534 = vpop.f32.mrb[0].mxu0
  %v1535 = vpop.f32.mrb[0].mxu0
  %v1536 = vadd.f32 %v1471, %v1535
  %v1537 = vpop.f32.mrb[0].mxu0
  %1538 = vdwg.mxu0
  %v1539 = vpack.c.bf16 %v1528, %v1525
  %v1540 = vpack.c.bf16 %v1536, %v1533
  %v1549 = vunpack.c.l.b16 %v1448
  %v1550 = vunpack.c.l.b16 %v1449
  %v1551 = vunpack.c.l.b16 %v1450
  %v1552 = vunpack.c.l.b16 %v1451
  %v1553 = vunpack.c.l.b16 %v1452
  %v1554 = vunpack.c.l.b16 %v1453
  %v1555 = vunpack.c.l.b16 %v1454
  %v1556 = vunpack.c.l.b16 %v1455
  %v1557 = vpack.c.b16 %v1550, %v1549
  %v1558 = vpack.c.b16 %v1552, %v1551
  %v1559 = vpack.c.b16 %v1554, %v1553
  %v1560 = vpack.c.b16 %v1556, %v1555
  %v1566 = vsel %vm290, %v1539, 0
  %v1569 = vsel %vm290, %v1540, 0
  %1571 = vmatprep.subr.bf16.mxu0 0
  %1572 = vmatpush1.bf16.msra.mxu0 %v1557
  %1573 = vmatprep.subr.bf16.mxu0 0
  %1574 = vmatpush1.bf16.msra.mxu0 %v1558
  %1575 = vmatprep.subr.bf16.mxu0 0
  %1576 = vmatpush1.bf16.msra.mxu0 %v1559
  %1577 = vmatprep.subr.bf16.mxu0 0
  %1578 = vmatpush1.bf16.msra.mxu0 %v1560
  %1579 = vmatprep.subr.bf16.mxu0 0
  %1580 = vmatpush1.bf16.msra.mxu0 0
  %1581 = vmatprep.subr.bf16.mxu0 0
  %1582 = vmatpush1.bf16.msra.mxu0 0
  %1583 = vmatprep.subr.bf16.mxu0 0
  %1584 = vmatpush1.bf16.msra.mxu0 0
  %1585 = vmatprep.subr.bf16.mxu0 0
  %1586 = vmatpush1.bf16.msra.mxu0 0
  %1587 = vmatprep.subr.bf16.mxu0 0
  %1588 = vmatpush1.bf16.msra.mxu0 0
  %1589 = vmatprep.subr.bf16.mxu0 0
  %1590 = vmatpush1.bf16.msra.mxu0 0
  %1591 = vmatprep.subr.bf16.mxu0 0
  %1592 = vmatpush1.bf16.msra.mxu0 0
  %1593 = vmatprep.subr.bf16.mxu0 0
  %1594 = vmatpush1.bf16.msra.mxu0 0
  %1595 = vmatprep.subr.bf16.mxu0 0
  %1596 = vmatpush1.bf16.msra.mxu0 0
  %1597 = vmatprep.subr.bf16.mxu0 0
  %1598 = vmatpush1.bf16.msra.mxu0 0
  %1599 = vmatprep.subr.bf16.mxu0 0
  %1600 = vmatpush1.bf16.msra.mxu0 0
  %1601 = vmatprep.subr.bf16.mxu0 0
  %1602 = vmatpush1.bf16.msra.mxu0 0
  %1603 = vmatprep.mubr.bf16.mxu0 0
  %1604 = vmatmul.mubr.bf16.gmra.mrb[0].mxu0 %v1566
  %v1605 = vpop.f32.mrb[0].mxu0
  %v1606 = vadd.f32 0.0, %v1605
  %v1607 = vpop.f32.mrb[0].mxu0
  %v1608 = vpop.f32.mrb[0].mxu0
  %v1609 = vadd.f32 0.0, %v1608
  %v1610 = vpop.f32.mrb[0].mxu0
  %1611 = vmatprep.mubr.bf16.mxu0 0
  %1612 = vmatmul.mubr.bf16.gmra.mrb[0].mxu0 %v1569
  %v1613 = vpop.f32.mrb[0].mxu0
  %v1614 = vadd.f32 0.0, %v1613
  %v1615 = vpop.f32.mrb[0].mxu0
  %v1616 = vpop.f32.mrb[0].mxu0
  %v1617 = vadd.f32 0.0, %v1616
  %v1618 = vpop.f32.mrb[0].mxu0
  %1619 = vdwg.mxu0
  %1620 = vmatprep.subr.bf16.mxu0 0
  %1621 = vmatpush1.bf16.msra.mxu0 %v1539
  %1622 = vmatprep.subr.bf16.mxu0 0
  %1623 = vmatpush1.bf16.msra.mxu0 %v1540
  %1624 = vmatprep.subr.bf16.mxu0 0
  %1625 = vmatpush1.bf16.msra.mxu0 0
  %1626 = vmatprep.subr.bf16.mxu0 0
  %1627 = vmatpush1.bf16.msra.mxu0 0
  %1628 = vmatprep.subr.bf16.mxu0 0
  %1629 = vmatpush1.bf16.msra.mxu0 0
  %1630 = vmatprep.subr.bf16.mxu0 0
  %1631 = vmatpush1.bf16.msra.mxu0 0
  %1632 = vmatprep.subr.bf16.mxu0 0
  %1633 = vmatpush1.bf16.msra.mxu0 0
  %1634 = vmatprep.subr.bf16.mxu0 0
  %1635 = vmatpush1.bf16.msra.mxu0 0
  %1636 = vmatprep.subr.bf16.mxu0 0
  %1637 = vmatpush1.bf16.msra.mxu0 0
  %1638 = vmatprep.subr.bf16.mxu0 0
  %1639 = vmatpush1.bf16.msra.mxu0 0
  %1640 = vmatprep.subr.bf16.mxu0 0
  %1641 = vmatpush1.bf16.msra.mxu0 0
  %1642 = vmatprep.subr.bf16.mxu0 0
  %1643 = vmatpush1.bf16.msra.mxu0 0
  %1644 = vmatprep.subr.bf16.mxu0 0
  %1645 = vmatpush1.bf16.msra.mxu0 0
  %1646 = vmatprep.subr.bf16.mxu0 0
  %1647 = vmatpush1.bf16.msra.mxu0 0
  %1648 = vmatprep.subr.bf16.mxu0 0
  %1649 = vmatpush1.bf16.msra.mxu0 0
  %1650 = vmatprep.subr.bf16.mxu0 0
  %1651 = vmatpush1.bf16.msra.mxu0 0
  %1652 = vmatprep.mubr.bf16.mxu0 0
  %1653 = vmatmul.mubr.bf16.gmra.mrb[0].mxu0 %v347
  %v1654 = vpop.f32.mrb[0].mxu0
  %v1655 = vadd.f32 0.0, %v1654
  %v1656 = vpop.f32.mrb[0].mxu0
  %v1657 = vpop.f32.mrb[0].mxu0
  %v1658 = vadd.f32 0.0, %v1657
  %v1659 = vpop.f32.mrb[0].mxu0
  %1660 = vmatprep.mubr.bf16.mxu0 0
  %1661 = vmatmul.mubr.bf16.gmra.mrb[0].mxu0 %v350
  %v1662 = vpop.f32.mrb[0].mxu0
  %v1663 = vadd.f32 0.0, %v1662
  %v1664 = vpop.f32.mrb[0].mxu0
  %v1665 = vpop.f32.mrb[0].mxu0
  %v1666 = vadd.f32 0.0, %v1665
  %v1667 = vpop.f32.mrb[0].mxu0
  %1668 = vmatprep.mubr.bf16.mxu0 0
  %1669 = vmatmul.mubr.bf16.gmra.mrb[0].mxu0 %v353
  %v1670 = vpop.f32.mrb[0].mxu0
  %v1671 = vadd.f32 0.0, %v1670
  %v1672 = vpop.f32.mrb[0].mxu0
  %v1673 = vpop.f32.mrb[0].mxu0
  %v1674 = vadd.f32 0.0, %v1673
  %v1675 = vpop.f32.mrb[0].mxu0
  %1676 = vmatprep.mubr.bf16.mxu0 0
  %1677 = vmatmul.mubr.bf16.gmra.mrb[0].mxu0 %v356
  %v1678 = vpop.f32.mrb[0].mxu0
  %v1679 = vadd.f32 0.0, %v1678
  %v1680 = vpop.f32.mrb[0].mxu0
  %v1681 = vpop.f32.mrb[0].mxu0
  %v1682 = vadd.f32 0.0, %v1681
  %v1683 = vpop.f32.mrb[0].mxu0
  %1684 = vmatprep.mubr.bf16.mxu0 0
  %1685 = vmatmul.mubr.bf16.gmra.mrb[0].mxu0 %v359
  %v1686 = vpop.f32.mrb[0].mxu0
  %v1687 = vadd.f32 0.0, %v1686
  %v1688 = vpop.f32.mrb[0].mxu0
  %v1689 = vpop.f32.mrb[0].mxu0
  %v1690 = vadd.f32 0.0, %v1689
  %v1691 = vpop.f32.mrb[0].mxu0
  %1692 = vmatprep.mubr.bf16.mxu0 0
  %1693 = vmatmul.mubr.bf16.gmra.mrb[0].mxu0 %v362
  %v1694 = vpop.f32.mrb[0].mxu0
  %v1695 = vadd.f32 0.0, %v1694
  %v1696 = vpop.f32.mrb[0].mxu0
  %v1697 = vpop.f32.mrb[0].mxu0
  %v1698 = vadd.f32 0.0, %v1697
  %v1699 = vpop.f32.mrb[0].mxu0
  %1700 = vmatprep.mubr.bf16.mxu0 0
  %1701 = vmatmul.mubr.bf16.gmra.mrb[0].mxu0 %v365
  %v1702 = vpop.f32.mrb[0].mxu0
  %v1703 = vadd.f32 0.0, %v1702
  %v1704 = vpop.f32.mrb[0].mxu0
  %v1705 = vpop.f32.mrb[0].mxu0
  %v1706 = vadd.f32 0.0, %v1705
  %v1707 = vpop.f32.mrb[0].mxu0
  %1708 = vmatprep.mubr.bf16.mxu0 0
  %1709 = vmatmul.mubr.bf16.gmra.mrb[0].mxu0 %v368
  %v1710 = vpop.f32.mrb[0].mxu0
  %v1711 = vadd.f32 0.0, %v1710
  %v1712 = vpop.f32.mrb[0].mxu0
  %v1713 = vpop.f32.mrb[0].mxu0
  %v1714 = vadd.f32 0.0, %v1713
  %v1715 = vpop.f32.mrb[0].mxu0
  %1716 = vdwg.mxu0
  %v1717 = vpack.c.bf16 %v1609, %v1606
  %v1718 = vpack.c.bf16 %v1617, %v1614
  %1719 = vmatprep.subr.bf16.mxu0 0
  %1720 = vmatpush1.bf16.msra.mxu0 %v1717
  %1721 = vmatprep.subr.bf16.mxu0 0
  %1722 = vmatpush1.bf16.msra.mxu0 %v1718
  %1723 = vmatprep.subr.bf16.mxu0 0
  %1724 = vmatpush1.bf16.msra.mxu0 0
  %1725 = vmatprep.subr.bf16.mxu0 0
  %1726 = vmatpush1.bf16.msra.mxu0 0
  %1727 = vmatprep.subr.bf16.mxu0 0
  %1728 = vmatpush1.bf16.msra.mxu0 0
  %1729 = vmatprep.subr.bf16.mxu0 0
  %1730 = vmatpush1.bf16.msra.mxu0 0
  %1731 = vmatprep.subr.bf16.mxu0 0
  %1732 = vmatpush1.bf16.msra.mxu0 0
  %1733 = vmatprep.subr.bf16.mxu0 0
  %1734 = vmatpush1.bf16.msra.mxu0 0
  %1735 = vmatprep.subr.bf16.mxu0 0
  %1736 = vmatpush1.bf16.msra.mxu0 0
  %1737 = vmatprep.subr.bf16.mxu0 0
  %1738 = vmatpush1.bf16.msra.mxu0 0
  %1739 = vmatprep.subr.bf16.mxu0 0
  %1740 = vmatpush1.bf16.msra.mxu0 0
  %1741 = vmatprep.subr.bf16.mxu0 0
  %1742 = vmatpush1.bf16.msra.mxu0 0
  %1743 = vmatprep.subr.bf16.mxu0 0
  %1744 = vmatpush1.bf16.msra.mxu0 0
  %1745 = vmatprep.subr.bf16.mxu0 0
  %1746 = vmatpush1.bf16.msra.mxu0 0
  %1747 = vmatprep.subr.bf16.mxu0 0
  %1748 = vmatpush1.bf16.msra.mxu0 0
  %1749 = vmatprep.subr.bf16.mxu0 0
  %1750 = vmatpush1.bf16.msra.mxu0 0
  %1751 = vmatprep.mubr.bf16.mxu0 0
  %1752 = vmatmul.mubr.bf16.gmra.mrb[0].mxu0 %v347
  %v1753 = vpop.f32.mrb[0].mxu0
  %v1754 = vadd.f32 0.0, %v1753
  %v1755 = vpop.f32.mrb[0].mxu0
  %v1756 = vpop.f32.mrb[0].mxu0
  %v1757 = vadd.f32 0.0, %v1756
  %v1758 = vpop.f32.mrb[0].mxu0
  %1759 = vmatprep.mubr.bf16.mxu0 0
  %1760 = vmatmul.mubr.bf16.gmra.mrb[0].mxu0 %v350
  %v1761 = vpop.f32.mrb[0].mxu0
  %v1762 = vadd.f32 0.0, %v1761
  %v1763 = vpop.f32.mrb[0].mxu0
  %v1764 = vpop.f32.mrb[0].mxu0
  %v1765 = vadd.f32 0.0, %v1764
  %v1766 = vpop.f32.mrb[0].mxu0
  %1767 = vmatprep.mubr.bf16.mxu0 0
  %1768 = vmatmul.mubr.bf16.gmra.mrb[0].mxu0 %v353
  %v1769 = vpop.f32.mrb[0].mxu0
  %v1770 = vadd.f32 0.0, %v1769
  %v1771 = vpop.f32.mrb[0].mxu0
  %v1772 = vpop.f32.mrb[0].mxu0
  %v1773 = vadd.f32 0.0, %v1772
  %v1774 = vpop.f32.mrb[0].mxu0
  %1775 = vmatprep.mubr.bf16.mxu0 0
  %1776 = vmatmul.mubr.bf16.gmra.mrb[0].mxu0 %v356
  %v1777 = vpop.f32.mrb[0].mxu0
  %v1778 = vadd.f32 0.0, %v1777
  %v1779 = vpop.f32.mrb[0].mxu0
  %v1780 = vpop.f32.mrb[0].mxu0
  %v1781 = vadd.f32 0.0, %v1780
  %v1782 = vpop.f32.mrb[0].mxu0
  %1783 = vmatprep.mubr.bf16.mxu0 0
  %1784 = vmatmul.mubr.bf16.gmra.mrb[0].mxu0 %v359
  %v1785 = vpop.f32.mrb[0].mxu0
  %v1786 = vadd.f32 0.0, %v1785
  %v1787 = vpop.f32.mrb[0].mxu0
  %v1788 = vpop.f32.mrb[0].mxu0
  %v1789 = vadd.f32 0.0, %v1788
  %v1790 = vpop.f32.mrb[0].mxu0
  %1791 = vmatprep.mubr.bf16.mxu0 0
  %1792 = vmatmul.mubr.bf16.gmra.mrb[0].mxu0 %v362
  %v1793 = vpop.f32.mrb[0].mxu0
  %v1794 = vadd.f32 0.0, %v1793
  %v1795 = vpop.f32.mrb[0].mxu0
  %v1796 = vpop.f32.mrb[0].mxu0
  %v1797 = vadd.f32 0.0, %v1796
  %v1798 = vpop.f32.mrb[0].mxu0
  %1799 = vmatprep.mubr.bf16.mxu0 0
  %1800 = vmatmul.mubr.bf16.gmra.mrb[0].mxu0 %v365
  %v1801 = vpop.f32.mrb[0].mxu0
  %v1802 = vadd.f32 0.0, %v1801
  %v1803 = vpop.f32.mrb[0].mxu0
  %v1804 = vpop.f32.mrb[0].mxu0
  %v1805 = vadd.f32 0.0, %v1804
  %v1806 = vpop.f32.mrb[0].mxu0
  %1807 = vmatprep.mubr.bf16.mxu0 0
  %1808 = vmatmul.mubr.bf16.gmra.mrb[0].mxu0 %v368
  %v1809 = vpop.f32.mrb[0].mxu0
  %v1810 = vadd.f32 0.0, %v1809
  %v1811 = vpop.f32.mrb[0].mxu0
  %v1812 = vpop.f32.mrb[0].mxu0
  %v1813 = vadd.f32 0.0, %v1812
  %v1814 = vpop.f32.mrb[0].mxu0
  %1815 = vdwg.mxu0
  %1832 = vrot.lane.b32.xlu0 %v1754, 4
  %v1833 = vpop.permute.xlu0 %1832
  %1834 = vrot.lane.b32.xlu0 %v1757, 4
  %v1835 = vpop.permute.xlu0 %1834
  %1836 = vrot.lane.b32.xlu0 %v1762, 4
  %v1837 = vpop.permute.xlu0 %1836
  %1838 = vrot.lane.b32.xlu0 %v1765, 4
  %v1839 = vpop.permute.xlu0 %1838
  %1840 = vrot.lane.b32.xlu0 %v1770, 4
  %v1841 = vpop.permute.xlu0 %1840
  %1842 = vrot.lane.b32.xlu0 %v1773, 4
  %v1843 = vpop.permute.xlu0 %1842
  %1844 = vrot.lane.b32.xlu0 %v1778, 4
  %v1845 = vpop.permute.xlu0 %1844
  %1846 = vrot.lane.b32.xlu0 %v1781, 4
  %v1847 = vpop.permute.xlu0 %1846
  %1848 = vrot.lane.b32.xlu0 %v1786, 4
  %v1849 = vpop.permute.xlu0 %1848
  %1850 = vrot.lane.b32.xlu0 %v1789, 4
  %v1851 = vpop.permute.xlu0 %1850
  %1852 = vrot.lane.b32.xlu0 %v1794, 4
  %v1853 = vpop.permute.xlu0 %1852
  %1854 = vrot.lane.b32.xlu0 %v1797, 4
  %v1855 = vpop.permute.xlu0 %1854
  %1856 = vrot.lane.b32.xlu0 %v1802, 4
  %v1857 = vpop.permute.xlu0 %1856
  %1858 = vrot.lane.b32.xlu0 %v1805, 4
  %v1859 = vpop.permute.xlu0 %1858
  %1860 = vrot.lane.b32.xlu0 %v1810, 4
  %v1861 = vpop.permute.xlu0 %1860
  %1862 = vrot.lane.b32.xlu0 %v1813, 4
  %v1863 = vpop.permute.xlu0 %1862
  %v1880 = vadd.f32 %v1606, %v1833
  %v1881 = vadd.f32 %v1609, %v1835
  %v1882 = vadd.f32 %v1614, %v1837
  %v1883 = vadd.f32 %v1617, %v1839
  %v1884 = vadd.f32 %v1606, %v1841
  %v1885 = vadd.f32 %v1609, %v1843
  %v1886 = vadd.f32 %v1614, %v1845
  %v1887 = vadd.f32 %v1617, %v1847
  %v1888 = vadd.f32 %v1606, %v1849
  %v1889 = vadd.f32 %v1609, %v1851
  %v1890 = vadd.f32 %v1614, %v1853
  %v1891 = vadd.f32 %v1617, %v1855
  %v1892 = vadd.f32 %v1606, %v1857
  %v1893 = vadd.f32 %v1609, %v1859
  %v1894 = vadd.f32 %v1614, %v1861
  %v1895 = vadd.f32 %v1617, %v1863
  %vm1896 = vcmp.gt.f32.partialorder %v1880, 0.0
  %vm1897 = vcmp.gt.f32.partialorder %v1881, 0.0
  %vm1898 = vcmp.gt.f32.partialorder %v1882, 0.0
  %vm1899 = vcmp.gt.f32.partialorder %v1883, 0.0
  %vm1900 = vcmp.gt.f32.partialorder %v1884, 0.0
  %vm1901 = vcmp.gt.f32.partialorder %v1885, 0.0
  %vm1902 = vcmp.gt.f32.partialorder %v1886, 0.0
  %vm1903 = vcmp.gt.f32.partialorder %v1887, 0.0
  %vm1904 = vcmp.gt.f32.partialorder %v1888, 0.0
  %vm1905 = vcmp.gt.f32.partialorder %v1889, 0.0
  %vm1906 = vcmp.gt.f32.partialorder %v1890, 0.0
  %vm1907 = vcmp.gt.f32.partialorder %v1891, 0.0
  %vm1908 = vcmp.gt.f32.partialorder %v1892, 0.0
  %vm1909 = vcmp.gt.f32.partialorder %v1893, 0.0
  %vm1910 = vcmp.gt.f32.partialorder %v1894, 0.0
  %vm1911 = vcmp.gt.f32.partialorder %v1895, 0.0
  %v1912 = vmul.f32 %v1880, 0.2
  %v1913 = vmul.f32 %v1881, 0.2
  %v1914 = vmul.f32 %v1882, 0.2
  %v1915 = vmul.f32 %v1883, 0.2
  %v1916 = vmul.f32 %v1884, 0.2
  %v1917 = vmul.f32 %v1885, 0.2
  %v1918 = vmul.f32 %v1886, 0.2
  %v1919 = vmul.f32 %v1887, 0.2
  %v1920 = vmul.f32 %v1888, 0.2
  %v1921 = vmul.f32 %v1889, 0.2
  %v1922 = vmul.f32 %v1890, 0.2
  %v1923 = vmul.f32 %v1891, 0.2
  %v1924 = vmul.f32 %v1892, 0.2
  %v1925 = vmul.f32 %v1893, 0.2
  %v1926 = vmul.f32 %v1894, 0.2
  %v1927 = vmul.f32 %v1895, 0.2
  %v1928 = vsel %vm1896, %v1880, %v1912
  %v1929 = vsel %vm1897, %v1881, %v1913
  %v1930 = vsel %vm1898, %v1882, %v1914
  %v1931 = vsel %vm1899, %v1883, %v1915
  %v1932 = vsel %vm1900, %v1884, %v1916
  %v1933 = vsel %vm1901, %v1885, %v1917
  %v1934 = vsel %vm1902, %v1886, %v1918
  %v1935 = vsel %vm1903, %v1887, %v1919
  %v1936 = vsel %vm1904, %v1888, %v1920
  %v1937 = vsel %vm1905, %v1889, %v1921
  %v1938 = vsel %vm1906, %v1890, %v1922
  %v1939 = vsel %vm1907, %v1891, %v1923
  %v1940 = vsel %vm1908, %v1892, %v1924
  %v1941 = vsel %vm1909, %v1893, %v1925
  %v1942 = vsel %vm1910, %v1894, %v1926
  %v1943 = vsel %vm1911, %v1895, %v1927
  %v1944 = vsel %vm774, %v1928, -1e+09
  %v1945 = vsel %vm775, %v1929, -1e+09
  %v1946 = vsel %vm776, %v1930, -1e+09
  %v1947 = vsel %vm777, %v1931, -1e+09
  %v1948 = vsel %vm778, %v1932, -1e+09
  %v1949 = vsel %vm779, %v1933, -1e+09
  %v1950 = vsel %vm780, %v1934, -1e+09
  %v1951 = vsel %vm781, %v1935, -1e+09
  %v1952 = vsel %vm782, %v1936, -1e+09
  %v1953 = vsel %vm783, %v1937, -1e+09
  %v1954 = vsel %vm784, %v1938, -1e+09
  %v1955 = vsel %vm785, %v1939, -1e+09
  %v1956 = vsel %vm786, %v1940, -1e+09
  %v1957 = vsel %vm787, %v1941, -1e+09
  %v1958 = vsel %vm788, %v1942, -1e+09
  %v1959 = vsel %vm789, %v1943, -1e+09
  %v1960 = vmax.f32 %v1944, %v1948
  %v1961 = vmax.f32 %v1945, %v1949
  %v1962 = vmax.f32 %v1946, %v1950
  %v1963 = vmax.f32 %v1947, %v1951
  %v1964 = vmax.f32 %v1952, %v1956
  %v1965 = vmax.f32 %v1953, %v1957
  %v1966 = vmax.f32 %v1954, %v1958
  %v1967 = vmax.f32 %v1955, %v1959
  %v1968 = vmax.f32 %v1960, %v1964
  %v1969 = vmax.f32 %v1961, %v1965
  %v1970 = vmax.f32 %v1962, %v1966
  %v1971 = vmax.f32 %v1963, %v1967
  %v1972 = vsub.f32 %v1944, %v1968
  %v1973 = vsub.f32 %v1945, %v1969
  %v1974 = vsub.f32 %v1946, %v1970
  %v1975 = vsub.f32 %v1947, %v1971
  %v1976 = vsub.f32 %v1948, %v1968
  %v1977 = vsub.f32 %v1949, %v1969
  %v1978 = vsub.f32 %v1950, %v1970
  %v1979 = vsub.f32 %v1951, %v1971
  %v1980 = vsub.f32 %v1952, %v1968
  %v1981 = vsub.f32 %v1953, %v1969
  %v1982 = vsub.f32 %v1954, %v1970
  %v1983 = vsub.f32 %v1955, %v1971
  %v1984 = vsub.f32 %v1956, %v1968
  %v1985 = vsub.f32 %v1957, %v1969
  %v1986 = vsub.f32 %v1958, %v1970
  %v1987 = vsub.f32 %v1959, %v1971
  %v1988 = vmul.f32 %v1972, 1.442695
  %v1989 = vpow.pop %v1988
  %v1990 = vmul.f32 %v1973, 1.442695
  %v1991 = vpow.pop %v1990
  %v1992 = vmul.f32 %v1974, 1.442695
  %v1993 = vpow.pop %v1992
  %v1994 = vmul.f32 %v1975, 1.442695
  %v1995 = vpow.pop %v1994
  %v1996 = vmul.f32 %v1976, 1.442695
  %v1997 = vpow.pop %v1996
  %v1998 = vmul.f32 %v1977, 1.442695
  %v1999 = vpow.pop %v1998
  %v2000 = vmul.f32 %v1978, 1.442695
  %v2001 = vpow.pop %v2000
  %v2002 = vmul.f32 %v1979, 1.442695
  %v2003 = vpow.pop %v2002
  %v2004 = vmul.f32 %v1980, 1.442695
  %v2005 = vpow.pop %v2004
  %v2006 = vmul.f32 %v1981, 1.442695
  %v2007 = vpow.pop %v2006
  %v2008 = vmul.f32 %v1982, 1.442695
  %v2009 = vpow.pop %v2008
  %v2010 = vmul.f32 %v1983, 1.442695
  %v2011 = vpow.pop %v2010
  %v2012 = vmul.f32 %v1984, 1.442695
  %v2013 = vpow.pop %v2012
  %v2014 = vmul.f32 %v1985, 1.442695
  %v2015 = vpow.pop %v2014
  %v2016 = vmul.f32 %v1986, 1.442695
  %v2017 = vpow.pop %v2016
  %v2018 = vmul.f32 %v1987, 1.442695
  %v2019 = vpow.pop %v2018
  %v2020 = vmul.f32 %v1989, %v869
  %v2021 = vmul.f32 %v1991, %v874
  %v2022 = vmul.f32 %v1993, %v879
  %v2023 = vmul.f32 %v1995, %v884
  %v2024 = vmul.f32 %v1997, %v889
  %v2025 = vmul.f32 %v1999, %v894
  %v2026 = vmul.f32 %v2001, %v899
  %v2027 = vmul.f32 %v2003, %v904
  %v2028 = vmul.f32 %v2005, %v909
  %v2029 = vmul.f32 %v2007, %v914
  %v2030 = vmul.f32 %v2009, %v919
  %v2031 = vmul.f32 %v2011, %v924
  %v2032 = vmul.f32 %v2013, %v929
  %v2033 = vmul.f32 %v2015, %v934
  %v2034 = vmul.f32 %v2017, %v939
  %v2035 = vmul.f32 %v2019, %v944
  %v2036 = vadd.f32 %v2020, %v2024
  %v2037 = vadd.f32 %v2021, %v2025
  %v2038 = vadd.f32 %v2022, %v2026
  %v2039 = vadd.f32 %v2023, %v2027
  %v2040 = vadd.f32 %v2036, %v2028
  %v2041 = vadd.f32 %v2037, %v2029
  %v2042 = vadd.f32 %v2038, %v2030
  %v2043 = vadd.f32 %v2039, %v2031
  %v2044 = vadd.f32 %v2040, %v2032
  %v2045 = vadd.f32 %v2041, %v2033
  %v2046 = vadd.f32 %v2042, %v2034
  %v2047 = vadd.f32 %v2043, %v2035
  %v2048 = vadd.f32 %v2044, 1e-09
  %v2049 = vadd.f32 %v2045, 1e-09
  %v2050 = vadd.f32 %v2046, 1e-09
  %v2051 = vadd.f32 %v2047, 1e-09
  %v2052 = vrcp.pop %v2048
  %v2053 = vrcp.pop %v2049
  %v2054 = vrcp.pop %v2050
  %v2055 = vrcp.pop %v2051
  %v2056 = vmul.f32 %v2020, %v2052
  %v2057 = vmul.f32 %v2021, %v2053
  %v2058 = vmul.f32 %v2022, %v2054
  %v2059 = vmul.f32 %v2023, %v2055
  %v2060 = vmul.f32 %v2024, %v2052
  %v2061 = vmul.f32 %v2025, %v2053
  %v2062 = vmul.f32 %v2026, %v2054
  %v2063 = vmul.f32 %v2027, %v2055
  %v2064 = vmul.f32 %v2028, %v2052
  %v2065 = vmul.f32 %v2029, %v2053
  %v2066 = vmul.f32 %v2030, %v2054
  %v2067 = vmul.f32 %v2031, %v2055
  %v2068 = vmul.f32 %v2032, %v2052
  %v2069 = vmul.f32 %v2033, %v2053
  %v2070 = vmul.f32 %v2034, %v2054
  %v2071 = vmul.f32 %v2035, %v2055
  %v2072 = vpack.c.bf16 %v2057, %v2056
  %v2073 = vpack.c.bf16 %v2059, %v2058
  %v2074 = vpack.c.bf16 %v2061, %v2060
  %v2075 = vpack.c.bf16 %v2063, %v2062
  %v2076 = vpack.c.bf16 %v2065, %v2064
  %v2077 = vpack.c.bf16 %v2067, %v2066
  %v2078 = vpack.c.bf16 %v2069, %v2068
  %v2079 = vpack.c.bf16 %v2071, %v2070
  %2088 = vrot.lane.b32.xlu0 %v2072, 124
  %v2089 = vpop.permute.xlu0 %2088
  %2090 = vrot.lane.b32.xlu0 %v2073, 124
  %v2091 = vpop.permute.xlu0 %2090
  %2092 = vrot.lane.b32.xlu0 %v2074, 124
  %v2093 = vpop.permute.xlu0 %2092
  %2094 = vrot.lane.b32.xlu0 %v2075, 124
  %v2095 = vpop.permute.xlu0 %2094
  %2096 = vrot.lane.b32.xlu0 %v2076, 124
  %v2097 = vpop.permute.xlu0 %2096
  %2098 = vrot.lane.b32.xlu0 %v2077, 124
  %v2099 = vpop.permute.xlu0 %2098
  %2100 = vrot.lane.b32.xlu0 %v2078, 124
  %v2101 = vpop.permute.xlu0 %2100
  %2102 = vrot.lane.b32.xlu0 %v2079, 124
  %v2103 = vpop.permute.xlu0 %2102
  %v2105 = vsel %vm1030, %v2089, 0
  %v2108 = vsel %vm1030, %v2091, 0
  %v2111 = vsel %vm1030, %v2093, 0
  %v2114 = vsel %vm1030, %v2095, 0
  %v2117 = vsel %vm1030, %v2097, 0
  %v2120 = vsel %vm1030, %v2099, 0
  %v2123 = vsel %vm1030, %v2101, 0
  %v2126 = vsel %vm1030, %v2103, 0
  %2128 = vmatprep.subr.bf16.mxu0 0
  %2129 = vmatpush1.bf16.msra.mxu0 %v1057
  %2130 = vmatprep.subr.bf16.mxu0 0
  %2131 = vmatpush1.bf16.msra.mxu0 0
  %2132 = vmatprep.subr.bf16.mxu0 0
  %2133 = vmatpush1.bf16.msra.mxu0 0
  %2134 = vmatprep.subr.bf16.mxu0 0
  %2135 = vmatpush1.bf16.msra.mxu0 0
  %2136 = vmatprep.subr.bf16.mxu0 0
  %2137 = vmatpush1.bf16.msra.mxu0 0
  %2138 = vmatprep.subr.bf16.mxu0 0
  %2139 = vmatpush1.bf16.msra.mxu0 0
  %2140 = vmatprep.subr.bf16.mxu0 0
  %2141 = vmatpush1.bf16.msra.mxu0 0
  %2142 = vmatprep.subr.bf16.mxu0 0
  %2143 = vmatpush1.bf16.msra.mxu0 0
  %2144 = vmatprep.subr.bf16.mxu0 0
  %2145 = vmatpush1.bf16.msra.mxu0 0
  %2146 = vmatprep.subr.bf16.mxu0 0
  %2147 = vmatpush1.bf16.msra.mxu0 0
  %2148 = vmatprep.subr.bf16.mxu0 0
  %2149 = vmatpush1.bf16.msra.mxu0 0
  %2150 = vmatprep.subr.bf16.mxu0 0
  %2151 = vmatpush1.bf16.msra.mxu0 0
  %2152 = vmatprep.subr.bf16.mxu0 0
  %2153 = vmatpush1.bf16.msra.mxu0 0
  %2154 = vmatprep.subr.bf16.mxu0 0
  %2155 = vmatpush1.bf16.msra.mxu0 0
  %2156 = vmatprep.subr.bf16.mxu0 0
  %2157 = vmatpush1.bf16.msra.mxu0 0
  %2158 = vmatprep.subr.bf16.mxu0 0
  %2159 = vmatpush1.bf16.msra.mxu0 0
  %2160 = vmatprep.mubr.bf16.mxu0 0
  %2161 = vmatmul.mubr.bf16.gmra.mrb[0].mxu0 %v2105
  %v2162 = vpop.f32.mrb[0].mxu0
  %v2163 = vadd.f32 0.0, %v2162
  %v2164 = vpop.f32.mrb[0].mxu0
  %v2165 = vpop.f32.mrb[0].mxu0
  %v2166 = vadd.f32 0.0, %v2165
  %v2167 = vpop.f32.mrb[0].mxu0
  %2168 = vmatprep.mubr.bf16.mxu0 0
  %2169 = vmatmul.mubr.bf16.gmra.mrb[0].mxu0 %v2108
  %v2170 = vpop.f32.mrb[0].mxu0
  %v2171 = vadd.f32 0.0, %v2170
  %v2172 = vpop.f32.mrb[0].mxu0
  %v2173 = vpop.f32.mrb[0].mxu0
  %v2174 = vadd.f32 0.0, %v2173
  %v2175 = vpop.f32.mrb[0].mxu0
  %2176 = vmatprep.mubr.bf16.mxu0 0
  %2177 = vmatmul.mubr.bf16.gmra.mrb[0].mxu0 %v2111
  %v2178 = vpop.f32.mrb[0].mxu0
  %v2179 = vadd.f32 0.0, %v2178
  %v2180 = vpop.f32.mrb[0].mxu0
  %v2181 = vpop.f32.mrb[0].mxu0
  %v2182 = vadd.f32 0.0, %v2181
  %v2183 = vpop.f32.mrb[0].mxu0
  %2184 = vmatprep.mubr.bf16.mxu0 0
  %2185 = vmatmul.mubr.bf16.gmra.mrb[0].mxu0 %v2114
  %v2186 = vpop.f32.mrb[0].mxu0
  %v2187 = vadd.f32 0.0, %v2186
  %v2188 = vpop.f32.mrb[0].mxu0
  %v2189 = vpop.f32.mrb[0].mxu0
  %v2190 = vadd.f32 0.0, %v2189
  %v2191 = vpop.f32.mrb[0].mxu0
  %2192 = vmatprep.mubr.bf16.mxu0 0
  %2193 = vmatmul.mubr.bf16.gmra.mrb[0].mxu0 %v2117
  %v2194 = vpop.f32.mrb[0].mxu0
  %v2195 = vadd.f32 0.0, %v2194
  %v2196 = vpop.f32.mrb[0].mxu0
  %v2197 = vpop.f32.mrb[0].mxu0
  %v2198 = vadd.f32 0.0, %v2197
  %v2199 = vpop.f32.mrb[0].mxu0
  %2200 = vmatprep.mubr.bf16.mxu0 0
  %2201 = vmatmul.mubr.bf16.gmra.mrb[0].mxu0 %v2120
  %v2202 = vpop.f32.mrb[0].mxu0
  %v2203 = vadd.f32 0.0, %v2202
  %v2204 = vpop.f32.mrb[0].mxu0
  %v2205 = vpop.f32.mrb[0].mxu0
  %v2206 = vadd.f32 0.0, %v2205
  %v2207 = vpop.f32.mrb[0].mxu0
  %2208 = vmatprep.mubr.bf16.mxu0 0
  %2209 = vmatmul.mubr.bf16.gmra.mrb[0].mxu0 %v2123
  %v2210 = vpop.f32.mrb[0].mxu0
  %v2211 = vadd.f32 0.0, %v2210
  %v2212 = vpop.f32.mrb[0].mxu0
  %v2213 = vpop.f32.mrb[0].mxu0
  %v2214 = vadd.f32 0.0, %v2213
  %v2215 = vpop.f32.mrb[0].mxu0
  %2216 = vmatprep.mubr.bf16.mxu0 0
  %2217 = vmatmul.mubr.bf16.gmra.mrb[0].mxu0 %v2126
  %v2218 = vpop.f32.mrb[0].mxu0
  %v2219 = vadd.f32 0.0, %v2218
  %v2220 = vpop.f32.mrb[0].mxu0
  %v2221 = vpop.f32.mrb[0].mxu0
  %v2222 = vadd.f32 0.0, %v2221
  %v2223 = vpop.f32.mrb[0].mxu0
  %2224 = vdwg.mxu0
  %v2225 = vmul.f32 %v2163, %v1655
  %v2226 = vmul.f32 %v2166, %v1658
  %v2227 = vmul.f32 %v2171, %v1663
  %v2228 = vmul.f32 %v2174, %v1666
  %v2229 = vmul.f32 %v2179, %v1671
  %v2230 = vmul.f32 %v2182, %v1674
  %v2231 = vmul.f32 %v2187, %v1679
  %v2232 = vmul.f32 %v2190, %v1682
  %v2233 = vmul.f32 %v2195, %v1687
  %v2234 = vmul.f32 %v2198, %v1690
  %v2235 = vmul.f32 %v2203, %v1695
  %v2236 = vmul.f32 %v2206, %v1698
  %v2237 = vmul.f32 %v2211, %v1703
  %v2238 = vmul.f32 %v2214, %v1706
  %v2239 = vmul.f32 %v2219, %v1711
  %v2240 = vmul.f32 %v2222, %v1714
  %v2241 = vadd.f32 %v2225, %v2229
  %v2242 = vadd.f32 %v2226, %v2230
  %v2243 = vadd.f32 %v2227, %v2231
  %v2244 = vadd.f32 %v2228, %v2232
  %v2245 = vadd.f32 %v2241, %v2233
  %v2246 = vadd.f32 %v2242, %v2234
  %v2247 = vadd.f32 %v2243, %v2235
  %v2248 = vadd.f32 %v2244, %v2236
  %v2249 = vadd.f32 %v2245, %v2237
  %v2250 = vadd.f32 %v2246, %v2238
  %v2251 = vadd.f32 %v2247, %v2239
  %v2252 = vadd.f32 %v2248, %v2240
  %v2253 = vpack.c.bf16 %v2250, %v2249
  %v2254 = vpack.c.bf16 %v2252, %v2251
  %v2255 = vlaneseq
  %v2256 = vshrl.u32 %v2255, 7
  %v2257 = vsub.s32 1, %v2256
  %v2258 = vrot.slane %v1465, %v2257
  %v2267 = vunpack.c.l.b16 %v1456
  %v2268 = vunpack.c.l.b16 %v1457
  %v2269 = vunpack.c.l.b16 %v1458
  %v2270 = vunpack.c.l.b16 %v1459
  %v2271 = vunpack.c.l.b16 %v1460
  %v2272 = vunpack.c.l.b16 %v1461
  %v2273 = vunpack.c.l.b16 %v1462
  %v2274 = vunpack.c.l.b16 %v1463
  %v2275 = vpack.c.b16 %v2268, %v2267
  %v2276 = vpack.c.b16 %v2270, %v2269
  %v2277 = vpack.c.b16 %v2272, %v2271
  %v2278 = vpack.c.b16 %v2274, %v2273
  %v2284 = vsel %vm290, %v2253, 0
  %v2287 = vsel %vm290, %v2254, 0
  %2289 = vmatprep.subr.bf16.mxu0 0
  %2290 = vmatpush1.bf16.msra.mxu0 %v2275
  %2291 = vmatprep.subr.bf16.mxu0 0
  %2292 = vmatpush1.bf16.msra.mxu0 %v2276
  %2293 = vmatprep.subr.bf16.mxu0 0
  %2294 = vmatpush1.bf16.msra.mxu0 %v2277
  %2295 = vmatprep.subr.bf16.mxu0 0
  %2296 = vmatpush1.bf16.msra.mxu0 %v2278
  %2297 = vmatprep.subr.bf16.mxu0 0
  %2298 = vmatpush1.bf16.msra.mxu0 0
  %2299 = vmatprep.subr.bf16.mxu0 0
  %2300 = vmatpush1.bf16.msra.mxu0 0
  %2301 = vmatprep.subr.bf16.mxu0 0
  %2302 = vmatpush1.bf16.msra.mxu0 0
  %2303 = vmatprep.subr.bf16.mxu0 0
  %2304 = vmatpush1.bf16.msra.mxu0 0
  %2305 = vmatprep.subr.bf16.mxu0 0
  %2306 = vmatpush1.bf16.msra.mxu0 0
  %2307 = vmatprep.subr.bf16.mxu0 0
  %2308 = vmatpush1.bf16.msra.mxu0 0
  %2309 = vmatprep.subr.bf16.mxu0 0
  %2310 = vmatpush1.bf16.msra.mxu0 0
  %2311 = vmatprep.subr.bf16.mxu0 0
  %2312 = vmatpush1.bf16.msra.mxu0 0
  %2313 = vmatprep.subr.bf16.mxu0 0
  %2314 = vmatpush1.bf16.msra.mxu0 0
  %2315 = vmatprep.subr.bf16.mxu0 0
  %2316 = vmatpush1.bf16.msra.mxu0 0
  %2317 = vmatprep.subr.bf16.mxu0 0
  %2318 = vmatpush1.bf16.msra.mxu0 0
  %2319 = vmatprep.subr.bf16.mxu0 0
  %2320 = vmatpush1.bf16.msra.mxu0 0
  %2321 = vmatprep.mubr.bf16.mxu0 0
  %2322 = vmatmul.mubr.bf16.gmra.mrb[0].mxu0 %v2284
  %v2323 = vpop.f32.mrb[0].mxu0
  %v2324 = vadd.f32 %v2258, %v2323
  %v2325 = vpop.f32.mrb[0].mxu0
  %v2326 = vpop.f32.mrb[0].mxu0
  %v2327 = vadd.f32 %v2258, %v2326
  %v2328 = vpop.f32.mrb[0].mxu0
  %2329 = vmatprep.mubr.bf16.mxu0 0
  %2330 = vmatmul.mubr.bf16.gmra.mrb[0].mxu0 %v2287
  %v2331 = vpop.f32.mrb[0].mxu0
  %v2332 = vadd.f32 %v2258, %v2331
  %v2333 = vpop.f32.mrb[0].mxu0
  %v2334 = vpop.f32.mrb[0].mxu0
  %v2335 = vadd.f32 %v2258, %v2334
  %v2336 = vpop.f32.mrb[0].mxu0
  %2337 = vdwg.mxu0
  %v2338 = vpack.c.bf16 %v2327, %v2324
  %v2339 = vpack.c.bf16 %v2335, %v2332
  %v2340 = vlaneseq
  %v2341 = vshrl.u32 %v2340, 7
  %v2342 = vsub.s32 2, %v2341
  %v2343 = vrot.slane %v1465, %v2342
  %v2348 = vunpack.c.l.b16 %v1444
  %v2349 = vunpack.c.l.b16 %v1445
  %v2350 = vunpack.c.l.b16 %v1446
  %v2351 = vunpack.c.l.b16 %v1447
  %v2352 = vpack.c.b16 %v2349, %v2348
  %v2353 = vpack.c.b16 %v2351, %v2350
  %v2357 = vsel %vm208, %v2338, 0
  %v2360 = vsel %vm208, %v2339, 0
  %2362 = vmatprep.subr.bf16.mxu0 0
  %2363 = vmatpush1.bf16.msra.mxu0 %v2352
  %2364 = vmatprep.subr.bf16.mxu0 0
  %2365 = vmatpush1.bf16.msra.mxu0 %v2353
  %2366 = vmatprep.subr.bf16.mxu0 0
  %2367 = vmatpush1.bf16.msra.mxu0 0
  %2368 = vmatprep.subr.bf16.mxu0 0
  %2369 = vmatpush1.bf16.msra.mxu0 0
  %2370 = vmatprep.subr.bf16.mxu0 0
  %2371 = vmatpush1.bf16.msra.mxu0 0
  %2372 = vmatprep.subr.bf16.mxu0 0
  %2373 = vmatpush1.bf16.msra.mxu0 0
  %2374 = vmatprep.subr.bf16.mxu0 0
  %2375 = vmatpush1.bf16.msra.mxu0 0
  %2376 = vmatprep.subr.bf16.mxu0 0
  %2377 = vmatpush1.bf16.msra.mxu0 0
  %2378 = vmatprep.subr.bf16.mxu0 0
  %2379 = vmatpush1.bf16.msra.mxu0 0
  %2380 = vmatprep.subr.bf16.mxu0 0
  %2381 = vmatpush1.bf16.msra.mxu0 0
  %2382 = vmatprep.subr.bf16.mxu0 0
  %2383 = vmatpush1.bf16.msra.mxu0 0
  %2384 = vmatprep.subr.bf16.mxu0 0
  %2385 = vmatpush1.bf16.msra.mxu0 0
  %2386 = vmatprep.subr.bf16.mxu0 0
  %2387 = vmatpush1.bf16.msra.mxu0 0
  %2388 = vmatprep.subr.bf16.mxu0 0
  %2389 = vmatpush1.bf16.msra.mxu0 0
  %2390 = vmatprep.subr.bf16.mxu0 0
  %2391 = vmatpush1.bf16.msra.mxu0 0
  %2392 = vmatprep.subr.bf16.mxu0 0
  %2393 = vmatpush1.bf16.msra.mxu0 0
  %2394 = vmatprep.mubr.bf16.mxu0 0
  %2395 = vmatmul.mubr.bf16.gmra.mrb[0].mxu0 %v2357
  %v2396 = vpop.f32.mrb[0].mxu0
  %v2397 = vadd.f32 %v2343, %v2396
  %v2398 = vpop.f32.mrb[0].mxu0
  %v2399 = vpop.f32.mrb[0].mxu0
  %v2400 = vadd.f32 %v2343, %v2399
  %v2401 = vpop.f32.mrb[0].mxu0
  %2402 = vmatprep.mubr.bf16.mxu0 0
  %2403 = vmatmul.mubr.bf16.gmra.mrb[0].mxu0 %v2360
  %v2404 = vpop.f32.mrb[0].mxu0
  %v2405 = vadd.f32 %v2343, %v2404
  %v2406 = vpop.f32.mrb[0].mxu0
  %v2407 = vpop.f32.mrb[0].mxu0
  %v2408 = vadd.f32 %v2343, %v2407
  %v2409 = vpop.f32.mrb[0].mxu0
  %2410 = vdwg.mxu0
  %vm2411 = vcmp.gt.f32.partialorder %v2397, 0.0
  %vm2412 = vcmp.gt.f32.partialorder %v2400, 0.0
  %vm2413 = vcmp.gt.f32.partialorder %v2405, 0.0
  %vm2414 = vcmp.gt.f32.partialorder %v2408, 0.0
  %v2415 = vmin.f32 %v2397, 0.0
  %v2416 = vmin.f32 %v2400, 0.0
  %v2417 = vmin.f32 %v2405, 0.0
  %v2418 = vmin.f32 %v2408, 0.0
  %v2419 = vmul.f32 %v2415, 1.442695
  %v2420 = vpow.pop %v2419
  %v2421 = vmul.f32 %v2416, 1.442695
  %v2422 = vpow.pop %v2421
  %v2423 = vmul.f32 %v2417, 1.442695
  %v2424 = vpow.pop %v2423
  %v2425 = vmul.f32 %v2418, 1.442695
  %v2426 = vpow.pop %v2425
  %v2427 = vsub.f32 %v2420, 1.0
  %v2428 = vsub.f32 %v2422, 1.0
  %v2429 = vsub.f32 %v2424, 1.0
  %v2430 = vsub.f32 %v2426, 1.0
  %v2431 = vsel %vm2411, %v2397, %v2427
  %v2432 = vsel %vm2412, %v2400, %v2428
  %v2433 = vsel %vm2413, %v2405, %v2429
  %v2434 = vsel %vm2414, %v2408, %v2430
  %v2435 = vadd.f32 %v2431, %v1435
  %v2436 = vadd.f32 %v2432, %v1436
  %v2437 = vadd.f32 %v2433, %v1437
  %v2438 = vadd.f32 %v2434, %v1438
  %v2439 = vsel %vm208, %v2435, 0.0
  %2440 = vadd.xlane.f32.xlu0 %v2439
  %v2441 = vpop.xlane.xlu0 %2440
  %v2442 = vsel %vm208, %v2436, 0.0
  %2443 = vadd.xlane.f32.xlu0 %v2442
  %v2444 = vpop.xlane.xlu0 %2443
  %v2445 = vsel %vm208, %v2437, 0.0
  %2446 = vadd.xlane.f32.xlu0 %v2445
  %v2447 = vpop.xlane.xlu0 %2446
  %v2448 = vsel %vm208, %v2438, 0.0
  %2449 = vadd.xlane.f32.xlu0 %v2448
  %v2450 = vpop.xlane.xlu0 %2449
  %v2451 = vmul.f32 %v2441, %v1382
  %v2452 = vmul.f32 %v2444, %v1382
  %v2453 = vmul.f32 %v2447, %v1382
  %v2454 = vmul.f32 %v2450, %v1382
  %v2455 = vsub.f32 %v2435, %v2451
  %v2456 = vsub.f32 %v2436, %v2452
  %v2457 = vsub.f32 %v2437, %v2453
  %v2458 = vsub.f32 %v2438, %v2454
  %v2459 = vmul.f32 %v2455, %v2455
  %v2460 = vmul.f32 %v2456, %v2456
  %v2461 = vmul.f32 %v2457, %v2457
  %v2462 = vmul.f32 %v2458, %v2458
  %v2463 = vsel %vm208, %v2459, 0.0
  %2464 = vadd.xlane.f32.xlu0 %v2463
  %v2465 = vpop.xlane.xlu0 %2464
  %v2466 = vsel %vm208, %v2460, 0.0
  %2467 = vadd.xlane.f32.xlu0 %v2466
  %v2468 = vpop.xlane.xlu0 %2467
  %v2469 = vsel %vm208, %v2461, 0.0
  %2470 = vadd.xlane.f32.xlu0 %v2469
  %v2471 = vpop.xlane.xlu0 %2470
  %v2472 = vsel %vm208, %v2462, 0.0
  %2473 = vadd.xlane.f32.xlu0 %v2472
  %v2474 = vpop.xlane.xlu0 %2473
  %v2475 = vmul.f32 %v2465, %v1382
  %v2476 = vmul.f32 %v2468, %v1382
  %v2477 = vmul.f32 %v2471, %v1382
  %v2478 = vmul.f32 %v2474, %v1382
  %v2479 = vadd.f32 %v2475, 1e-05
  %v2480 = vadd.f32 %v2476, 1e-05
  %v2481 = vadd.f32 %v2477, 1e-05
  %v2482 = vadd.f32 %v2478, 1e-05
  %v2483 = vrsqrt.pop %v2479
  %v2484 = vrsqrt.pop %v2480
  %v2485 = vrsqrt.pop %v2481
  %v2486 = vrsqrt.pop %v2482
  %v2487 = vmul.f32 %v2455, %v2483
  %v2488 = vmul.f32 %v2456, %v2484
  %v2489 = vmul.f32 %v2457, %v2485
  %v2490 = vmul.f32 %v2458, %v2486
  %v2491 = vlaneseq
  %v2492 = vshrl.u32 %v2491, 7
  %v2493 = vsub.s32 3, %v2492
  %v2494 = vrot.slane %v1465, %v2493
  %v2495 = vmul.f32 %v2487, %v2494
  %v2496 = vmul.f32 %v2488, %v2494
  %v2497 = vmul.f32 %v2489, %v2494
  %v2498 = vmul.f32 %v2490, %v2494
  %v2499 = vlaneseq
  %v2500 = vshrl.u32 %v2499, 7
  %v2501 = vsub.s32 4, %v2500
  %v2502 = vrot.slane %v1465, %v2501
  %v2503 = vadd.f32 %v2495, %v2502
  %v2504 = vadd.f32 %v2496, %v2502
  %v2505 = vadd.f32 %v2497, %v2502
  %v2506 = vadd.f32 %v2498, %v2502
  %v2507 = vpack.c.bf16 %v2504, %v2503
  %v2508 = vpack.c.bf16 %v2506, %v2505
  %v2510 = vsel %vm208, %v65, 0
  %2512 = vmatprep.subr.bf16.mxu0 0
  %2513 = vmatpush1.bf16.msra.mxu0 %v2507
  %2514 = vmatprep.subr.bf16.mxu0 0
  %2515 = vmatpush1.bf16.msra.mxu0 %v2508
  %2516 = vmatprep.subr.bf16.mxu0 0
  %2517 = vmatpush1.bf16.msra.mxu0 0
  %2518 = vmatprep.subr.bf16.mxu0 0
  %2519 = vmatpush1.bf16.msra.mxu0 0
  %2520 = vmatprep.subr.bf16.mxu0 0
  %2521 = vmatpush1.bf16.msra.mxu0 0
  %2522 = vmatprep.subr.bf16.mxu0 0
  %2523 = vmatpush1.bf16.msra.mxu0 0
  %2524 = vmatprep.subr.bf16.mxu0 0
  %2525 = vmatpush1.bf16.msra.mxu0 0
  %2526 = vmatprep.subr.bf16.mxu0 0
  %2527 = vmatpush1.bf16.msra.mxu0 0
  %2528 = vmatprep.subr.bf16.mxu0 0
  %2529 = vmatpush1.bf16.msra.mxu0 0
  %2530 = vmatprep.subr.bf16.mxu0 0
  %2531 = vmatpush1.bf16.msra.mxu0 0
  %2532 = vmatprep.subr.bf16.mxu0 0
  %2533 = vmatpush1.bf16.msra.mxu0 0
  %2534 = vmatprep.subr.bf16.mxu0 0
  %2535 = vmatpush1.bf16.msra.mxu0 0
  %2536 = vmatprep.subr.bf16.mxu0 0
  %2537 = vmatpush1.bf16.msra.mxu0 0
  %2538 = vmatprep.subr.bf16.mxu0 0
  %2539 = vmatpush1.bf16.msra.mxu0 0
  %2540 = vmatprep.subr.bf16.mxu0 0
  %2541 = vmatpush1.bf16.msra.mxu0 0
  %2542 = vmatprep.subr.bf16.mxu0 0
  %2543 = vmatpush1.bf16.msra.mxu0 0
  %2544 = vmatprep.mubr.bf16.mxu0 0
  %2545 = vmatmul.mubr.bf16.gmra.mrb[0].mxu0 %v2510
  %v2546 = vpop.f32.mrb[0].mxu0
  %v2547 = vadd.f32 0.0, %v2546
  %v2548 = vpop.f32.mrb[0].mxu0
  %v2549 = vpop.f32.mrb[0].mxu0
  %v2550 = vpop.f32.mrb[0].mxu0
  %2551 = vdwg.mxu0
  %v2552 = vpack.c.bf16 %v2547, %v2547
  %v2557 = vunpack.c.l.b16 %v68
  %v2558 = vunpack.c.l.b16 %v69
  %v2559 = vunpack.c.l.b16 %v70
  %v2560 = vunpack.c.l.b16 %v71
  %v2561 = vpack.c.b16 %v2558, %v2557
  %v2562 = vpack.c.b16 %v2560, %v2559
  %v2566 = vsel %vm208, %v2552, 0
  %2568 = vmatprep.subr.bf16.mxu0 0
  %2569 = vmatpush1.bf16.msra.mxu0 %v2561
  %2570 = vmatprep.subr.bf16.mxu0 0
  %2571 = vmatpush1.bf16.msra.mxu0 %v2562
  %2572 = vmatprep.subr.bf16.mxu0 0
  %2573 = vmatpush1.bf16.msra.mxu0 0
  %2574 = vmatprep.subr.bf16.mxu0 0
  %2575 = vmatpush1.bf16.msra.mxu0 0
  %2576 = vmatprep.subr.bf16.mxu0 0
  %2577 = vmatpush1.bf16.msra.mxu0 0
  %2578 = vmatprep.subr.bf16.mxu0 0
  %2579 = vmatpush1.bf16.msra.mxu0 0
  %2580 = vmatprep.subr.bf16.mxu0 0
  %2581 = vmatpush1.bf16.msra.mxu0 0
  %2582 = vmatprep.subr.bf16.mxu0 0
  %2583 = vmatpush1.bf16.msra.mxu0 0
  %2584 = vmatprep.subr.bf16.mxu0 0
  %2585 = vmatpush1.bf16.msra.mxu0 0
  %2586 = vmatprep.subr.bf16.mxu0 0
  %2587 = vmatpush1.bf16.msra.mxu0 0
  %2588 = vmatprep.subr.bf16.mxu0 0
  %2589 = vmatpush1.bf16.msra.mxu0 0
  %2590 = vmatprep.subr.bf16.mxu0 0
  %2591 = vmatpush1.bf16.msra.mxu0 0
  %2592 = vmatprep.subr.bf16.mxu0 0
  %2593 = vmatpush1.bf16.msra.mxu0 0
  %2594 = vmatprep.subr.bf16.mxu0 0
  %2595 = vmatpush1.bf16.msra.mxu0 0
  %2596 = vmatprep.subr.bf16.mxu0 0
  %2597 = vmatpush1.bf16.msra.mxu0 0
  %2598 = vmatprep.subr.bf16.mxu0 0
  %2599 = vmatpush1.bf16.msra.mxu0 0
  %2600 = vmatprep.mubr.bf16.mxu0 0
  %2601 = vmatmul.mubr.bf16.gmra.mrb[0].mxu0 %v2566
  %v2602 = vpop.f32.mrb[0].mxu0
  %v2603 = vadd.f32 0.0, %v2602
  %v2604 = vpop.f32.mrb[0].mxu0
  %v2605 = vpop.f32.mrb[0].mxu0
  %v2606 = vpop.f32.mrb[0].mxu0
  %2607 = vdwg.mxu0
  %v2608 = vlaneseq
  %v2609 = vshrl.u32 %v2608, 7
  %v2610 = vsub.s32 1, %v2609
  %v2611 = vrot.slane %v76, %v2610
  %v2612 = vadd.f32 %v2603, %v2611
  %vm2613 = vcmp.gt.f32.partialorder %v2612, 0.0
  %v2614 = vmin.f32 %v2612, 0.0
  %v2615 = vmul.f32 %v2614, 1.442695
  %v2616 = vpow.pop %v2615
  %v2617 = vsub.f32 %v2616, 1.0
  %v2618 = vsel %vm2613, %v2612, %v2617
  %v2619 = vpack.c.bf16 %v2618, %v2618
  %v2620 = vlaneseq
  %v2621 = vshrl.u32 %v2620, 7
  %v2622 = vsub.s32 3, %v2621
  %v2623 = vrot.slane %v76, %v2622
  %v2626 = vunpack.c.l.b16 %v72
  %v2627 = vunpack.c.l.b16 %v73
  %v2628 = vpack.c.b16 %v2627, %v2626
  %vm2630 = vcmask 130048
  %v2632 = vsel %vm2630, %v2619, 0
  %2634 = vmatprep.subr.bf16.mxu0 0
  %2635 = vmatpush1.bf16.msra.mxu0 %v2628
  %2636 = vmatprep.subr.bf16.mxu0 0
  %2637 = vmatpush1.bf16.msra.mxu0 0
  %2638 = vmatprep.subr.bf16.mxu0 0
  %2639 = vmatpush1.bf16.msra.mxu0 0
  %2640 = vmatprep.subr.bf16.mxu0 0
  %2641 = vmatpush1.bf16.msra.mxu0 0
  %2642 = vmatprep.subr.bf16.mxu0 0
  %2643 = vmatpush1.bf16.msra.mxu0 0
  %2644 = vmatprep.subr.bf16.mxu0 0
  %2645 = vmatpush1.bf16.msra.mxu0 0
  %2646 = vmatprep.subr.bf16.mxu0 0
  %2647 = vmatpush1.bf16.msra.mxu0 0
  %2648 = vmatprep.subr.bf16.mxu0 0
  %2649 = vmatpush1.bf16.msra.mxu0 0
  %2650 = vmatprep.subr.bf16.mxu0 0
  %2651 = vmatpush1.bf16.msra.mxu0 0
  %2652 = vmatprep.subr.bf16.mxu0 0
  %2653 = vmatpush1.bf16.msra.mxu0 0
  %2654 = vmatprep.subr.bf16.mxu0 0
  %2655 = vmatpush1.bf16.msra.mxu0 0
  %2656 = vmatprep.subr.bf16.mxu0 0
  %2657 = vmatpush1.bf16.msra.mxu0 0
  %2658 = vmatprep.subr.bf16.mxu0 0
  %2659 = vmatpush1.bf16.msra.mxu0 0
  %2660 = vmatprep.subr.bf16.mxu0 0
  %2661 = vmatpush1.bf16.msra.mxu0 0
  %2662 = vmatprep.subr.bf16.mxu0 0
  %2663 = vmatpush1.bf16.msra.mxu0 0
  %2664 = vmatprep.subr.bf16.mxu0 0
  %2665 = vmatpush1.bf16.msra.mxu0 0
  %2666 = vmatprep.mubr.bf16.mxu0 0
  %2667 = vmatmul.mubr.bf16.gmra.mrb[0].mxu0 %v2632
  %v2668 = vpop.f32.mrb[0].mxu0
  %v2669 = vadd.f32 %v2623, %v2668
  %v2670 = vpop.f32.mrb[0].mxu0
  %v2671 = vpop.f32.mrb[0].mxu0
  %v2672 = vpop.f32.mrb[0].mxu0
  %2673 = vdwg.mxu0
  %vm2674 = vcmp.gt.f32.partialorder %v2669, 0.0
  %v2675 = vmin.f32 %v2669, 0.0
  %v2676 = vmul.f32 %v2675, 1.442695
  %v2677 = vpow.pop %v2676
  %v2678 = vsub.f32 %v2677, 1.0
  %v2679 = vsel %vm2674, %v2669, %v2678
  %v2680 = vmul.f32 %v2679, 1999853.4
  %v2681 = vlaneseq
  %v2682 = vshrl.u32 %v2681, 7
  %v2683 = vsub.s32 2, %v2682
  %v2684 = vrot.slane %v76, %v2683
  %2686 = vrot.lane.b32.xlu0 %v2684, 16
  %v2687 = vpop.permute.xlu0 %2686
  %v2689 = vadd.f32 %v2603, %v2687
  %2691 = vrot.lane.b32.xlu0 %v2689, 1
  %v2692 = vpop.permute.xlu0 %2691
  %v2694 = vsub.f32 %v2689, %v2692
  %v2695 = vmul.f32 %v2694, 1.442695
  %v2696 = vpow.pop %v2695
  %v2697 = vadd.f32 %v2696, 1.0
  %v2698 = vrcp.pop %v2697
  %v2699 = vmul.f32 1.0, %v2698
  %2701 = vrot.lane.b32.xlu0 %v2680, 17
  %v2702 = vpop.permute.xlu0 %2701
  %v2704 = vmul.f32 %v2699, %v2702
  %v2705 = vsub.f32 1.0, %v2699
  %2707 = vrot.lane.b32.xlu0 %v66, 17
  %v2708 = vpop.permute.xlu0 %2707
  %v2710 = vmul.f32 %v2705, %v2708
  %v2711 = vadd.f32 %v2704, %v2710
  %2713 = vrot.lane.b32.xlu0 %v2711, 111
  %v2714 = vpop.permute.xlu0 %2713
  %vm2716 = vcmask 1024
  %2717 = vst.msk [vmem:[%s4] sm:$0x3] %vm2716, %v2714
  // Predicated region
  $region18: #{stacked_gat_forward.1} parent=0 // pred_check
    _
  $region19: #{stacked_gat_forward.1} parent=0 // pred_check_branch
    %2719 = sbr.rel (0) target = $region21
  $region20: #{stacked_gat_forward.1} parent=0 // pred_region
    _
  $region21: #{stacked_gat_forward.1} parent=0 // pred_fallthru
    _
  // Predicated region
  $region22: #{stacked_gat_forward.1} parent=0 // pred_check
    _
  $region23: #{stacked_gat_forward.1} parent=0 // pred_check_branch
    %2721 = sbr.rel (0) target = $region25
  $region24: #{stacked_gat_forward.1} parent=0 // pred_region
    _
  $region25: #{stacked_gat_forward.1} parent=0 // pred_fallthru
    _

</llo_original>
